<compile_context>
chip_gen: v7x
topology: tpu7x:2x2x1
jax: 0.10.0
libtpu: 0.0.40
codegen_flags: <defaults>
</compile_context>

<pallas_src>
import functools

import jax
import jax.numpy as jnp
from jax.experimental import pallas as pl
from jax.experimental.pallas import tpu as pltpu

LATENT_DIM = 128          # class default latent_dim
IMG = 16                  # small spatial size: 16 -> 8 -> 4 -> 2 through the encoder
ENC_SPATIAL = IMG // 8
FLAT_DIM = 128 * ENC_SPATIAL * ENC_SPATIAL
VMEM_LIMIT = 32 * 1024 * 1024


def _round_up(x, m):
    return ((x + m - 1) // m) * m


def _pick_tile(dim, cands):
    for t in cands:
        if dim % t == 0:
            return t
    return cands[-1]


# ----------------------------------------------------------------------------
# Pallas kernels
# ----------------------------------------------------------------------------
def _mm_bias_act_kernel(x_ref, w_ref, b_ref, o_ref, acc_ref, *, act):
    """K-tiled (tile of X) @ W with fp32 accumulator; bias + activation epilogue."""
    k = pl.program_id(2)

    @pl.when(k == 0)
    def _():
        acc_ref[...] = jnp.zeros_like(acc_ref)

    acc_ref[...] += jnp.dot(x_ref[...], w_ref[...],
                            preferred_element_type=jnp.float32)

    @pl.when(k == pl.num_programs(2) - 1)
    def _():
        acc = acc_ref[...] + b_ref[...]
        if act == "relu":
            acc = jnp.maximum(acc, 0.0)
        elif act == "sigmoid":
            acc = jax.nn.sigmoid(acc)
        o_ref[...] = acc.astype(o_ref.dtype)


def matmul_bias_act(x, w, b, act="none", out_dtype=jnp.bfloat16):
    """x: (M, K); w: (Kp, Np) bf16 pre-padded (Kp, Np multiples of 128);
    b: (1, Np) f32.  Returns (M, Np) in out_dtype; caller slices off N padding."""
    M, K = x.shape
    Kp, Np = w.shape
    x = x.astype(jnp.bfloat16)
    if Kp > K:
        x = jnp.pad(x, ((0, 0), (0, Kp - K)))
    if M <= 512:
        tm, Mp = M, M
    else:
        tm = 512
        Mp = _round_up(M, tm)
        x = jnp.pad(x, ((0, Mp - M), (0, 0)))
    tk = _pick_tile(Kp, (512, 384, 256, 128))
    tn = _pick_tile(Np, (512, 256, 128))
    grid = (Mp // tm, Np // tn, Kp // tk)

    out = pl.pallas_call(
        functools.partial(_mm_bias_act_kernel, act=act),
        out_shape=jax.ShapeDtypeStruct((Mp, Np), out_dtype),
        grid=grid,
        in_specs=[
            pl.BlockSpec((tm, tk), lambda i, j, k: (i, k)),
            pl.BlockSpec((tk, tn), lambda i, j, k: (k, j)),
            pl.BlockSpec((1, tn), lambda i, j, k: (0, j)),
        ],
        out_specs=pl.BlockSpec((tm, tn), lambda i, j, k: (i, j)),
        scratch_shapes=[pltpu.VMEM((tm, tn), jnp.float32)],
        compiler_params=pltpu.CompilerParams(
            dimension_semantics=("parallel", "parallel", "arbitrary"),
            vmem_limit_bytes=VMEM_LIMIT),
    )(x, w, b)
    return out[:M]


def _head_kernel(x_ref, w_ref, b_ref, eps_ref, mu_ref, lv_ref, z_ref, acc_ref):
    """Fused fc_mu | fc_logvar projection + reparameterization epilogue."""
    k = pl.program_id(0)

    @pl.when(k == 0)
    def _():
        acc_ref[...] = jnp.zeros_like(acc_ref)

    acc_ref[...] += jnp.dot(x_ref[...], w_ref[...],
                            preferred_element_type=jnp.float32)

    @pl.when(k == pl.num_programs(0) - 1)
    def _():
        acc = acc_ref[...] + b_ref[...]
        L = mu_ref.shape[-1]
        mu = acc[:, :L]
        lv = acc[:, L:]
        mu_ref[...] = mu
        lv_ref[...] = lv
        z_ref[...] = mu + eps_ref[...] * jnp.exp(0.5 * lv)


def encode_head(h_flat, w_cat, b_cat, eps):
    """h_flat: (B, FLAT) -> (mu, logvar, z), each (B, L) float32, one pallas_call."""
    B, K = h_flat.shape
    Kp, N2 = w_cat.shape
    L = N2 // 2
    x = h_flat.astype(jnp.bfloat16)
    if Kp > K:
        x = jnp.pad(x, ((0, 0), (0, Kp - K)))
    tk = _pick_tile(Kp, (512, 384, 256, 128))
    grid = (Kp // tk,)

    mu, lv, z = pl.pallas_call(
        _head_kernel,
        out_shape=(
            jax.ShapeDtypeStruct((B, L), jnp.float32),
            jax.ShapeDtypeStruct((B, L), jnp.float32),
            jax.ShapeDtypeStruct((B, L), jnp.float32),
        ),
        grid=grid,
        in_specs=[
            pl.BlockSpec((B, tk), lambda k: (0, k)),
            pl.BlockSpec((tk, N2), lambda k: (k, 0)),
            pl.BlockSpec((1, N2), lambda k: (0, 0)),
            pl.BlockSpec((B, L), lambda k: (0, 0)),
        ],
        out_specs=(
            pl.BlockSpec((B, L), lambda k: (0, 0)),
            pl.BlockSpec((B, L), lambda k: (0, 0)),
            pl.BlockSpec((B, L), lambda k: (0, 0)),
        ),
        scratch_shapes=[pltpu.VMEM((B, N2), jnp.float32)],
        compiler_params=pltpu.CompilerParams(
            dimension_semantics=("arbitrary",),
            vmem_limit_bytes=VMEM_LIMIT),
    )(x, w_cat, b_cat, eps.astype(jnp.float32))
    return mu, lv, z


# ----------------------------------------------------------------------------
# Conv / ConvTranspose built on the Pallas matmul kernel (im2col glue in JAX)
# ----------------------------------------------------------------------------
def _im2col(x_nhwc, k, stride, pad_lo, pad_hi):
    N, H, W, C = x_nhwc.shape
    xp = jnp.pad(x_nhwc, ((0, 0), (pad_lo, pad_hi), (pad_lo, pad_hi), (0, 0)))
    Ho = (H + pad_lo + pad_hi - k) // stride + 1
    Wo = (W + pad_lo + pad_hi - k) // stride + 1
    cols = []
    for di in range(k):
        for dj in range(k):
            cols.append(xp[:, di:di + stride * Ho:stride, dj:dj + stride * Wo:stride, :])
    cols = jnp.concatenate(cols, axis=-1)                      # (N, Ho, Wo, k*k*C)
    return cols.reshape(N * Ho * Wo, k * k * C), (N, Ho, Wo)


def conv2d(x_nhwc, wp, bp, c_out, k, stride, padding, act, out_dtype=jnp.bfloat16):
    """wp/bp are prepared (lane-padded, bf16) layouts from prep_conv."""
    cols, (N, Ho, Wo) = _im2col(x_nhwc, k, stride, padding, padding)
    out = matmul_bias_act(cols, wp, bp, act=act, out_dtype=out_dtype)
    return out[:, :c_out].reshape(N, Ho, Wo, c_out)


def conv_transpose2d_ps(x_nhwc, wp, bp, c_out, act, out_dtype=jnp.bfloat16):
    """ConvTranspose2d(k=3, stride=2, padding=1, output_padding=1) as a stride-1
    2x2 conv producing (2,2,c_out) channel groups followed by depth-to-space."""
    N, H, W, _ = x_nhwc.shape
    cols, _ = _im2col(x_nhwc, 2, 1, 0, 1)                      # 2x2 window, pad-hi 1
    out = matmul_bias_act(cols, wp, bp, act=act, out_dtype=out_dtype)
    out = out[:, :4 * c_out].reshape(N, H, W, 2, 2, c_out)
    out = jnp.transpose(out, (0, 1, 3, 2, 4, 5)).reshape(N, 2 * H, 2 * W, c_out)
    return out


# ----------------------------------------------------------------------------
# One-time weight preparation (PyTorch layouts -> matmul-ready, lane-dense, bf16)
# ----------------------------------------------------------------------------
def _pad_kn(w2, b):
    K, N = w2.shape
    Kp, Np = _round_up(K, 128), _round_up(N, 128)
    w2 = jnp.pad(w2, ((0, Kp - K), (0, Np - N))).astype(jnp.bfloat16)
    b2 = jnp.pad(b, (0, Np - N)).astype(jnp.float32).reshape(1, Np)
    return w2, b2


def prep_conv(w_oikk, b):
    """PyTorch Conv2d weight (C_out, C_in, kH, kW) -> (kH*kW*C_in, C_out_padded)."""
    C_out, C_in, kH, kW = w_oikk.shape
    w2 = jnp.transpose(w_oikk, (2, 3, 1, 0)).reshape(kH * kW * C_in, C_out)
    return _pad_kn(w2, b)


def prep_convtranspose_ps(w_iokk, b):
    """PyTorch ConvTranspose2d weight (C_in, C_out, 3, 3) [stride=2, pad=1, out_pad=1]
    -> pixel-shuffle matmul weight (4*C_in, 4*C_out_padded).
    Output position (2i+ry, 2j+rx) gets x[i+dy, j+dx] * W[ci, co, 1+ry-2dy, 1+rx-2dx]."""
    C_in, C_out, kH, kW = w_iokk.shape
    w6 = jnp.zeros((2, 2, C_in, 2, 2, C_out), w_iokk.dtype)
    for dy in range(2):
        for dx in range(2):
            for ry in range(2):
                for rx in range(2):
                    ky, kx = 1 + ry - 2 * dy, 1 + rx - 2 * dx
                    if 0 <= ky < kH and 0 <= kx < kW:
                        w6 = w6.at[dy, dx, :, ry, rx, :].set(w_iokk[:, :, ky, kx])
    w2 = w6.reshape(4 * C_in, 4 * C_out)
    b2 = jnp.tile(b, 4)                                        # (ry, rx, co) order
    return _pad_kn(w2, b2)


def prep_head(mu_w, mu_b, lv_w, lv_b, C, H, W):
    """fc_mu/fc_logvar: permute rows from NCHW-flatten to NHWC-flatten order and
    concatenate along N so both projections run as one matmul."""
    def permute_rows(w):
        return jnp.transpose(w.reshape(C, H, W, -1), (1, 2, 0, 3)).reshape(C * H * W, -1)
    w_cat = jnp.concatenate([permute_rows(mu_w), permute_rows(lv_w)], axis=1)
    b_cat = jnp.concatenate([mu_b, lv_b])
    K, N2 = w_cat.shape
    Kp = _round_up(K, 128)
    w_cat = jnp.pad(w_cat, ((0, Kp - K), (0, 0))).astype(jnp.bfloat16)
    return w_cat, b_cat.astype(jnp.float32).reshape(1, N2)


def prep_dec_fc(w, b, C, H, W):
    """decoder_fc: permute output columns from NCHW to NHWC flatten order so the
    decoder can reshape straight to NHWC without a per-forward transpose."""
    L = w.shape[0]
    w2 = jnp.transpose(w.reshape(L, C, H, W), (0, 2, 3, 1)).reshape(L, C * H * W)
    b2 = jnp.transpose(b.reshape(C, H, W), (1, 2, 0)).reshape(C * H * W)
    return _pad_kn(w2, b2)


def prepare_params(p):
    prep = {}
    prep["enc1_w"], prep["enc1_b"] = prep_conv(p["enc1_w"], p["enc1_b"])
    prep["enc2_w"], prep["enc2_b"] = prep_conv(p["enc2_w"], p["enc2_b"])
    prep["enc3_w"], prep["enc3_b"] = prep_conv(p["enc3_w"], p["enc3_b"])
    prep["head_w"], prep["head_b"] = prep_head(
        p["mu_w"], p["mu_b"], p["lv_w"], p["lv_b"], 128, ENC_SPATIAL, ENC_SPATIAL)
    prep["dec_fc_w"], prep["dec_fc_b"] = prep_dec_fc(
        p["dec_fc_w"], p["dec_fc_b"], 128, ENC_SPATIAL, ENC_SPATIAL)
    prep["dec1_w"], prep["dec1_b"] = prep_convtranspose_ps(p["dec1_w"], p["dec1_b"])
    prep["dec2_w"], prep["dec2_b"] = prep_convtranspose_ps(p["dec2_w"], p["dec2_b"])
    prep["dec3_w"], prep["dec3_b"] = prep_convtranspose_ps(p["dec3_w"], p["dec3_b"])
    return prep


# ----------------------------------------------------------------------------
# Parameters (deterministic synthetic init, PyTorch layouts) + full VAE forward
# ----------------------------------------------------------------------------
def init_params(key):
    ks = jax.random.split(key, 18)

    def w(k, shape, fan_in):
        return jax.random.normal(k, shape, jnp.float32) / jnp.sqrt(float(fan_in))

    def bias(k, n):
        return 0.01 * jax.random.normal(k, (n,), jnp.float32)

    p = {}
    p["enc1_w"] = w(ks[0], (32, 3, 3, 3), 3 * 9);        p["enc1_b"] = bias(ks[1], 32)
    p["enc2_w"] = w(ks[2], (64, 32, 3, 3), 32 * 9);      p["enc2_b"] = bias(ks[3], 64)
    p["enc3_w"] = w(ks[4], (128, 64, 3, 3), 64 * 9);     p["enc3_b"] = bias(ks[5], 128)
    p["mu_w"] = w(ks[6], (FLAT_DIM, LATENT_DIM), FLAT_DIM);  p["mu_b"] = bias(ks[7], LATENT_DIM)
    p["lv_w"] = w(ks[8], (FLAT_DIM, LATENT_DIM), FLAT_DIM);  p["lv_b"] = bias(ks[9], LATENT_DIM)
    p["dec_fc_w"] = w(ks[10], (LATENT_DIM, FLAT_DIM), LATENT_DIM)
    p["dec_fc_b"] = bias(ks[11], FLAT_DIM)
    p["dec1_w"] = w(ks[12], (128, 64, 3, 3), 128 * 9);   p["dec1_b"] = bias(ks[13], 64)
    p["dec2_w"] = w(ks[14], (64, 32, 3, 3), 64 * 9);     p["dec2_b"] = bias(ks[15], 32)
    p["dec3_w"] = w(ks[16], (32, 3, 3, 3), 32 * 9);      p["dec3_b"] = bias(ks[17], 3)
    return p


def vae_forward(prep, x_nchw, eps):
    # ---- encode ----
    x = jnp.transpose(x_nchw, (0, 2, 3, 1)).astype(jnp.bfloat16)    # NCHW -> NHWC once
    h = conv2d(x, prep["enc1_w"], prep["enc1_b"], 32, 3, 2, 1, "relu")
    h = conv2d(h, prep["enc2_w"], prep["enc2_b"], 64, 3, 2, 1, "relu")
    h = conv2d(h, prep["enc3_w"], prep["enc3_b"], 128, 3, 2, 1, "relu")
    B, Ho, Wo, C = h.shape
    h_flat = h.reshape(B, Ho * Wo * C)          # NHWC flatten; head weights permuted to match

    # ---- fused fc_mu | fc_logvar + reparameterize (one kernel) ----
    mu, logvar, z = encode_head(h_flat, prep["head_w"], prep["head_b"], eps)

    # ---- decode ----
    d = matmul_bias_act(z, prep["dec_fc_w"], prep["dec_fc_b"], act="relu")
    d = d[:, :FLAT_DIM].reshape(B, ENC_SPATIAL, ENC_SPATIAL, 128)   # already NHWC order
    d = conv_transpose2d_ps(d, prep["dec1_w"], prep["dec1_b"], 64, "relu")
    d = conv_transpose2d_ps(d, prep["dec2_w"], prep["dec2_b"], 32, "relu")
    d = conv_transpose2d_ps(d, prep["dec3_w"], prep["dec3_b"], 3, "sigmoid",
                            out_dtype=jnp.float32)
    recon = jnp.transpose(d, (0, 3, 1, 2))                          # NHWC -> NCHW
    return recon, mu, logvar


if __name__ == "__main__":
    key = jax.random.PRNGKey(0)
    k_params, k_x, k_eps = jax.random.split(key, 3)
    params = init_params(k_params)
    prep = prepare_params(params)                 # one-time weight relayout (not per-forward)
    x = jax.random.normal(k_x, (2, 3, IMG, IMG), jnp.float32)
    # TODO(synk): torch.randn_like is host RNG; eps is drawn deterministically here and
    # the reparameterization math runs fused inside the encode-head Pallas kernel.
    eps = jax.random.normal(k_eps, (2, LATENT_DIM), jnp.float32)

    fwd = jax.jit(vae_forward)
    recon, mu, logvar = fwd(prep, x, eps)
    jax.block_until_ready((recon, mu, logvar))

    assert recon.shape == (2, 3, IMG, IMG)
    assert mu.shape == (2, LATENT_DIM)
    assert logvar.shape == (2, LATENT_DIM)
    assert bool(jnp.all(jnp.isfinite(recon)))
    assert bool(jnp.all((recon >= 0.0) & (recon <= 1.0)))           # sigmoid output range
    print("KERNEL_OK")
</pallas_src>

<mosaic_0001>
module attributes {stable_mosaic.version = 11 : i64} {
  func.func @_mm_bias_act_kernel(%arg0: i32, %arg1: i32, %arg2: i32, %arg3: memref<128x128xbf16, #tpu.memory_space<vmem>>, %arg4: memref<128x128xbf16, #tpu.memory_space<vmem>>, %arg5: memref<1x128xf32, #tpu.memory_space<vmem>>, %arg6: memref<128x128xbf16, #tpu.memory_space<vmem>>, %arg7: memref<128x128xf32, #tpu.memory_space<vmem>>) attributes {dimension_semantics = [#tpu.dimension_semantics<parallel>, #tpu.dimension_semantics<parallel>, #tpu.dimension_semantics<arbitrary>], iteration_bounds = array<i64: 1, 1, 1>, scalar_prefetch = 0 : i64, scratch_operands = 1 : i64, tpu.core_type = #tpu.core_type<tc>, window_params = [{transform_indices = @transform_0, window_bounds = array<i64: 128, 128>}, {transform_indices = @transform_1, window_bounds = array<i64: 128, 128>}, {transform_indices = @transform_2, window_bounds = array<i64: 1, 128>}, {transform_indices = @transform_3, window_bounds = array<i64: 128, 128>}]} {
    %c0_i32 = arith.constant 0 : i32
    %0 = arith.cmpi eq, %arg2, %c0_i32 : i32
    %1 = arith.extui %0 : i1 to i32
    %c0_i32_0 = arith.constant 0 : i32
    %2 = arith.cmpi ne, %1, %c0_i32_0 : i32
    scf.if %2 {
      %cst_10 = arith.constant 0.000000e+00 : f32
      %12 = vector.broadcast %cst_10 : f32 to vector<128x128xf32>
      %c0_11 = arith.constant 0 : index
      %c0_12 = arith.constant 0 : index
      %13 = vector.load %arg7[%c0_11, %c0_12] : memref<128x128xf32, #tpu.memory_space<vmem>>, vector<128x128xf32>
      tpu.vector_store %arg7[%c0_11, %c0_12], %12 {strides = array<i32>} : memref<128x128xf32, #tpu.memory_space<vmem>>, vector<128x128xf32>,
    } else {
    }
    %c0 = arith.constant 0 : index
    %c0_1 = arith.constant 0 : index
    %3 = vector.load %arg7[%c0, %c0_1] : memref<128x128xf32, #tpu.memory_space<vmem>>, vector<128x128xf32>
    %c0_2 = arith.constant 0 : index
    %c0_3 = arith.constant 0 : index
    %4 = vector.load %arg3[%c0_2, %c0_3] : memref<128x128xbf16, #tpu.memory_space<vmem>>, vector<128x128xbf16>
    %c0_4 = arith.constant 0 : index
    %c0_5 = arith.constant 0 : index
    %5 = vector.load %arg4[%c0_4, %c0_5] : memref<128x128xbf16, #tpu.memory_space<vmem>>, vector<128x128xbf16>
    %cst = arith.constant dense<0.000000e+00> : vector<128x128xf32>
    %6 = tpu.matmul %4, %5, %cst {dimension_numbers = #tpu.dot_dimension_numbers<[1], [0], [0], [1], [0, 0, 1, 1], [], []>} : vector<128x128xbf16>, vector<128x128xbf16>, vector<128x128xf32> -> vector<128x128xf32>
    %7 = arith.addf %3, %6 : vector<128x128xf32>
    %c0_6 = arith.constant 0 : index
    %c0_7 = arith.constant 0 : index
    %8 = vector.load %arg7[%c0_6, %c0_7] : memref<128x128xf32, #tpu.memory_space<vmem>>, vector<128x128xf32>
    tpu.vector_store %arg7[%c0_6, %c0_7], %7 {strides = array<i32>} : memref<128x128xf32, #tpu.memory_space<vmem>>, vector<128x128xf32>,
    %c0_i32_8 = arith.constant 0 : i32
    %9 = arith.cmpi eq, %arg2, %c0_i32_8 : i32
    %10 = arith.extui %9 : i1 to i32
    %c0_i32_9 = arith.constant 0 : i32
    %11 = arith.cmpi ne, %10, %c0_i32_9 : i32
    scf.if %11 {
      %c0_10 = arith.constant 0 : index
      %c0_11 = arith.constant 0 : index
      %12 = vector.load %arg7[%c0_10, %c0_11] : memref<128x128xf32, #tpu.memory_space<vmem>>, vector<128x128xf32>
      %c0_12 = arith.constant 0 : index
      %c0_13 = arith.constant 0 : index
      %13 = vector.load %arg5[%c0_12, %c0_13] : memref<1x128xf32, #tpu.memory_space<vmem>>, vector<1x128xf32>
      %14 = vector.broadcast %13 : vector<1x128xf32> to vector<128x128xf32>
      %15 = arith.addf %12, %14 : vector<128x128xf32>
      %cst_14 = arith.constant 0.000000e+00 : f32
      %16 = vector.broadcast %cst_14 : f32 to vector<128x128xf32>
      %17 = arith.maximumf %15, %16 : vector<128x128xf32>
      %18 = arith.truncf %17 : vector<128x128xf32> to vector<128x128xbf16>
      %c0_15 = arith.constant 0 : index
      %c0_16 = arith.constant 0 : index
      %19 = vector.load %arg6[%c0_15, %c0_16] : memref<128x128xbf16, #tpu.memory_space<vmem>>, vector<128x128xbf16>
      tpu.vector_store %arg6[%c0_15, %c0_16], %18 {strides = array<i32>} : memref<128x128xbf16, #tpu.memory_space<vmem>>, vector<128x128xbf16>,
    } else {
    }
    return
  }
  func.func @transform_0(%arg0: i32, %arg1: i32, %arg2: i32) -> (i32, i32) {
    %c0_i32 = arith.constant 0 : i32
    return %arg0, %arg2 : i32, i32
  }
  func.func @transform_1(%arg0: i32, %arg1: i32, %arg2: i32) -> (i32, i32) {
    %c0_i32 = arith.constant 0 : i32
    return %arg2, %arg1 : i32, i32
  }
  func.func @transform_2(%arg0: i32, %arg1: i32, %arg2: i32) -> (i32, i32) {
    %c0_i32 = arith.constant 0 : i32
    %c0_i32_0 = arith.constant 0 : i32
    return %c0_i32, %arg1 : i32, i32
  }
  func.func @transform_3(%arg0: i32, %arg1: i32, %arg2: i32) -> (i32, i32) {
    %c0_i32 = arith.constant 0 : i32
    return %arg0, %arg1 : i32, i32
  }
}

module attributes {stable_mosaic.version = 11 : i64} {
  func.func @_mm_bias_act_kernel(%arg0: i32, %arg1: i32, %arg2: i32, %arg3: memref<32x384xbf16, #tpu.memory_space<vmem>>, %arg4: memref<384x128xbf16, #tpu.memory_space<vmem>>, %arg5: memref<1x128xf32, #tpu.memory_space<vmem>>, %arg6: memref<32x128xbf16, #tpu.memory_space<vmem>>, %arg7: memref<32x128xf32, #tpu.memory_space<vmem>>) attributes {dimension_semantics = [#tpu.dimension_semantics<parallel>, #tpu.dimension_semantics<parallel>, #tpu.dimension_semantics<arbitrary>], iteration_bounds = array<i64: 1, 1, 1>, scalar_prefetch = 0 : i64, scratch_operands = 1 : i64, tpu.core_type = #tpu.core_type<tc>, window_params = [{transform_indices = @transform_0, window_bounds = array<i64: 32, 384>}, {transform_indices = @transform_1, window_bounds = array<i64: 384, 128>}, {transform_indices = @transform_2, window_bounds = array<i64: 1, 128>}, {transform_indices = @transform_3, window_bounds = array<i64: 32, 128>}]} {
    %c0_i32 = arith.constant 0 : i32
    %0 = arith.cmpi eq, %arg2, %c0_i32 : i32
    %1 = arith.extui %0 : i1 to i32
    %c0_i32_0 = arith.constant 0 : i32
    %2 = arith.cmpi ne, %1, %c0_i32_0 : i32
    scf.if %2 {
      %cst_10 = arith.constant 0.000000e+00 : f32
      %12 = vector.broadcast %cst_10 : f32 to vector<32x128xf32>
      %c0_11 = arith.constant 0 : index
      %c0_12 = arith.constant 0 : index
      %13 = vector.load %arg7[%c0_11, %c0_12] : memref<32x128xf32, #tpu.memory_space<vmem>>, vector<32x128xf32>
      tpu.vector_store %arg7[%c0_11, %c0_12], %12 {strides = array<i32>} : memref<32x128xf32, #tpu.memory_space<vmem>>, vector<32x128xf32>,
    } else {
    }
    %c0 = arith.constant 0 : index
    %c0_1 = arith.constant 0 : index
    %3 = vector.load %arg7[%c0, %c0_1] : memref<32x128xf32, #tpu.memory_space<vmem>>, vector<32x128xf32>
    %c0_2 = arith.constant 0 : index
    %c0_3 = arith.constant 0 : index
    %4 = vector.load %arg3[%c0_2, %c0_3] : memref<32x384xbf16, #tpu.memory_space<vmem>>, vector<32x384xbf16>
    %c0_4 = arith.constant 0 : index
    %c0_5 = arith.constant 0 : index
    %5 = vector.load %arg4[%c0_4, %c0_5] : memref<384x128xbf16, #tpu.memory_space<vmem>>, vector<384x128xbf16>
    %cst = arith.constant dense<0.000000e+00> : vector<32x128xf32>
    %6 = tpu.matmul %4, %5, %cst {dimension_numbers = #tpu.dot_dimension_numbers<[1], [0], [0], [1], [0, 0, 1, 1], [], []>} : vector<32x384xbf16>, vector<384x128xbf16>, vector<32x128xf32> -> vector<32x128xf32>
    %7 = arith.addf %3, %6 : vector<32x128xf32>
    %c0_6 = arith.constant 0 : index
    %c0_7 = arith.constant 0 : index
    %8 = vector.load %arg7[%c0_6, %c0_7] : memref<32x128xf32, #tpu.memory_space<vmem>>, vector<32x128xf32>
    tpu.vector_store %arg7[%c0_6, %c0_7], %7 {strides = array<i32>} : memref<32x128xf32, #tpu.memory_space<vmem>>, vector<32x128xf32>,
    %c0_i32_8 = arith.constant 0 : i32
    %9 = arith.cmpi eq, %arg2, %c0_i32_8 : i32
    %10 = arith.extui %9 : i1 to i32
    %c0_i32_9 = arith.constant 0 : i32
    %11 = arith.cmpi ne, %10, %c0_i32_9 : i32
    scf.if %11 {
      %c0_10 = arith.constant 0 : index
      %c0_11 = arith.constant 0 : index
      %12 = vector.load %arg7[%c0_10, %c0_11] : memref<32x128xf32, #tpu.memory_space<vmem>>, vector<32x128xf32>
      %c0_12 = arith.constant 0 : index
      %c0_13 = arith.constant 0 : index
      %13 = vector.load %arg5[%c0_12, %c0_13] : memref<1x128xf32, #tpu.memory_space<vmem>>, vector<1x128xf32>
      %14 = vector.broadcast %13 : vector<1x128xf32> to vector<32x128xf32>
      %15 = arith.addf %12, %14 : vector<32x128xf32>
      %cst_14 = arith.constant 0.000000e+00 : f32
      %16 = vector.broadcast %cst_14 : f32 to vector<32x128xf32>
      %17 = arith.maximumf %15, %16 : vector<32x128xf32>
      %18 = arith.truncf %17 : vector<32x128xf32> to vector<32x128xbf16>
      %c0_15 = arith.constant 0 : index
      %c0_16 = arith.constant 0 : index
      %19 = vector.load %arg6[%c0_15, %c0_16] : memref<32x128xbf16, #tpu.memory_space<vmem>>, vector<32x128xbf16>
      tpu.vector_store %arg6[%c0_15, %c0_16], %18 {strides = array<i32>} : memref<32x128xbf16, #tpu.memory_space<vmem>>, vector<32x128xbf16>,
    } else {
    }
    return
  }
  func.func @transform_0(%arg0: i32, %arg1: i32, %arg2: i32) -> (i32, i32) {
    %c0_i32 = arith.constant 0 : i32
    return %arg0, %arg2 : i32, i32
  }
  func.func @transform_1(%arg0: i32, %arg1: i32, %arg2: i32) -> (i32, i32) {
    %c0_i32 = arith.constant 0 : i32
    return %arg2, %arg1 : i32, i32
  }
  func.func @transform_2(%arg0: i32, %arg1: i32, %arg2: i32) -> (i32, i32) {
    %c0_i32 = arith.constant 0 : i32
    %c0_i32_0 = arith.constant 0 : i32
    return %c0_i32, %arg1 : i32, i32
  }
  func.func @transform_3(%arg0: i32, %arg1: i32, %arg2: i32) -> (i32, i32) {
    %c0_i32 = arith.constant 0 : i32
    return %arg0, %arg1 : i32, i32
  }
}

module attributes {stable_mosaic.version = 11 : i64} {
  func.func @_mm_bias_act_kernel(%arg0: i32, %arg1: i32, %arg2: i32, %arg3: memref<8x128xbf16, #tpu.memory_space<vmem>>, %arg4: memref<128x128xbf16, #tpu.memory_space<vmem>>, %arg5: memref<1x128xf32, #tpu.memory_space<vmem>>, %arg6: memref<8x128xbf16, #tpu.memory_space<vmem>>, %arg7: memref<8x128xf32, #tpu.memory_space<vmem>>) attributes {dimension_semantics = [#tpu.dimension_semantics<parallel>, #tpu.dimension_semantics<parallel>, #tpu.dimension_semantics<arbitrary>], iteration_bounds = array<i64: 1, 1, 5>, scalar_prefetch = 0 : i64, scratch_operands = 1 : i64, tpu.core_type = #tpu.core_type<tc>, window_params = [{transform_indices = @transform_0, window_bounds = array<i64: 8, 128>}, {transform_indices = @transform_1, window_bounds = array<i64: 128, 128>}, {transform_indices = @transform_2, window_bounds = array<i64: 1, 128>}, {transform_indices = @transform_3, window_bounds = array<i64: 8, 128>}]} {
    %c0_i32 = arith.constant 0 : i32
    %0 = arith.cmpi eq, %arg2, %c0_i32 : i32
    %1 = arith.extui %0 : i1 to i32
    %c0_i32_0 = arith.constant 0 : i32
    %2 = arith.cmpi ne, %1, %c0_i32_0 : i32
    scf.if %2 {
      %cst_9 = arith.constant 0.000000e+00 : f32
      %12 = vector.broadcast %cst_9 : f32 to vector<8x128xf32>
      %c0_10 = arith.constant 0 : index
      %c0_11 = arith.constant 0 : index
      %13 = vector.load %arg7[%c0_10, %c0_11] : memref<8x128xf32, #tpu.memory_space<vmem>>, vector<8x128xf32>
      tpu.vector_store %arg7[%c0_10, %c0_11], %12 {strides = array<i32>} : memref<8x128xf32, #tpu.memory_space<vmem>>, vector<8x128xf32>,
    } else {
    }
    %c0 = arith.constant 0 : index
    %c0_1 = arith.constant 0 : index
    %3 = vector.load %arg7[%c0, %c0_1] : memref<8x128xf32, #tpu.memory_space<vmem>>, vector<8x128xf32>
    %c0_2 = arith.constant 0 : index
    %c0_3 = arith.constant 0 : index
    %4 = vector.load %arg3[%c0_2, %c0_3] : memref<8x128xbf16, #tpu.memory_space<vmem>>, vector<8x128xbf16>
    %c0_4 = arith.constant 0 : index
    %c0_5 = arith.constant 0 : index
    %5 = vector.load %arg4[%c0_4, %c0_5] : memref<128x128xbf16, #tpu.memory_space<vmem>>, vector<128x128xbf16>
    %cst = arith.constant dense<0.000000e+00> : vector<8x128xf32>
    %6 = tpu.matmul %4, %5, %cst {dimension_numbers = #tpu.dot_dimension_numbers<[1], [0], [0], [1], [0, 0, 1, 1], [], []>} : vector<8x128xbf16>, vector<128x128xbf16>, vector<8x128xf32> -> vector<8x128xf32>
    %7 = arith.addf %3, %6 : vector<8x128xf32>
    %c0_6 = arith.constant 0 : index
    %c0_7 = arith.constant 0 : index
    %8 = vector.load %arg7[%c0_6, %c0_7] : memref<8x128xf32, #tpu.memory_space<vmem>>, vector<8x128xf32>
    tpu.vector_store %arg7[%c0_6, %c0_7], %7 {strides = array<i32>} : memref<8x128xf32, #tpu.memory_space<vmem>>, vector<8x128xf32>,
    %c4_i32 = arith.constant 4 : i32
    %9 = arith.cmpi eq, %arg2, %c4_i32 : i32
    %10 = arith.extui %9 : i1 to i32
    %c0_i32_8 = arith.constant 0 : i32
    %11 = arith.cmpi ne, %10, %c0_i32_8 : i32
    scf.if %11 {
      %c0_9 = arith.constant 0 : index
      %c0_10 = arith.constant 0 : index
      %12 = vector.load %arg7[%c0_9, %c0_10] : memref<8x128xf32, #tpu.memory_space<vmem>>, vector<8x128xf32>
      %c0_11 = arith.constant 0 : index
      %c0_12 = arith.constant 0 : index
      %13 = vector.load %arg5[%c0_11, %c0_12] : memref<1x128xf32, #tpu.memory_space<vmem>>, vector<1x128xf32>
      %14 = vector.broadcast %13 : vector<1x128xf32> to vector<8x128xf32>
      %15 = arith.addf %12, %14 : vector<8x128xf32>
      %cst_13 = arith.constant 0.000000e+00 : f32
      %16 = vector.broadcast %cst_13 : f32 to vector<8x128xf32>
      %17 = arith.maximumf %15, %16 : vector<8x128xf32>
      %18 = arith.truncf %17 : vector<8x128xf32> to vector<8x128xbf16>
      %c0_14 = arith.constant 0 : index
      %c0_15 = arith.constant 0 : index
      %19 = vector.load %arg6[%c0_14, %c0_15] : memref<8x128xbf16, #tpu.memory_space<vmem>>, vector<8x128xbf16>
      tpu.vector_store %arg6[%c0_14, %c0_15], %18 {strides = array<i32>} : memref<8x128xbf16, #tpu.memory_space<vmem>>, vector<8x128xbf16>,
    } else {
    }
    return
  }
  func.func @transform_0(%arg0: i32, %arg1: i32, %arg2: i32) -> (i32, i32) {
    %c0_i32 = arith.constant 0 : i32
    return %arg0, %arg2 : i32, i32
  }
  func.func @transform_1(%arg0: i32, %arg1: i32, %arg2: i32) -> (i32, i32) {
    %c0_i32 = arith.constant 0 : i32
    return %arg2, %arg1 : i32, i32
  }
  func.func @transform_2(%arg0: i32, %arg1: i32, %arg2: i32) -> (i32, i32) {
    %c0_i32 = arith.constant 0 : i32
    %c0_i32_0 = arith.constant 0 : i32
    return %c0_i32, %arg1 : i32, i32
  }
  func.func @transform_3(%arg0: i32, %arg1: i32, %arg2: i32) -> (i32, i32) {
    %c0_i32 = arith.constant 0 : i32
    return %arg0, %arg1 : i32, i32
  }
}

module attributes {stable_mosaic.version = 11 : i64} {
  func.func @_head_kernel(%arg0: i32, %arg1: memref<2x512xbf16, #tpu.memory_space<vmem>>, %arg2: memref<512x256xbf16, #tpu.memory_space<vmem>>, %arg3: memref<1x256xf32, #tpu.memory_space<vmem>>, %arg4: memref<2x128xf32, #tpu.memory_space<vmem>>, %arg5: memref<2x128xf32, #tpu.memory_space<vmem>>, %arg6: memref<2x128xf32, #tpu.memory_space<vmem>>, %arg7: memref<2x128xf32, #tpu.memory_space<vmem>>, %arg8: memref<2x256xf32, #tpu.memory_space<vmem>>) attributes {dimension_semantics = [#tpu.dimension_semantics<arbitrary>], iteration_bounds = array<i64: 1>, scalar_prefetch = 0 : i64, scratch_operands = 1 : i64, tpu.core_type = #tpu.core_type<tc>, window_params = [{transform_indices = @transform_0, window_bounds = array<i64: 2, 512>}, {transform_indices = @transform_1, window_bounds = array<i64: 512, 256>}, {pipeline_mode = #tpu.pipeline_mode<synchronous>, transform_indices = @transform_2, window_bounds = array<i64: 1, 256>}, {pipeline_mode = #tpu.pipeline_mode<synchronous>, transform_indices = @transform_3, window_bounds = array<i64: 2, 128>}, {pipeline_mode = #tpu.pipeline_mode<synchronous>, transform_indices = @transform_4, window_bounds = array<i64: 2, 128>}, {pipeline_mode = #tpu.pipeline_mode<synchronous>, transform_indices = @transform_5, window_bounds = array<i64: 2, 128>}, {pipeline_mode = #tpu.pipeline_mode<synchronous>, transform_indices = @transform_6, window_bounds = array<i64: 2, 128>}]} {
    %c0_i32 = arith.constant 0 : i32
    %0 = arith.cmpi eq, %arg0, %c0_i32 : i32
    %1 = arith.extui %0 : i1 to i32
    %c0_i32_0 = arith.constant 0 : i32
    %2 = arith.cmpi ne, %1, %c0_i32_0 : i32
    scf.if %2 {
      %cst_10 = arith.constant 0.000000e+00 : f32
      %12 = vector.broadcast %cst_10 : f32 to vector<2x256xf32>
      %c0_11 = arith.constant 0 : index
      %c0_12 = arith.constant 0 : index
      %13 = vector.load %arg8[%c0_11, %c0_12] : memref<2x256xf32, #tpu.memory_space<vmem>>, vector<2x256xf32>
      tpu.vector_store %arg8[%c0_11, %c0_12], %12 {strides = array<i32>} : memref<2x256xf32, #tpu.memory_space<vmem>>, vector<2x256xf32>,
    } else {
    }
    %c0 = arith.constant 0 : index
    %c0_1 = arith.constant 0 : index
    %3 = vector.load %arg8[%c0, %c0_1] : memref<2x256xf32, #tpu.memory_space<vmem>>, vector<2x256xf32>
    %c0_2 = arith.constant 0 : index
    %c0_3 = arith.constant 0 : index
    %4 = vector.load %arg1[%c0_2, %c0_3] : memref<2x512xbf16, #tpu.memory_space<vmem>>, vector<2x512xbf16>
    %c0_4 = arith.constant 0 : index
    %c0_5 = arith.constant 0 : index
    %5 = vector.load %arg2[%c0_4, %c0_5] : memref<512x256xbf16, #tpu.memory_space<vmem>>, vector<512x256xbf16>
    %cst = arith.constant dense<0.000000e+00> : vector<2x256xf32>
    %6 = tpu.matmul %4, %5, %cst {dimension_numbers = #tpu.dot_dimension_numbers<[1], [0], [0], [1], [0, 0, 1, 1], [], []>} : vector<2x512xbf16>, vector<512x256xbf16>, vector<2x256xf32> -> vector<2x256xf32>
    %7 = arith.addf %3, %6 : vector<2x256xf32>
    %c0_6 = arith.constant 0 : index
    %c0_7 = arith.constant 0 : index
    %8 = vector.load %arg8[%c0_6, %c0_7] : memref<2x256xf32, #tpu.memory_space<vmem>>, vector<2x256xf32>
    tpu.vector_store %arg8[%c0_6, %c0_7], %7 {strides = array<i32>} : memref<2x256xf32, #tpu.memory_space<vmem>>, vector<2x256xf32>,
    %c0_i32_8 = arith.constant 0 : i32
    %9 = arith.cmpi eq, %arg0, %c0_i32_8 : i32
    %10 = arith.extui %9 : i1 to i32
    %c0_i32_9 = arith.constant 0 : i32
    %11 = arith.cmpi ne, %10, %c0_i32_9 : i32
    scf.if %11 {
      %c0_10 = arith.constant 0 : index
      %c0_11 = arith.constant 0 : index
      %12 = vector.load %arg8[%c0_10, %c0_11] : memref<2x256xf32, #tpu.memory_space<vmem>>, vector<2x256xf32>
      %c0_12 = arith.constant 0 : index
      %c0_13 = arith.constant 0 : index
      %13 = vector.load %arg3[%c0_12, %c0_13] : memref<1x256xf32, #tpu.memory_space<vmem>>, vector<1x256xf32>
      %14 = vector.broadcast %13 : vector<1x256xf32> to vector<2x256xf32>
      %15 = arith.addf %12, %14 : vector<2x256xf32>
      %16 = vector.extract_strided_slice %15 {offsets = [0, 0], sizes = [2, 128], strides = [1, 1]} : vector<2x256xf32> to vector<2x128xf32>
      %17 = vector.extract_strided_slice %15 {offsets = [0, 128], sizes = [2, 128], strides = [1, 1]} : vector<2x256xf32> to vector<2x128xf32>
      %c0_14 = arith.constant 0 : index
      %c0_15 = arith.constant 0 : index
      %18 = vector.load %arg5[%c0_14, %c0_15] : memref<2x128xf32, #tpu.memory_space<vmem>>, vector<2x128xf32>
      tpu.vector_store %arg5[%c0_14, %c0_15], %16 {strides = array<i32>} : memref<2x128xf32, #tpu.memory_space<vmem>>, vector<2x128xf32>,
      %c0_16 = arith.constant 0 : index
      %c0_17 = arith.constant 0 : index
      %19 = vector.load %arg6[%c0_16, %c0_17] : memref<2x128xf32, #tpu.memory_space<vmem>>, vector<2x128xf32>
      tpu.vector_store %arg6[%c0_16, %c0_17], %17 {strides = array<i32>} : memref<2x128xf32, #tpu.memory_space<vmem>>, vector<2x128xf32>,
      %c0_18 = arith.constant 0 : index
      %c0_19 = arith.constant 0 : index
      %20 = vector.load %arg4[%c0_18, %c0_19] : memref<2x128xf32, #tpu.memory_space<vmem>>, vector<2x128xf32>
      %cst_20 = arith.constant 5.000000e-01 : f32
      %21 = vector.broadcast %cst_20 : f32 to vector<2x128xf32>
      %22 = arith.mulf %21, %17 : vector<2x128xf32>
      %23 = math.exp %22 : vector<2x128xf32>
      %24 = arith.mulf %20, %23 : vector<2x128xf32>
      %25 = arith.addf %16, %24 : vector<2x128xf32>
      %c0_21 = arith.constant 0 : index
      %c0_22 = arith.constant 0 : index
      %26 = vector.load %arg7[%c0_21, %c0_22] : memref<2x128xf32, #tpu.memory_space<vmem>>, vector<2x128xf32>
      tpu.vector_store %arg7[%c0_21, %c0_22], %25 {strides = array<i32>} : memref<2x128xf32, #tpu.memory_space<vmem>>, vector<2x128xf32>,
    } else {
    }
    return
  }
  func.func @transform_0(%arg0: i32) -> (i32, i32) {
    %c0_i32 = arith.constant 0 : i32
    %c0_i32_0 = arith.constant 0 : i32
    return %c0_i32, %arg0 : i32, i32
  }
  func.func @transform_1(%arg0: i32) -> (i32, i32) {
    %c0_i32 = arith.constant 0 : i32
    %c0_i32_0 = arith.constant 0 : i32
    return %arg0, %c0_i32 : i32, i32
  }
  func.func @transform_2(%arg0: i32) -> (i32, i32) {
    %c0_i32 = arith.constant 0 : i32
    %c0_i32_0 = arith.constant 0 : i32
    %c0_i32_1 = arith.constant 0 : i32
    return %c0_i32, %c0_i32_0 : i32, i32
  }
  func.func @transform_3(%arg0: i32) -> (i32, i32) {
    %c0_i32 = arith.constant 0 : i32
    %c0_i32_0 = arith.constant 0 : i32
    %c0_i32_1 = arith.constant 0 : i32
    return %c0_i32, %c0_i32_0 : i32, i32
  }
  func.func @transform_4(%arg0: i32) -> (i32, i32) {
    %c0_i32 = arith.constant 0 : i32
    %c0_i32_0 = arith.constant 0 : i32
    %c0_i32_1 = arith.constant 0 : i32
    return %c0_i32, %c0_i32_0 : i32, i32
  }
  func.func @transform_5(%arg0: i32) -> (i32, i32) {
    %c0_i32 = arith.constant 0 : i32
    %c0_i32_0 = arith.constant 0 : i32
    %c0_i32_1 = arith.constant 0 : i32
    return %c0_i32, %c0_i32_0 : i32, i32
  }
  func.func @transform_6(%arg0: i32) -> (i32, i32) {
    %c0_i32 = arith.constant 0 : i32
    %c0_i32_0 = arith.constant 0 : i32
    %c0_i32_1 = arith.constant 0 : i32
    return %c0_i32, %c0_i32_0 : i32, i32
  }
}

module attributes {stable_mosaic.version = 11 : i64} {
  func.func @_mm_bias_act_kernel(%arg0: i32, %arg1: i32, %arg2: i32, %arg3: memref<8x512xbf16, #tpu.memory_space<vmem>>, %arg4: memref<512x256xbf16, #tpu.memory_space<vmem>>, %arg5: memref<1x256xf32, #tpu.memory_space<vmem>>, %arg6: memref<8x256xbf16, #tpu.memory_space<vmem>>, %arg7: memref<8x256xf32, #tpu.memory_space<vmem>>) attributes {dimension_semantics = [#tpu.dimension_semantics<parallel>, #tpu.dimension_semantics<parallel>, #tpu.dimension_semantics<arbitrary>], iteration_bounds = array<i64: 1, 1, 1>, scalar_prefetch = 0 : i64, scratch_operands = 1 : i64, tpu.core_type = #tpu.core_type<tc>, window_params = [{transform_indices = @transform_0, window_bounds = array<i64: 8, 512>}, {transform_indices = @transform_1, window_bounds = array<i64: 512, 256>}, {transform_indices = @transform_2, window_bounds = array<i64: 1, 256>}, {transform_indices = @transform_3, window_bounds = array<i64: 8, 256>}]} {
    %c0_i32 = arith.constant 0 : i32
    %0 = arith.cmpi eq, %arg2, %c0_i32 : i32
    %1 = arith.extui %0 : i1 to i32
    %c0_i32_0 = arith.constant 0 : i32
    %2 = arith.cmpi ne, %1, %c0_i32_0 : i32
    scf.if %2 {
      %cst_10 = arith.constant 0.000000e+00 : f32
      %12 = vector.broadcast %cst_10 : f32 to vector<8x256xf32>
      %c0_11 = arith.constant 0 : index
      %c0_12 = arith.constant 0 : index
      %13 = vector.load %arg7[%c0_11, %c0_12] : memref<8x256xf32, #tpu.memory_space<vmem>>, vector<8x256xf32>
      tpu.vector_store %arg7[%c0_11, %c0_12], %12 {strides = array<i32>} : memref<8x256xf32, #tpu.memory_space<vmem>>, vector<8x256xf32>,
    } else {
    }
    %c0 = arith.constant 0 : index
    %c0_1 = arith.constant 0 : index
    %3 = vector.load %arg7[%c0, %c0_1] : memref<8x256xf32, #tpu.memory_space<vmem>>, vector<8x256xf32>
    %c0_2 = arith.constant 0 : index
    %c0_3 = arith.constant 0 : index
    %4 = vector.load %arg3[%c0_2, %c0_3] : memref<8x512xbf16, #tpu.memory_space<vmem>>, vector<8x512xbf16>
    %c0_4 = arith.constant 0 : index
    %c0_5 = arith.constant 0 : index
    %5 = vector.load %arg4[%c0_4, %c0_5] : memref<512x256xbf16, #tpu.memory_space<vmem>>, vector<512x256xbf16>
    %cst = arith.constant dense<0.000000e+00> : vector<8x256xf32>
    %6 = tpu.matmul %4, %5, %cst {dimension_numbers = #tpu.dot_dimension_numbers<[1], [0], [0], [1], [0, 0, 1, 1], [], []>} : vector<8x512xbf16>, vector<512x256xbf16>, vector<8x256xf32> -> vector<8x256xf32>
    %7 = arith.addf %3, %6 : vector<8x256xf32>
    %c0_6 = arith.constant 0 : index
    %c0_7 = arith.constant 0 : index
    %8 = vector.load %arg7[%c0_6, %c0_7] : memref<8x256xf32, #tpu.memory_space<vmem>>, vector<8x256xf32>
    tpu.vector_store %arg7[%c0_6, %c0_7], %7 {strides = array<i32>} : memref<8x256xf32, #tpu.memory_space<vmem>>, vector<8x256xf32>,
    %c0_i32_8 = arith.constant 0 : i32
    %9 = arith.cmpi eq, %arg2, %c0_i32_8 : i32
    %10 = arith.extui %9 : i1 to i32
    %c0_i32_9 = arith.constant 0 : i32
    %11 = arith.cmpi ne, %10, %c0_i32_9 : i32
    scf.if %11 {
      %c0_10 = arith.constant 0 : index
      %c0_11 = arith.constant 0 : index
      %12 = vector.load %arg7[%c0_10, %c0_11] : memref<8x256xf32, #tpu.memory_space<vmem>>, vector<8x256xf32>
      %c0_12 = arith.constant 0 : index
      %c0_13 = arith.constant 0 : index
      %13 = vector.load %arg5[%c0_12, %c0_13] : memref<1x256xf32, #tpu.memory_space<vmem>>, vector<1x256xf32>
      %14 = vector.broadcast %13 : vector<1x256xf32> to vector<8x256xf32>
      %15 = arith.addf %12, %14 : vector<8x256xf32>
      %cst_14 = arith.constant 0.000000e+00 : f32
      %16 = vector.broadcast %cst_14 : f32 to vector<8x256xf32>
      %17 = arith.maximumf %15, %16 : vector<8x256xf32>
      %18 = arith.truncf %17 : vector<8x256xf32> to vector<8x256xbf16>
      %c0_15 = arith.constant 0 : index
      %c0_16 = arith.constant 0 : index
      %19 = vector.load %arg6[%c0_15, %c0_16] : memref<8x256xbf16, #tpu.memory_space<vmem>>, vector<8x256xbf16>
      tpu.vector_store %arg6[%c0_15, %c0_16], %18 {strides = array<i32>} : memref<8x256xbf16, #tpu.memory_space<vmem>>, vector<8x256xbf16>,
    } else {
    }
    return
  }
  func.func @transform_0(%arg0: i32, %arg1: i32, %arg2: i32) -> (i32, i32) {
    %c0_i32 = arith.constant 0 : i32
    return %arg0, %arg2 : i32, i32
  }
  func.func @transform_1(%arg0: i32, %arg1: i32, %arg2: i32) -> (i32, i32) {
    %c0_i32 = arith.constant 0 : i32
    return %arg2, %arg1 : i32, i32
  }
  func.func @transform_2(%arg0: i32, %arg1: i32, %arg2: i32) -> (i32, i32) {
    %c0_i32 = arith.constant 0 : i32
    %c0_i32_0 = arith.constant 0 : i32
    return %c0_i32, %arg1 : i32, i32
  }
  func.func @transform_3(%arg0: i32, %arg1: i32, %arg2: i32) -> (i32, i32) {
    %c0_i32 = arith.constant 0 : i32
    return %arg0, %arg1 : i32, i32
  }
}

module attributes {stable_mosaic.version = 11 : i64} {
  func.func @_mm_bias_act_kernel(%arg0: i32, %arg1: i32, %arg2: i32, %arg3: memref<2x128xbf16, #tpu.memory_space<vmem>>, %arg4: memref<128x512xbf16, #tpu.memory_space<vmem>>, %arg5: memref<1x512xf32, #tpu.memory_space<vmem>>, %arg6: memref<2x512xbf16, #tpu.memory_space<vmem>>, %arg7: memref<2x512xf32, #tpu.memory_space<vmem>>) attributes {dimension_semantics = [#tpu.dimension_semantics<parallel>, #tpu.dimension_semantics<parallel>, #tpu.dimension_semantics<arbitrary>], iteration_bounds = array<i64: 1, 1, 1>, scalar_prefetch = 0 : i64, scratch_operands = 1 : i64, tpu.core_type = #tpu.core_type<tc>, window_params = [{transform_indices = @transform_0, window_bounds = array<i64: 2, 128>}, {transform_indices = @transform_1, window_bounds = array<i64: 128, 512>}, {transform_indices = @transform_2, window_bounds = array<i64: 1, 512>}, {transform_indices = @transform_3, window_bounds = array<i64: 2, 512>}]} {
    %c0_i32 = arith.constant 0 : i32
    %0 = arith.cmpi eq, %arg2, %c0_i32 : i32
    %1 = arith.extui %0 : i1 to i32
    %c0_i32_0 = arith.constant 0 : i32
    %2 = arith.cmpi ne, %1, %c0_i32_0 : i32
    scf.if %2 {
      %cst_10 = arith.constant 0.000000e+00 : f32
      %12 = vector.broadcast %cst_10 : f32 to vector<2x512xf32>
      %c0_11 = arith.constant 0 : index
      %c0_12 = arith.constant 0 : index
      %13 = vector.load %arg7[%c0_11, %c0_12] : memref<2x512xf32, #tpu.memory_space<vmem>>, vector<2x512xf32>
      tpu.vector_store %arg7[%c0_11, %c0_12], %12 {strides = array<i32>} : memref<2x512xf32, #tpu.memory_space<vmem>>, vector<2x512xf32>,
    } else {
    }
    %c0 = arith.constant 0 : index
    %c0_1 = arith.constant 0 : index
    %3 = vector.load %arg7[%c0, %c0_1] : memref<2x512xf32, #tpu.memory_space<vmem>>, vector<2x512xf32>
    %c0_2 = arith.constant 0 : index
    %c0_3 = arith.constant 0 : index
    %4 = vector.load %arg3[%c0_2, %c0_3] : memref<2x128xbf16, #tpu.memory_space<vmem>>, vector<2x128xbf16>
    %c0_4 = arith.constant 0 : index
    %c0_5 = arith.constant 0 : index
    %5 = vector.load %arg4[%c0_4, %c0_5] : memref<128x512xbf16, #tpu.memory_space<vmem>>, vector<128x512xbf16>
    %cst = arith.constant dense<0.000000e+00> : vector<2x512xf32>
    %6 = tpu.matmul %4, %5, %cst {dimension_numbers = #tpu.dot_dimension_numbers<[1], [0], [0], [1], [0, 0, 1, 1], [], []>} : vector<2x128xbf16>, vector<128x512xbf16>, vector<2x512xf32> -> vector<2x512xf32>
    %7 = arith.addf %3, %6 : vector<2x512xf32>
    %c0_6 = arith.constant 0 : index
    %c0_7 = arith.constant 0 : index
    %8 = vector.load %arg7[%c0_6, %c0_7] : memref<2x512xf32, #tpu.memory_space<vmem>>, vector<2x512xf32>
    tpu.vector_store %arg7[%c0_6, %c0_7], %7 {strides = array<i32>} : memref<2x512xf32, #tpu.memory_space<vmem>>, vector<2x512xf32>,
    %c0_i32_8 = arith.constant 0 : i32
    %9 = arith.cmpi eq, %arg2, %c0_i32_8 : i32
    %10 = arith.extui %9 : i1 to i32
    %c0_i32_9 = arith.constant 0 : i32
    %11 = arith.cmpi ne, %10, %c0_i32_9 : i32
    scf.if %11 {
      %c0_10 = arith.constant 0 : index
      %c0_11 = arith.constant 0 : index
      %12 = vector.load %arg7[%c0_10, %c0_11] : memref<2x512xf32, #tpu.memory_space<vmem>>, vector<2x512xf32>
      %c0_12 = arith.constant 0 : index
      %c0_13 = arith.constant 0 : index
      %13 = vector.load %arg5[%c0_12, %c0_13] : memref<1x512xf32, #tpu.memory_space<vmem>>, vector<1x512xf32>
      %14 = vector.broadcast %13 : vector<1x512xf32> to vector<2x512xf32>
      %15 = arith.addf %12, %14 : vector<2x512xf32>
      %cst_14 = arith.constant 0.000000e+00 : f32
      %16 = vector.broadcast %cst_14 : f32 to vector<2x512xf32>
      %17 = arith.maximumf %15, %16 : vector<2x512xf32>
      %18 = arith.truncf %17 : vector<2x512xf32> to vector<2x512xbf16>
      %c0_15 = arith.constant 0 : index
      %c0_16 = arith.constant 0 : index
      %19 = vector.load %arg6[%c0_15, %c0_16] : memref<2x512xbf16, #tpu.memory_space<vmem>>, vector<2x512xbf16>
      tpu.vector_store %arg6[%c0_15, %c0_16], %18 {strides = array<i32>} : memref<2x512xbf16, #tpu.memory_space<vmem>>, vector<2x512xbf16>,
    } else {
    }
    return
  }
  func.func @transform_0(%arg0: i32, %arg1: i32, %arg2: i32) -> (i32, i32) {
    %c0_i32 = arith.constant 0 : i32
    return %arg0, %arg2 : i32, i32
  }
  func.func @transform_1(%arg0: i32, %arg1: i32, %arg2: i32) -> (i32, i32) {
    %c0_i32 = arith.constant 0 : i32
    return %arg2, %arg1 : i32, i32
  }
  func.func @transform_2(%arg0: i32, %arg1: i32, %arg2: i32) -> (i32, i32) {
    %c0_i32 = arith.constant 0 : i32
    %c0_i32_0 = arith.constant 0 : i32
    return %c0_i32, %arg1 : i32, i32
  }
  func.func @transform_3(%arg0: i32, %arg1: i32, %arg2: i32) -> (i32, i32) {
    %c0_i32 = arith.constant 0 : i32
    return %arg0, %arg1 : i32, i32
  }
}

module attributes {stable_mosaic.version = 11 : i64} {
  func.func @_mm_bias_act_kernel(%arg0: i32, %arg1: i32, %arg2: i32, %arg3: memref<32x256xbf16, #tpu.memory_space<vmem>>, %arg4: memref<256x128xbf16, #tpu.memory_space<vmem>>, %arg5: memref<1x128xf32, #tpu.memory_space<vmem>>, %arg6: memref<32x128xbf16, #tpu.memory_space<vmem>>, %arg7: memref<32x128xf32, #tpu.memory_space<vmem>>) attributes {dimension_semantics = [#tpu.dimension_semantics<parallel>, #tpu.dimension_semantics<parallel>, #tpu.dimension_semantics<arbitrary>], iteration_bounds = array<i64: 1, 1, 1>, scalar_prefetch = 0 : i64, scratch_operands = 1 : i64, tpu.core_type = #tpu.core_type<tc>, window_params = [{transform_indices = @transform_0, window_bounds = array<i64: 32, 256>}, {transform_indices = @transform_1, window_bounds = array<i64: 256, 128>}, {transform_indices = @transform_2, window_bounds = array<i64: 1, 128>}, {transform_indices = @transform_3, window_bounds = array<i64: 32, 128>}]} {
    %c0_i32 = arith.constant 0 : i32
    %0 = arith.cmpi eq, %arg2, %c0_i32 : i32
    %1 = arith.extui %0 : i1 to i32
    %c0_i32_0 = arith.constant 0 : i32
    %2 = arith.cmpi ne, %1, %c0_i32_0 : i32
    scf.if %2 {
      %cst_10 = arith.constant 0.000000e+00 : f32
      %12 = vector.broadcast %cst_10 : f32 to vector<32x128xf32>
      %c0_11 = arith.constant 0 : index
      %c0_12 = arith.constant 0 : index
      %13 = vector.load %arg7[%c0_11, %c0_12] : memref<32x128xf32, #tpu.memory_space<vmem>>, vector<32x128xf32>
      tpu.vector_store %arg7[%c0_11, %c0_12], %12 {strides = array<i32>} : memref<32x128xf32, #tpu.memory_space<vmem>>, vector<32x128xf32>,
    } else {
    }
    %c0 = arith.constant 0 : index
    %c0_1 = arith.constant 0 : index
    %3 = vector.load %arg7[%c0, %c0_1] : memref<32x128xf32, #tpu.memory_space<vmem>>, vector<32x128xf32>
    %c0_2 = arith.constant 0 : index
    %c0_3 = arith.constant 0 : index
    %4 = vector.load %arg3[%c0_2, %c0_3] : memref<32x256xbf16, #tpu.memory_space<vmem>>, vector<32x256xbf16>
    %c0_4 = arith.constant 0 : index
    %c0_5 = arith.constant 0 : index
    %5 = vector.load %arg4[%c0_4, %c0_5] : memref<256x128xbf16, #tpu.memory_space<vmem>>, vector<256x128xbf16>
    %cst = arith.constant dense<0.000000e+00> : vector<32x128xf32>
    %6 = tpu.matmul %4, %5, %cst {dimension_numbers = #tpu.dot_dimension_numbers<[1], [0], [0], [1], [0, 0, 1, 1], [], []>} : vector<32x256xbf16>, vector<256x128xbf16>, vector<32x128xf32> -> vector<32x128xf32>
    %7 = arith.addf %3, %6 : vector<32x128xf32>
    %c0_6 = arith.constant 0 : index
    %c0_7 = arith.constant 0 : index
    %8 = vector.load %arg7[%c0_6, %c0_7] : memref<32x128xf32, #tpu.memory_space<vmem>>, vector<32x128xf32>
    tpu.vector_store %arg7[%c0_6, %c0_7], %7 {strides = array<i32>} : memref<32x128xf32, #tpu.memory_space<vmem>>, vector<32x128xf32>,
    %c0_i32_8 = arith.constant 0 : i32
    %9 = arith.cmpi eq, %arg2, %c0_i32_8 : i32
    %10 = arith.extui %9 : i1 to i32
    %c0_i32_9 = arith.constant 0 : i32
    %11 = arith.cmpi ne, %10, %c0_i32_9 : i32
    scf.if %11 {
      %c0_10 = arith.constant 0 : index
      %c0_11 = arith.constant 0 : index
      %12 = vector.load %arg7[%c0_10, %c0_11] : memref<32x128xf32, #tpu.memory_space<vmem>>, vector<32x128xf32>
      %c0_12 = arith.constant 0 : index
      %c0_13 = arith.constant 0 : index
      %13 = vector.load %arg5[%c0_12, %c0_13] : memref<1x128xf32, #tpu.memory_space<vmem>>, vector<1x128xf32>
      %14 = vector.broadcast %13 : vector<1x128xf32> to vector<32x128xf32>
      %15 = arith.addf %12, %14 : vector<32x128xf32>
      %cst_14 = arith.constant 0.000000e+00 : f32
      %16 = vector.broadcast %cst_14 : f32 to vector<32x128xf32>
      %17 = arith.maximumf %15, %16 : vector<32x128xf32>
      %18 = arith.truncf %17 : vector<32x128xf32> to vector<32x128xbf16>
      %c0_15 = arith.constant 0 : index
      %c0_16 = arith.constant 0 : index
      %19 = vector.load %arg6[%c0_15, %c0_16] : memref<32x128xbf16, #tpu.memory_space<vmem>>, vector<32x128xbf16>
      tpu.vector_store %arg6[%c0_15, %c0_16], %18 {strides = array<i32>} : memref<32x128xbf16, #tpu.memory_space<vmem>>, vector<32x128xbf16>,
    } else {
    }
    return
  }
  func.func @transform_0(%arg0: i32, %arg1: i32, %arg2: i32) -> (i32, i32) {
    %c0_i32 = arith.constant 0 : i32
    return %arg0, %arg2 : i32, i32
  }
  func.func @transform_1(%arg0: i32, %arg1: i32, %arg2: i32) -> (i32, i32) {
    %c0_i32 = arith.constant 0 : i32
    return %arg2, %arg1 : i32, i32
  }
  func.func @transform_2(%arg0: i32, %arg1: i32, %arg2: i32) -> (i32, i32) {
    %c0_i32 = arith.constant 0 : i32
    %c0_i32_0 = arith.constant 0 : i32
    return %c0_i32, %arg1 : i32, i32
  }
  func.func @transform_3(%arg0: i32, %arg1: i32, %arg2: i32) -> (i32, i32) {
    %c0_i32 = arith.constant 0 : i32
    return %arg0, %arg1 : i32, i32
  }
}

module attributes {stable_mosaic.version = 11 : i64} {
  func.func @_mm_bias_act_kernel(%arg0: i32, %arg1: i32, %arg2: i32, %arg3: memref<128x128xbf16, #tpu.memory_space<vmem>>, %arg4: memref<128x128xbf16, #tpu.memory_space<vmem>>, %arg5: memref<1x128xf32, #tpu.memory_space<vmem>>, %arg6: memref<128x128xf32, #tpu.memory_space<vmem>>, %arg7: memref<128x128xf32, #tpu.memory_space<vmem>>) attributes {dimension_semantics = [#tpu.dimension_semantics<parallel>, #tpu.dimension_semantics<parallel>, #tpu.dimension_semantics<arbitrary>], iteration_bounds = array<i64: 1, 1, 1>, scalar_prefetch = 0 : i64, scratch_operands = 1 : i64, tpu.core_type = #tpu.core_type<tc>, window_params = [{transform_indices = @transform_0, window_bounds = array<i64: 128, 128>}, {transform_indices = @transform_1, window_bounds = array<i64: 128, 128>}, {transform_indices = @transform_2, window_bounds = array<i64: 1, 128>}, {transform_indices = @transform_3, window_bounds = array<i64: 128, 128>}]} {
    %c0_i32 = arith.constant 0 : i32
    %0 = arith.cmpi eq, %arg2, %c0_i32 : i32
    %1 = arith.extui %0 : i1 to i32
    %c0_i32_0 = arith.constant 0 : i32
    %2 = arith.cmpi ne, %1, %c0_i32_0 : i32
    scf.if %2 {
      %cst_10 = arith.constant 0.000000e+00 : f32
      %12 = vector.broadcast %cst_10 : f32 to vector<128x128xf32>
      %c0_11 = arith.constant 0 : index
      %c0_12 = arith.constant 0 : index
      %13 = vector.load %arg7[%c0_11, %c0_12] : memref<128x128xf32, #tpu.memory_space<vmem>>, vector<128x128xf32>
      tpu.vector_store %arg7[%c0_11, %c0_12], %12 {strides = array<i32>} : memref<128x128xf32, #tpu.memory_space<vmem>>, vector<128x128xf32>,
    } else {
    }
    %c0 = arith.constant 0 : index
    %c0_1 = arith.constant 0 : index
    %3 = vector.load %arg7[%c0, %c0_1] : memref<128x128xf32, #tpu.memory_space<vmem>>, vector<128x128xf32>
    %c0_2 = arith.constant 0 : index
    %c0_3 = arith.constant 0 : index
    %4 = vector.load %arg3[%c0_2, %c0_3] : memref<128x128xbf16, #tpu.memory_space<vmem>>, vector<128x128xbf16>
    %c0_4 = arith.constant 0 : index
    %c0_5 = arith.constant 0 : index
    %5 = vector.load %arg4[%c0_4, %c0_5] : memref<128x128xbf16, #tpu.memory_space<vmem>>, vector<128x128xbf16>
    %cst = arith.constant dense<0.000000e+00> : vector<128x128xf32>
    %6 = tpu.matmul %4, %5, %cst {dimension_numbers = #tpu.dot_dimension_numbers<[1], [0], [0], [1], [0, 0, 1, 1], [], []>} : vector<128x128xbf16>, vector<128x128xbf16>, vector<128x128xf32> -> vector<128x128xf32>
    %7 = arith.addf %3, %6 : vector<128x128xf32>
    %c0_6 = arith.constant 0 : index
    %c0_7 = arith.constant 0 : index
    %8 = vector.load %arg7[%c0_6, %c0_7] : memref<128x128xf32, #tpu.memory_space<vmem>>, vector<128x128xf32>
    tpu.vector_store %arg7[%c0_6, %c0_7], %7 {strides = array<i32>} : memref<128x128xf32, #tpu.memory_space<vmem>>, vector<128x128xf32>,
    %c0_i32_8 = arith.constant 0 : i32
    %9 = arith.cmpi eq, %arg2, %c0_i32_8 : i32
    %10 = arith.extui %9 : i1 to i32
    %c0_i32_9 = arith.constant 0 : i32
    %11 = arith.cmpi ne, %10, %c0_i32_9 : i32
    scf.if %11 {
      %c0_10 = arith.constant 0 : index
      %c0_11 = arith.constant 0 : index
      %12 = vector.load %arg7[%c0_10, %c0_11] : memref<128x128xf32, #tpu.memory_space<vmem>>, vector<128x128xf32>
      %c0_12 = arith.constant 0 : index
      %c0_13 = arith.constant 0 : index
      %13 = vector.load %arg5[%c0_12, %c0_13] : memref<1x128xf32, #tpu.memory_space<vmem>>, vector<1x128xf32>
      %14 = vector.broadcast %13 : vector<1x128xf32> to vector<128x128xf32>
      %15 = arith.addf %12, %14 : vector<128x128xf32>
      %16 = arith.negf %15 : vector<128x128xf32>
      %17 = math.exp %16 : vector<128x128xf32>
      %cst_14 = arith.constant 1.000000e+00 : f32
      %18 = vector.broadcast %cst_14 : f32 to vector<128x128xf32>
      %19 = arith.addf %18, %17 : vector<128x128xf32>
      %20 = arith.divf %18, %19 : vector<128x128xf32>
      %c0_15 = arith.constant 0 : index
      %c0_16 = arith.constant 0 : index
      %21 = vector.load %arg6[%c0_15, %c0_16] : memref<128x128xf32, #tpu.memory_space<vmem>>, vector<128x128xf32>
      tpu.vector_store %arg6[%c0_15, %c0_16], %20 {strides = array<i32>} : memref<128x128xf32, #tpu.memory_space<vmem>>, vector<128x128xf32>,
    } else {
    }
    return
  }
  func.func @transform_0(%arg0: i32, %arg1: i32, %arg2: i32) -> (i32, i32) {
    %c0_i32 = arith.constant 0 : i32
    return %arg0, %arg2 : i32, i32
  }
  func.func @transform_1(%arg0: i32, %arg1: i32, %arg2: i32) -> (i32, i32) {
    %c0_i32 = arith.constant 0 : i32
    return %arg2, %arg1 : i32, i32
  }
  func.func @transform_2(%arg0: i32, %arg1: i32, %arg2: i32) -> (i32, i32) {
    %c0_i32 = arith.constant 0 : i32
    %c0_i32_0 = arith.constant 0 : i32
    return %c0_i32, %arg1 : i32, i32
  }
  func.func @transform_3(%arg0: i32, %arg1: i32, %arg2: i32) -> (i32, i32) {
    %c0_i32 = arith.constant 0 : i32
    return %arg0, %arg1 : i32, i32
  }
}

</mosaic_0001>

<llo_original>
// kernel: vae_forward.8
$region0: #{vae_forward.8}
  #allocation0 [shape = 'u32[]', space=smem, size = 0x4, offset = 0x4, fixed_abs, tag = 'smem constant byte address 0x4 - core index']
  #allocation1 [shape = 'u32[144,128]{1,0:T(1,128)}', space=vmem, size = 0x12000, scoped, tag = 'internal scratch']
  #allocation2 [shape = 'f32[128,128]{1,0:T(8,128)}', space=vmem, size = 0x10000, scoped, tag = 'scratch operand']
  %s0 = inlined_call_operand.vmem [shape: bf16[128,128], index: 0, kind: input, shape index: {}]
  %s1 = inlined_call_operand.vmem [shape: bf16[128,128], index: 1, kind: input, shape index: {}]
  %s2 = inlined_call_operand.vmem [shape: f32[1,128], index: 2, kind: input, shape index: {}]
  %s3 = inlined_call_operand.vmem [shape: bf16[128,128], index: 3, kind: output, shape index: {}]
  %s4 = sld [smem:[#allocation0]]
  $region30: #{vae_forward.8} parent=0
    _
  %s6 = ssub.s32 1, %s4
  %s7 = scalar_select 0, %s6, %s4
  // Predicated region
  $region2: #{vae_forward.8} parent=0 // pred_check
    _
  $region3: #{vae_forward.8} parent=0 // pred_check_branch
    %9 = sbr.rel (0) target = $region5
  $region4: #{vae_forward.8} parent=0 // pred_region
    _
  $region5: #{vae_forward.8} parent=0 // pred_fallthru
    _
  // Predicated region
  $region6: #{vae_forward.8} parent=0 // pred_check
    _
  $region7: #{vae_forward.8} parent=0 // pred_check_branch
    %11 = sbr.rel (0) target = $region9
  $region8: #{vae_forward.8} parent=0 // pred_region
    _
  $region9: #{vae_forward.8} parent=0 // pred_fallthru
    _
  // Predicated region
  $region10: #{vae_forward.8} parent=0 // pred_check
    _
  $region11: #{vae_forward.8} parent=0 // pred_check_branch
    %13 = sbr.rel (0) target = $region13
  $region12: #{vae_forward.8} parent=0 // pred_region
    _
  $region13: #{vae_forward.8} parent=0 // pred_fallthru
    _
  %p15 = scmp.eq.s32.totalorder 0, 0
  // Predicated region
  $region14: #{vae_forward.8} parent=0 // pred_check
    %p16 = pneg %p15
  $region15: #{vae_forward.8} parent=0 // pred_check_branch
    %18 = sbr.rel (%p16) target = $region17
  $region16: #{vae_forward.8} parent=0 // pred_region
    %19 = vst [vmem:[#allocation2] sm:$0xff] 0.0
    %20 = vst [vmem:[#allocation2 + $0x8] sm:$0xff] 0.0
    %21 = vst [vmem:[#allocation2 + $0x10] sm:$0xff] 0.0
    %22 = vst [vmem:[#allocation2 + $0x18] sm:$0xff] 0.0
    %23 = vst [vmem:[#allocation2 + $0x20] sm:$0xff] 0.0
    %24 = vst [vmem:[#allocation2 + $0x28] sm:$0xff] 0.0
    %25 = vst [vmem:[#allocation2 + $0x30] sm:$0xff] 0.0
    %26 = vst [vmem:[#allocation2 + $0x38] sm:$0xff] 0.0
    %27 = vst [vmem:[#allocation2 + $0x40] sm:$0xff] 0.0
    %28 = vst [vmem:[#allocation2 + $0x48] sm:$0xff] 0.0
    %29 = vst [vmem:[#allocation2 + $0x50] sm:$0xff] 0.0
    %30 = vst [vmem:[#allocation2 + $0x58] sm:$0xff] 0.0
    %31 = vst [vmem:[#allocation2 + $0x60] sm:$0xff] 0.0
    %32 = vst [vmem:[#allocation2 + $0x68] sm:$0xff] 0.0
    %33 = vst [vmem:[#allocation2 + $0x70] sm:$0xff] 0.0
    %34 = vst [vmem:[#allocation2 + $0x78] sm:$0xff] 0.0
  $region17: #{vae_forward.8} parent=0 // pred_fallthru
    _
  %v35 = vld [vmem:[#allocation2] sm:$0xff]
  %v36 = vld [vmem:[#allocation2 + $0x8] sm:$0xff]
  %v37 = vld [vmem:[#allocation2 + $0x10] sm:$0xff]
  %v38 = vld [vmem:[#allocation2 + $0x18] sm:$0xff]
  %v39 = vld [vmem:[#allocation2 + $0x20] sm:$0xff]
  %v40 = vld [vmem:[#allocation2 + $0x28] sm:$0xff]
  %v41 = vld [vmem:[#allocation2 + $0x30] sm:$0xff]
  %v42 = vld [vmem:[#allocation2 + $0x38] sm:$0xff]
  %v43 = vld [vmem:[#allocation2 + $0x40] sm:$0xff]
  %v44 = vld [vmem:[#allocation2 + $0x48] sm:$0xff]
  %v45 = vld [vmem:[#allocation2 + $0x50] sm:$0xff]
  %v46 = vld [vmem:[#allocation2 + $0x58] sm:$0xff]
  %v47 = vld [vmem:[#allocation2 + $0x60] sm:$0xff]
  %v48 = vld [vmem:[#allocation2 + $0x68] sm:$0xff]
  %v49 = vld [vmem:[#allocation2 + $0x70] sm:$0xff]
  %v50 = vld [vmem:[#allocation2 + $0x78] sm:$0xff]
  %v51 = vld [vmem:[%s0] sm:$0xf]
  %v52 = vld [vmem:[%s0 + $0x4] sm:$0xf]
  %v53 = vld [vmem:[%s0 + $0x8] sm:$0xf]
  %v54 = vld [vmem:[%s0 + $0xc] sm:$0xf]
  %v55 = vld [vmem:[%s0 + $0x10] sm:$0xf]
  %v56 = vld [vmem:[%s0 + $0x14] sm:$0xf]
  %v57 = vld [vmem:[%s0 + $0x18] sm:$0xf]
  %v58 = vld [vmem:[%s0 + $0x1c] sm:$0xf]
  %v59 = vld [vmem:[%s0 + $0x20] sm:$0xf]
  %v60 = vld [vmem:[%s0 + $0x24] sm:$0xf]
  %v61 = vld [vmem:[%s0 + $0x28] sm:$0xf]
  %v62 = vld [vmem:[%s0 + $0x2c] sm:$0xf]
  %v63 = vld [vmem:[%s0 + $0x30] sm:$0xf]
  %v64 = vld [vmem:[%s0 + $0x34] sm:$0xf]
  %v65 = vld [vmem:[%s0 + $0x38] sm:$0xf]
  %v66 = vld [vmem:[%s0 + $0x3c] sm:$0xf]
  %v67 = vld [vmem:[%s1] sm:$0xf]
  %v68 = vld [vmem:[%s1 + $0x4] sm:$0xf]
  %v69 = vld [vmem:[%s1 + $0x8] sm:$0xf]
  %v70 = vld [vmem:[%s1 + $0xc] sm:$0xf]
  %v71 = vld [vmem:[%s1 + $0x10] sm:$0xf]
  %v72 = vld [vmem:[%s1 + $0x14] sm:$0xf]
  %v73 = vld [vmem:[%s1 + $0x18] sm:$0xf]
  %v74 = vld [vmem:[%s1 + $0x1c] sm:$0xf]
  %v75 = vld [vmem:[%s1 + $0x20] sm:$0xf]
  %v76 = vld [vmem:[%s1 + $0x24] sm:$0xf]
  %v77 = vld [vmem:[%s1 + $0x28] sm:$0xf]
  %v78 = vld [vmem:[%s1 + $0x2c] sm:$0xf]
  %v79 = vld [vmem:[%s1 + $0x30] sm:$0xf]
  %v80 = vld [vmem:[%s1 + $0x34] sm:$0xf]
  %v81 = vld [vmem:[%s1 + $0x38] sm:$0xf]
  %v82 = vld [vmem:[%s1 + $0x3c] sm:$0xf]
  %v99 = vunpack.c.l.b16 %v51
  %v100 = vunpack.c.l.b16 %v52
  %v101 = vunpack.c.l.b16 %v53
  %v102 = vunpack.c.l.b16 %v54
  %v103 = vunpack.c.l.b16 %v55
  %v104 = vunpack.c.l.b16 %v56
  %v105 = vunpack.c.l.b16 %v57
  %v106 = vunpack.c.l.b16 %v58
  %v107 = vunpack.c.l.b16 %v59
  %v108 = vunpack.c.l.b16 %v60
  %v109 = vunpack.c.l.b16 %v61
  %v110 = vunpack.c.l.b16 %v62
  %v111 = vunpack.c.l.b16 %v63
  %v112 = vunpack.c.l.b16 %v64
  %v113 = vunpack.c.l.b16 %v65
  %v114 = vunpack.c.l.b16 %v66
  %v115 = vpack.c.b16 %v100, %v99
  %v116 = vpack.c.b16 %v102, %v101
  %v117 = vpack.c.b16 %v104, %v103
  %v118 = vpack.c.b16 %v106, %v105
  %v119 = vpack.c.b16 %v108, %v107
  %v120 = vpack.c.b16 %v110, %v109
  %v121 = vpack.c.b16 %v112, %v111
  %v122 = vpack.c.b16 %v114, %v113
  %v147 = vunpack.c.l.b16 %v67
  %v148 = vunpack.c.l.b16 %v68
  %v149 = vunpack.c.l.b16 %v69
  %v150 = vunpack.c.l.b16 %v70
  %v151 = vunpack.c.l.b16 %v71
  %v152 = vunpack.c.l.b16 %v72
  %v153 = vunpack.c.l.b16 %v73
  %v154 = vunpack.c.l.b16 %v74
  %v155 = vunpack.c.l.b16 %v75
  %v156 = vunpack.c.l.b16 %v76
  %v157 = vunpack.c.l.b16 %v77
  %v158 = vunpack.c.l.b16 %v78
  %v159 = vunpack.c.l.b16 %v79
  %v160 = vunpack.c.l.b16 %v80
  %v161 = vunpack.c.l.b16 %v81
  %v162 = vunpack.c.l.b16 %v82
  %v163 = vpack.c.b16 %v148, %v147
  %v164 = vpack.c.b16 %v150, %v149
  %v165 = vpack.c.b16 %v152, %v151
  %v166 = vpack.c.b16 %v154, %v153
  %v167 = vpack.c.b16 %v156, %v155
  %v168 = vpack.c.b16 %v158, %v157
  %v169 = vpack.c.b16 %v160, %v159
  %v170 = vpack.c.b16 %v162, %v161
  %179 = vmatprep.subr.bf16.mxu0 0
  %180 = vmatpush1.bf16.msra.mxu0 %v163
  %181 = vmatprep.subr.bf16.mxu0 0
  %182 = vmatpush1.bf16.msra.mxu0 %v164
  %183 = vmatprep.subr.bf16.mxu0 0
  %184 = vmatpush1.bf16.msra.mxu0 %v165
  %185 = vmatprep.subr.bf16.mxu0 0
  %186 = vmatpush1.bf16.msra.mxu0 %v166
  %187 = vmatprep.subr.bf16.mxu0 0
  %188 = vmatpush1.bf16.msra.mxu0 %v167
  %189 = vmatprep.subr.bf16.mxu0 0
  %190 = vmatpush1.bf16.msra.mxu0 %v168
  %191 = vmatprep.subr.bf16.mxu0 0
  %192 = vmatpush1.bf16.msra.mxu0 %v169
  %193 = vmatprep.subr.bf16.mxu0 0
  %194 = vmatpush1.bf16.msra.mxu0 %v170
  %195 = vmatprep.subr.bf16.mxu0 0
  %196 = vmatpush1.bf16.msra.mxu0 0
  %197 = vmatprep.subr.bf16.mxu0 0
  %198 = vmatpush1.bf16.msra.mxu0 0
  %199 = vmatprep.subr.bf16.mxu0 0
  %200 = vmatpush1.bf16.msra.mxu0 0
  %201 = vmatprep.subr.bf16.mxu0 0
  %202 = vmatpush1.bf16.msra.mxu0 0
  %203 = vmatprep.subr.bf16.mxu0 0
  %204 = vmatpush1.bf16.msra.mxu0 0
  %205 = vmatprep.subr.bf16.mxu0 0
  %206 = vmatpush1.bf16.msra.mxu0 0
  %207 = vmatprep.subr.bf16.mxu0 0
  %208 = vmatpush1.bf16.msra.mxu0 0
  %209 = vmatprep.subr.bf16.mxu0 0
  %210 = vmatpush1.bf16.msra.mxu0 0
  %211 = vmatprep.mubr.bf16.mxu0 0
  %212 = vmatmul.mubr.bf16.gmra.mrb[0].mxu0 %v115
  %v213 = vpop.f32.mrb[0].mxu0
  %v214 = vadd.f32 0.0, %v213
  %v215 = vpop.f32.mrb[0].mxu0
  %v216 = vpop.f32.mrb[0].mxu0
  %v217 = vadd.f32 0.0, %v216
  %v218 = vpop.f32.mrb[0].mxu0
  %219 = vmatprep.mubr.bf16.mxu0 0
  %220 = vmatmul.mubr.bf16.gmra.mrb[0].mxu0 %v116
  %v221 = vpop.f32.mrb[0].mxu0
  %v222 = vadd.f32 0.0, %v221
  %v223 = vpop.f32.mrb[0].mxu0
  %v224 = vpop.f32.mrb[0].mxu0
  %v225 = vadd.f32 0.0, %v224
  %v226 = vpop.f32.mrb[0].mxu0
  %227 = vmatprep.mubr.bf16.mxu0 0
  %228 = vmatmul.mubr.bf16.gmra.mrb[0].mxu0 %v117
  %v229 = vpop.f32.mrb[0].mxu0
  %v230 = vadd.f32 0.0, %v229
  %v231 = vpop.f32.mrb[0].mxu0
  %v232 = vpop.f32.mrb[0].mxu0
  %v233 = vadd.f32 0.0, %v232
  %v234 = vpop.f32.mrb[0].mxu0
  %235 = vmatprep.mubr.bf16.mxu0 0
  %236 = vmatmul.mubr.bf16.gmra.mrb[0].mxu0 %v118
  %v237 = vpop.f32.mrb[0].mxu0
  %v238 = vadd.f32 0.0, %v237
  %v239 = vpop.f32.mrb[0].mxu0
  %v240 = vpop.f32.mrb[0].mxu0
  %v241 = vadd.f32 0.0, %v240
  %v242 = vpop.f32.mrb[0].mxu0
  %243 = vmatprep.mubr.bf16.mxu0 0
  %244 = vmatmul.mubr.bf16.gmra.mrb[0].mxu0 %v119
  %v245 = vpop.f32.mrb[0].mxu0
  %v246 = vadd.f32 0.0, %v245
  %v247 = vpop.f32.mrb[0].mxu0
  %v248 = vpop.f32.mrb[0].mxu0
  %v249 = vadd.f32 0.0, %v248
  %v250 = vpop.f32.mrb[0].mxu0
  %251 = vmatprep.mubr.bf16.mxu0 0
  %252 = vmatmul.mubr.bf16.gmra.mrb[0].mxu0 %v120
  %v253 = vpop.f32.mrb[0].mxu0
  %v254 = vadd.f32 0.0, %v253
  %v255 = vpop.f32.mrb[0].mxu0
  %v256 = vpop.f32.mrb[0].mxu0
  %v257 = vadd.f32 0.0, %v256
  %v258 = vpop.f32.mrb[0].mxu0
  %259 = vmatprep.mubr.bf16.mxu0 0
  %260 = vmatmul.mubr.bf16.gmra.mrb[0].mxu0 %v121
  %v261 = vpop.f32.mrb[0].mxu0
  %v262 = vadd.f32 0.0, %v261
  %v263 = vpop.f32.mrb[0].mxu0
  %v264 = vpop.f32.mrb[0].mxu0
  %v265 = vadd.f32 0.0, %v264
  %v266 = vpop.f32.mrb[0].mxu0
  %267 = vmatprep.mubr.bf16.mxu0 0
  %268 = vmatmul.mubr.bf16.gmra.mrb[0].mxu0 %v122
  %v269 = vpop.f32.mrb[0].mxu0
  %v270 = vadd.f32 0.0, %v269
  %v271 = vpop.f32.mrb[0].mxu0
  %v272 = vpop.f32.mrb[0].mxu0
  %v273 = vadd.f32 0.0, %v272
  %v274 = vpop.f32.mrb[0].mxu0
  %275 = vdwg.mxu0
  %v276 = vadd.f32 %v35, %v214
  %v277 = vadd.f32 %v36, %v217
  %v278 = vadd.f32 %v37, %v222
  %v279 = vadd.f32 %v38, %v225
  %v280 = vadd.f32 %v39, %v230
  %v281 = vadd.f32 %v40, %v233
  %v282 = vadd.f32 %v41, %v238
  %v283 = vadd.f32 %v42, %v241
  %v284 = vadd.f32 %v43, %v246
  %v285 = vadd.f32 %v44, %v249
  %v286 = vadd.f32 %v45, %v254
  %v287 = vadd.f32 %v46, %v257
  %v288 = vadd.f32 %v47, %v262
  %v289 = vadd.f32 %v48, %v265
  %v290 = vadd.f32 %v49, %v270
  %v291 = vadd.f32 %v50, %v273
  %292 = vst [vmem:[#allocation2] sm:$0xff] %v276
  %293 = vst [vmem:[#allocation2 + $0x8] sm:$0xff] %v277
  %294 = vst [vmem:[#allocation2 + $0x10] sm:$0xff] %v278
  %295 = vst [vmem:[#allocation2 + $0x18] sm:$0xff] %v279
  %296 = vst [vmem:[#allocation2 + $0x20] sm:$0xff] %v280
  %297 = vst [vmem:[#allocation2 + $0x28] sm:$0xff] %v281
  %298 = vst [vmem:[#allocation2 + $0x30] sm:$0xff] %v282
  %299 = vst [vmem:[#allocation2 + $0x38] sm:$0xff] %v283
  %300 = vst [vmem:[#allocation2 + $0x40] sm:$0xff] %v284
  %301 = vst [vmem:[#allocation2 + $0x48] sm:$0xff] %v285
  %302 = vst [vmem:[#allocation2 + $0x50] sm:$0xff] %v286
  %303 = vst [vmem:[#allocation2 + $0x58] sm:$0xff] %v287
  %304 = vst [vmem:[#allocation2 + $0x60] sm:$0xff] %v288
  %305 = vst [vmem:[#allocation2 + $0x68] sm:$0xff] %v289
  %306 = vst [vmem:[#allocation2 + $0x70] sm:$0xff] %v290
  %307 = vst [vmem:[#allocation2 + $0x78] sm:$0xff] %v291
  // Predicated region
  $region18: #{vae_forward.8} parent=0 // pred_check
    %p308 = pneg %p15
  $region19: #{vae_forward.8} parent=0 // pred_check_branch
    %310 = sbr.rel (%p308) target = $region21
  $region20: #{vae_forward.8} parent=0 // pred_region
    %v311 = vld [vmem:[#allocation2] sm:$0xff]
    %v312 = vld [vmem:[#allocation2 + $0x8] sm:$0xff]
    %v313 = vld [vmem:[#allocation2 + $0x10] sm:$0xff]
    %v314 = vld [vmem:[#allocation2 + $0x18] sm:$0xff]
    %v315 = vld [vmem:[#allocation2 + $0x20] sm:$0xff]
    %v316 = vld [vmem:[#allocation2 + $0x28] sm:$0xff]
    %v317 = vld [vmem:[#allocation2 + $0x30] sm:$0xff]
    %v318 = vld [vmem:[#allocation2 + $0x38] sm:$0xff]
    %v319 = vld [vmem:[#allocation2 + $0x40] sm:$0xff]
    %v320 = vld [vmem:[#allocation2 + $0x48] sm:$0xff]
    %v321 = vld [vmem:[#allocation2 + $0x50] sm:$0xff]
    %v322 = vld [vmem:[#allocation2 + $0x58] sm:$0xff]
    %v323 = vld [vmem:[#allocation2 + $0x60] sm:$0xff]
    %v324 = vld [vmem:[#allocation2 + $0x68] sm:$0xff]
    %v325 = vld [vmem:[#allocation2 + $0x70] sm:$0xff]
    %v326 = vld [vmem:[#allocation2 + $0x78] sm:$0xff]
    %v327 = vld [vmem:[%s2] sm:$0x1]
    %v329 = vlaneseq
    %v330 = vshrl.u32 %v329, 7
    %v331 = vsub.s32 0, %v330
    %v332 = vrot.slane %v327, %v331
    %v334 = vadd.f32 %v311, %v332
    %v335 = vadd.f32 %v312, %v332
    %v336 = vadd.f32 %v313, %v332
    %v337 = vadd.f32 %v314, %v332
    %v338 = vadd.f32 %v315, %v332
    %v339 = vadd.f32 %v316, %v332
    %v340 = vadd.f32 %v317, %v332
    %v341 = vadd.f32 %v318, %v332
    %v342 = vadd.f32 %v319, %v332
    %v343 = vadd.f32 %v320, %v332
    %v344 = vadd.f32 %v321, %v332
    %v345 = vadd.f32 %v322, %v332
    %v346 = vadd.f32 %v323, %v332
    %v347 = vadd.f32 %v324, %v332
    %v348 = vadd.f32 %v325, %v332
    %v349 = vadd.f32 %v326, %v332
    %v350 = vmax.f32 %v334, 0.0
    %v351 = vmax.f32 %v335, 0.0
    %v352 = vmax.f32 %v336, 0.0
    %v353 = vmax.f32 %v337, 0.0
    %v354 = vmax.f32 %v338, 0.0
    %v355 = vmax.f32 %v339, 0.0
    %v356 = vmax.f32 %v340, 0.0
    %v357 = vmax.f32 %v341, 0.0
    %v358 = vmax.f32 %v342, 0.0
    %v359 = vmax.f32 %v343, 0.0
    %v360 = vmax.f32 %v344, 0.0
    %v361 = vmax.f32 %v345, 0.0
    %v362 = vmax.f32 %v346, 0.0
    %v363 = vmax.f32 %v347, 0.0
    %v364 = vmax.f32 %v348, 0.0
    %v365 = vmax.f32 %v349, 0.0
    %v366 = vpack.c.bf16 %v351, %v350
    %v367 = vpack.c.bf16 %v353, %v352
    %v368 = vpack.c.bf16 %v355, %v354
    %v369 = vpack.c.bf16 %v357, %v356
    %v370 = vpack.c.bf16 %v359, %v358
    %v371 = vpack.c.bf16 %v361, %v360
    %v372 = vpack.c.bf16 %v363, %v362
    %v373 = vpack.c.bf16 %v365, %v364
    %v382 = vunpack.c.l.b16 %v366
    %v383 = vunpack.c.h.b16 %v366
    %v384 = vunpack.c.l.b16 %v367
    %v385 = vunpack.c.h.b16 %v367
    %v386 = vunpack.c.l.b16 %v368
    %v387 = vunpack.c.h.b16 %v368
    %v388 = vunpack.c.l.b16 %v369
    %v389 = vunpack.c.h.b16 %v369
    %v390 = vunpack.c.l.b16 %v370
    %v391 = vunpack.c.h.b16 %v370
    %v392 = vunpack.c.l.b16 %v371
    %v393 = vunpack.c.h.b16 %v371
    %v394 = vunpack.c.l.b16 %v372
    %v395 = vunpack.c.h.b16 %v372
    %v396 = vunpack.c.l.b16 %v373
    %v397 = vunpack.c.h.b16 %v373
    %v398 = vpack.c.b16 %v382, %v382
    %v399 = vpack.c.b16 %v383, %v383
    %v400 = vpack.c.b16 %v384, %v384
    %v401 = vpack.c.b16 %v385, %v385
    %v402 = vpack.c.b16 %v386, %v386
    %v403 = vpack.c.b16 %v387, %v387
    %v404 = vpack.c.b16 %v388, %v388
    %v405 = vpack.c.b16 %v389, %v389
    %v406 = vpack.c.b16 %v390, %v390
    %v407 = vpack.c.b16 %v391, %v391
    %v408 = vpack.c.b16 %v392, %v392
    %v409 = vpack.c.b16 %v393, %v393
    %v410 = vpack.c.b16 %v394, %v394
    %v411 = vpack.c.b16 %v395, %v395
    %v412 = vpack.c.b16 %v396, %v396
    %v413 = vpack.c.b16 %v397, %v397
    %430 = vst [vmem:[%s3] sm:$0xf] %v398
    %431 = vst [vmem:[%s3 + $0x4] sm:$0xf] %v399
    %432 = vst [vmem:[%s3 + $0x8] sm:$0xf] %v400
    %433 = vst [vmem:[%s3 + $0xc] sm:$0xf] %v401
    %434 = vst [vmem:[%s3 + $0x10] sm:$0xf] %v402
    %435 = vst [vmem:[%s3 + $0x14] sm:$0xf] %v403
    %436 = vst [vmem:[%s3 + $0x18] sm:$0xf] %v404
    %437 = vst [vmem:[%s3 + $0x1c] sm:$0xf] %v405
    %438 = vst [vmem:[%s3 + $0x20] sm:$0xf] %v406
    %439 = vst [vmem:[%s3 + $0x24] sm:$0xf] %v407
    %440 = vst [vmem:[%s3 + $0x28] sm:$0xf] %v408
    %441 = vst [vmem:[%s3 + $0x2c] sm:$0xf] %v409
    %442 = vst [vmem:[%s3 + $0x30] sm:$0xf] %v410
    %443 = vst [vmem:[%s3 + $0x34] sm:$0xf] %v411
    %444 = vst [vmem:[%s3 + $0x38] sm:$0xf] %v412
    %445 = vst [vmem:[%s3 + $0x3c] sm:$0xf] %v413
  $region21: #{vae_forward.8} parent=0 // pred_fallthru
    _
  // Predicated region
  $region22: #{vae_forward.8} parent=0 // pred_check
    _
  $region23: #{vae_forward.8} parent=0 // pred_check_branch
    %447 = sbr.rel (0) target = $region25
  $region24: #{vae_forward.8} parent=0 // pred_region
    _
  $region25: #{vae_forward.8} parent=0 // pred_fallthru
    _
  // Predicated region
  $region26: #{vae_forward.8} parent=0 // pred_check
    _
  $region27: #{vae_forward.8} parent=0 // pred_check_branch
    %449 = sbr.rel (0) target = $region29
  $region28: #{vae_forward.8} parent=0 // pred_region
    _
  $region29: #{vae_forward.8} parent=0 // pred_fallthru
    _

// kernel: vae_forward.9
$region0: #{vae_forward.9}
  #allocation0 [shape = 'u32[]', space=smem, size = 0x4, offset = 0x4, fixed_abs, tag = 'smem constant byte address 0x4 - core index']
  #allocation1 [shape = 'u32[144,128]{1,0:T(1,128)}', space=vmem, size = 0x12000, scoped, tag = 'internal scratch']
  #allocation2 [shape = 'f32[32,128]{1,0:T(8,128)}', space=vmem, size = 0x4000, scoped, tag = 'scratch operand']
  %s0 = inlined_call_operand.vmem [shape: bf16[32,384], index: 0, kind: input, shape index: {}]
  %s1 = inlined_call_operand.vmem [shape: bf16[384,128], index: 1, kind: input, shape index: {}]
  %s2 = inlined_call_operand.vmem [shape: f32[1,128], index: 2, kind: input, shape index: {}]
  %s3 = inlined_call_operand.vmem [shape: bf16[32,128], index: 3, kind: output, shape index: {}]
  %s4 = sld [smem:[#allocation0]]
  $region30: #{vae_forward.9} parent=0
    _
  %s6 = ssub.s32 1, %s4
  %s7 = scalar_select 0, %s6, %s4
  // Predicated region
  $region2: #{vae_forward.9} parent=0 // pred_check
    _
  $region3: #{vae_forward.9} parent=0 // pred_check_branch
    %9 = sbr.rel (0) target = $region5
  $region4: #{vae_forward.9} parent=0 // pred_region
    _
  $region5: #{vae_forward.9} parent=0 // pred_fallthru
    _
  // Predicated region
  $region6: #{vae_forward.9} parent=0 // pred_check
    _
  $region7: #{vae_forward.9} parent=0 // pred_check_branch
    %11 = sbr.rel (0) target = $region9
  $region8: #{vae_forward.9} parent=0 // pred_region
    _
  $region9: #{vae_forward.9} parent=0 // pred_fallthru
    _
  // Predicated region
  $region10: #{vae_forward.9} parent=0 // pred_check
    _
  $region11: #{vae_forward.9} parent=0 // pred_check_branch
    %13 = sbr.rel (0) target = $region13
  $region12: #{vae_forward.9} parent=0 // pred_region
    _
  $region13: #{vae_forward.9} parent=0 // pred_fallthru
    _
  %p15 = scmp.eq.s32.totalorder 0, 0
  // Predicated region
  $region14: #{vae_forward.9} parent=0 // pred_check
    %p16 = pneg %p15
  $region15: #{vae_forward.9} parent=0 // pred_check_branch
    %18 = sbr.rel (%p16) target = $region17
  $region16: #{vae_forward.9} parent=0 // pred_region
    %19 = vst [vmem:[#allocation2] sm:$0xff] 0.0
    %20 = vst [vmem:[#allocation2 + $0x8] sm:$0xff] 0.0
    %21 = vst [vmem:[#allocation2 + $0x10] sm:$0xff] 0.0
    %22 = vst [vmem:[#allocation2 + $0x18] sm:$0xff] 0.0
  $region17: #{vae_forward.9} parent=0 // pred_fallthru
    _
  %v23 = vld [vmem:[#allocation2] sm:$0xff]
  %v24 = vld [vmem:[#allocation2 + $0x8] sm:$0xff]
  %v25 = vld [vmem:[#allocation2 + $0x10] sm:$0xff]
  %v26 = vld [vmem:[#allocation2 + $0x18] sm:$0xff]
  %v27 = vld [vmem:[%s0] sm:$0xff]
  %v28 = vld [vmem:[%s0 + $0x8] sm:$0xf]
  %v29 = vld [vmem:[%s0 + $0xc] sm:$0xff]
  %v30 = vld [vmem:[%s0 + $0x14] sm:$0xf]
  %v31 = vld [vmem:[%s0 + $0x18] sm:$0xff]
  %v32 = vld [vmem:[%s0 + $0x20] sm:$0xf]
  %v33 = vld [vmem:[%s0 + $0x24] sm:$0xff]
  %v34 = vld [vmem:[%s0 + $0x2c] sm:$0xf]
  %v35 = vld [vmem:[%s1] sm:$0xf]
  %v36 = vld [vmem:[%s1 + $0x4] sm:$0xf]
  %v37 = vld [vmem:[%s1 + $0x8] sm:$0xf]
  %v38 = vld [vmem:[%s1 + $0xc] sm:$0xf]
  %v39 = vld [vmem:[%s1 + $0x10] sm:$0xf]
  %v40 = vld [vmem:[%s1 + $0x14] sm:$0xf]
  %v41 = vld [vmem:[%s1 + $0x18] sm:$0xf]
  %v42 = vld [vmem:[%s1 + $0x1c] sm:$0xf]
  %v43 = vld [vmem:[%s1 + $0x20] sm:$0xf]
  %v44 = vld [vmem:[%s1 + $0x24] sm:$0xf]
  %v45 = vld [vmem:[%s1 + $0x28] sm:$0xf]
  %v46 = vld [vmem:[%s1 + $0x2c] sm:$0xf]
  %v47 = vld [vmem:[%s1 + $0x30] sm:$0xf]
  %v48 = vld [vmem:[%s1 + $0x34] sm:$0xf]
  %v49 = vld [vmem:[%s1 + $0x38] sm:$0xf]
  %v50 = vld [vmem:[%s1 + $0x3c] sm:$0xf]
  %v51 = vld [vmem:[%s1 + $0x40] sm:$0xf]
  %v52 = vld [vmem:[%s1 + $0x44] sm:$0xf]
  %v53 = vld [vmem:[%s1 + $0x48] sm:$0xf]
  %v54 = vld [vmem:[%s1 + $0x4c] sm:$0xf]
  %v55 = vld [vmem:[%s1 + $0x50] sm:$0xf]
  %v56 = vld [vmem:[%s1 + $0x54] sm:$0xf]
  %v57 = vld [vmem:[%s1 + $0x58] sm:$0xf]
  %v58 = vld [vmem:[%s1 + $0x5c] sm:$0xf]
  %v59 = vld [vmem:[%s1 + $0x60] sm:$0xf]
  %v60 = vld [vmem:[%s1 + $0x64] sm:$0xf]
  %v61 = vld [vmem:[%s1 + $0x68] sm:$0xf]
  %v62 = vld [vmem:[%s1 + $0x6c] sm:$0xf]
  %v63 = vld [vmem:[%s1 + $0x70] sm:$0xf]
  %v64 = vld [vmem:[%s1 + $0x74] sm:$0xf]
  %v65 = vld [vmem:[%s1 + $0x78] sm:$0xf]
  %v66 = vld [vmem:[%s1 + $0x7c] sm:$0xf]
  %v67 = vld [vmem:[%s1 + $0x80] sm:$0xf]
  %v68 = vld [vmem:[%s1 + $0x84] sm:$0xf]
  %v69 = vld [vmem:[%s1 + $0x88] sm:$0xf]
  %v70 = vld [vmem:[%s1 + $0x8c] sm:$0xf]
  %v71 = vld [vmem:[%s1 + $0x90] sm:$0xf]
  %v72 = vld [vmem:[%s1 + $0x94] sm:$0xf]
  %v73 = vld [vmem:[%s1 + $0x98] sm:$0xf]
  %v74 = vld [vmem:[%s1 + $0x9c] sm:$0xf]
  %v75 = vld [vmem:[%s1 + $0xa0] sm:$0xf]
  %v76 = vld [vmem:[%s1 + $0xa4] sm:$0xf]
  %v77 = vld [vmem:[%s1 + $0xa8] sm:$0xf]
  %v78 = vld [vmem:[%s1 + $0xac] sm:$0xf]
  %v79 = vld [vmem:[%s1 + $0xb0] sm:$0xf]
  %v80 = vld [vmem:[%s1 + $0xb4] sm:$0xf]
  %v81 = vld [vmem:[%s1 + $0xb8] sm:$0xf]
  %v82 = vld [vmem:[%s1 + $0xbc] sm:$0xf]
  %v91 = vunpack.c.l.b16 %v27
  %v92 = vunpack.c.h.b16 %v27
  %v93 = vunpack.c.l.b16 %v28
  %v94 = vunpack.c.l.b16 %v29
  %v95 = vunpack.c.h.b16 %v29
  %v96 = vunpack.c.l.b16 %v30
  %v97 = vunpack.c.l.b16 %v31
  %v98 = vunpack.c.h.b16 %v31
  %v99 = vunpack.c.l.b16 %v32
  %v100 = vunpack.c.l.b16 %v33
  %v101 = vunpack.c.h.b16 %v33
  %v102 = vunpack.c.l.b16 %v34
  %v103 = vpack.c.b16 %v94, %v91
  %v104 = vpack.c.b16 %v95, %v92
  %v105 = vpack.c.b16 %v96, %v93
  %v106 = vpack.c.b16 %v100, %v97
  %v107 = vpack.c.b16 %v101, %v98
  %v108 = vpack.c.b16 %v102, %v99
  %v163 = vunpack.c.l.b16 %v35
  %v164 = vunpack.c.l.b16 %v36
  %v165 = vunpack.c.l.b16 %v37
  %v166 = vunpack.c.l.b16 %v38
  %v167 = vunpack.c.l.b16 %v39
  %v168 = vunpack.c.l.b16 %v40
  %v169 = vunpack.c.l.b16 %v41
  %v170 = vunpack.c.l.b16 %v42
  %v171 = vunpack.c.l.b16 %v43
  %v172 = vunpack.c.l.b16 %v44
  %v173 = vunpack.c.l.b16 %v45
  %v174 = vunpack.c.l.b16 %v46
  %v175 = vunpack.c.l.b16 %v47
  %v176 = vunpack.c.l.b16 %v48
  %v177 = vunpack.c.l.b16 %v49
  %v178 = vunpack.c.l.b16 %v50
  %v179 = vunpack.c.l.b16 %v51
  %v180 = vunpack.c.l.b16 %v52
  %v181 = vunpack.c.l.b16 %v53
  %v182 = vunpack.c.l.b16 %v54
  %v183 = vunpack.c.l.b16 %v55
  %v184 = vunpack.c.l.b16 %v56
  %v185 = vunpack.c.l.b16 %v57
  %v186 = vunpack.c.l.b16 %v58
  %v187 = vunpack.c.l.b16 %v59
  %v188 = vunpack.c.l.b16 %v60
  %v189 = vunpack.c.l.b16 %v61
  %v190 = vunpack.c.l.b16 %v62
  %v191 = vunpack.c.l.b16 %v63
  %v192 = vunpack.c.l.b16 %v64
  %v193 = vunpack.c.l.b16 %v65
  %v194 = vunpack.c.l.b16 %v66
  %v195 = vunpack.c.l.b16 %v67
  %v196 = vunpack.c.l.b16 %v68
  %v197 = vunpack.c.l.b16 %v69
  %v198 = vunpack.c.l.b16 %v70
  %v199 = vunpack.c.l.b16 %v71
  %v200 = vunpack.c.l.b16 %v72
  %v201 = vunpack.c.l.b16 %v73
  %v202 = vunpack.c.l.b16 %v74
  %v203 = vunpack.c.l.b16 %v75
  %v204 = vunpack.c.l.b16 %v76
  %v205 = vunpack.c.l.b16 %v77
  %v206 = vunpack.c.l.b16 %v78
  %v207 = vunpack.c.l.b16 %v79
  %v208 = vunpack.c.l.b16 %v80
  %v209 = vunpack.c.l.b16 %v81
  %v210 = vunpack.c.l.b16 %v82
  %v211 = vpack.c.b16 %v164, %v163
  %v212 = vpack.c.b16 %v166, %v165
  %v213 = vpack.c.b16 %v168, %v167
  %v214 = vpack.c.b16 %v170, %v169
  %v215 = vpack.c.b16 %v172, %v171
  %v216 = vpack.c.b16 %v174, %v173
  %v217 = vpack.c.b16 %v176, %v175
  %v218 = vpack.c.b16 %v178, %v177
  %v219 = vpack.c.b16 %v180, %v179
  %v220 = vpack.c.b16 %v182, %v181
  %v221 = vpack.c.b16 %v184, %v183
  %v222 = vpack.c.b16 %v186, %v185
  %v223 = vpack.c.b16 %v188, %v187
  %v224 = vpack.c.b16 %v190, %v189
  %v225 = vpack.c.b16 %v192, %v191
  %v226 = vpack.c.b16 %v194, %v193
  %v227 = vpack.c.b16 %v196, %v195
  %v228 = vpack.c.b16 %v198, %v197
  %v229 = vpack.c.b16 %v200, %v199
  %v230 = vpack.c.b16 %v202, %v201
  %v231 = vpack.c.b16 %v204, %v203
  %v232 = vpack.c.b16 %v206, %v205
  %v233 = vpack.c.b16 %v208, %v207
  %v234 = vpack.c.b16 %v210, %v209
  %259 = vmatprep.subr.bf16.mxu0 0
  %260 = vmatpush1.bf16.msra.mxu0 %v211
  %261 = vmatprep.subr.bf16.mxu0 0
  %262 = vmatpush1.bf16.msra.mxu0 %v212
  %263 = vmatprep.subr.bf16.mxu0 0
  %264 = vmatpush1.bf16.msra.mxu0 %v213
  %265 = vmatprep.subr.bf16.mxu0 0
  %266 = vmatpush1.bf16.msra.mxu0 %v214
  %267 = vmatprep.subr.bf16.mxu0 0
  %268 = vmatpush1.bf16.msra.mxu0 %v215
  %269 = vmatprep.subr.bf16.mxu0 0
  %270 = vmatpush1.bf16.msra.mxu0 %v216
  %271 = vmatprep.subr.bf16.mxu0 0
  %272 = vmatpush1.bf16.msra.mxu0 %v217
  %273 = vmatprep.subr.bf16.mxu0 0
  %274 = vmatpush1.bf16.msra.mxu0 %v218
  %275 = vmatprep.subr.bf16.mxu0 0
  %276 = vmatpush1.bf16.msra.mxu0 %v219
  %277 = vmatprep.subr.bf16.mxu0 0
  %278 = vmatpush1.bf16.msra.mxu0 %v220
  %279 = vmatprep.subr.bf16.mxu0 0
  %280 = vmatpush1.bf16.msra.mxu0 %v221
  %281 = vmatprep.subr.bf16.mxu0 0
  %282 = vmatpush1.bf16.msra.mxu0 %v222
  %283 = vmatprep.subr.bf16.mxu0 0
  %284 = vmatpush1.bf16.msra.mxu0 %v223
  %285 = vmatprep.subr.bf16.mxu0 0
  %286 = vmatpush1.bf16.msra.mxu0 %v224
  %287 = vmatprep.subr.bf16.mxu0 0
  %288 = vmatpush1.bf16.msra.mxu0 %v225
  %289 = vmatprep.subr.bf16.mxu0 0
  %290 = vmatpush1.bf16.msra.mxu0 %v226
  %291 = vmatprep.mubr.bf16.mxu0 %v104
  %292 = vmatmul.mubr.bf16.gmra.mrb[0].mxu0 %v103
  %v293 = vpop.f32.mrb[0].mxu0
  %v294 = vadd.f32 0.0, %v293
  %v295 = vpop.f32.mrb[0].mxu0
  %v296 = vpop.f32.mrb[0].mxu0
  %v297 = vadd.f32 0.0, %v296
  %v298 = vpop.f32.mrb[0].mxu0
  %299 = vmatprep.mubr.bf16.mxu0 %v107
  %300 = vmatmul.mubr.bf16.gmra.mrb[0].mxu0 %v106
  %v301 = vpop.f32.mrb[0].mxu0
  %v302 = vadd.f32 0.0, %v301
  %v303 = vpop.f32.mrb[0].mxu0
  %v304 = vpop.f32.mrb[0].mxu0
  %v305 = vadd.f32 0.0, %v304
  %v306 = vpop.f32.mrb[0].mxu0
  %307 = vdwg.mxu0
  %308 = vmatprep.subr.bf16.mxu0 0
  %309 = vmatpush1.bf16.msra.mxu0 %v227
  %310 = vmatprep.subr.bf16.mxu0 0
  %311 = vmatpush1.bf16.msra.mxu0 %v228
  %312 = vmatprep.subr.bf16.mxu0 0
  %313 = vmatpush1.bf16.msra.mxu0 %v229
  %314 = vmatprep.subr.bf16.mxu0 0
  %315 = vmatpush1.bf16.msra.mxu0 %v230
  %316 = vmatprep.subr.bf16.mxu0 0
  %317 = vmatpush1.bf16.msra.mxu0 %v231
  %318 = vmatprep.subr.bf16.mxu0 0
  %319 = vmatpush1.bf16.msra.mxu0 %v232
  %320 = vmatprep.subr.bf16.mxu0 0
  %321 = vmatpush1.bf16.msra.mxu0 %v233
  %322 = vmatprep.subr.bf16.mxu0 0
  %323 = vmatpush1.bf16.msra.mxu0 %v234
  %324 = vmatprep.subr.bf16.mxu0 0
  %325 = vmatpush1.bf16.msra.mxu0 0
  %326 = vmatprep.subr.bf16.mxu0 0
  %327 = vmatpush1.bf16.msra.mxu0 0
  %328 = vmatprep.subr.bf16.mxu0 0
  %329 = vmatpush1.bf16.msra.mxu0 0
  %330 = vmatprep.subr.bf16.mxu0 0
  %331 = vmatpush1.bf16.msra.mxu0 0
  %332 = vmatprep.subr.bf16.mxu0 0
  %333 = vmatpush1.bf16.msra.mxu0 0
  %334 = vmatprep.subr.bf16.mxu0 0
  %335 = vmatpush1.bf16.msra.mxu0 0
  %336 = vmatprep.subr.bf16.mxu0 0
  %337 = vmatpush1.bf16.msra.mxu0 0
  %338 = vmatprep.subr.bf16.mxu0 0
  %339 = vmatpush1.bf16.msra.mxu0 0
  %340 = vmatprep.mubr.bf16.mxu0 0
  %341 = vmatmul.mubr.bf16.gmra.mrb[0].mxu0 %v105
  %v342 = vpop.f32.mrb[0].mxu0
  %v343 = vadd.f32 %v294, %v342
  %v344 = vpop.f32.mrb[0].mxu0
  %v345 = vpop.f32.mrb[0].mxu0
  %v346 = vadd.f32 %v297, %v345
  %v347 = vpop.f32.mrb[0].mxu0
  %348 = vmatprep.mubr.bf16.mxu0 0
  %349 = vmatmul.mubr.bf16.gmra.mrb[0].mxu0 %v108
  %v350 = vpop.f32.mrb[0].mxu0
  %v351 = vadd.f32 %v302, %v350
  %v352 = vpop.f32.mrb[0].mxu0
  %v353 = vpop.f32.mrb[0].mxu0
  %v354 = vadd.f32 %v305, %v353
  %v355 = vpop.f32.mrb[0].mxu0
  %356 = vdwg.mxu0
  %v357 = vadd.f32 %v23, %v343
  %v358 = vadd.f32 %v24, %v346
  %v359 = vadd.f32 %v25, %v351
  %v360 = vadd.f32 %v26, %v354
  %361 = vst [vmem:[#allocation2] sm:$0xff] %v357
  %362 = vst [vmem:[#allocation2 + $0x8] sm:$0xff] %v358
  %363 = vst [vmem:[#allocation2 + $0x10] sm:$0xff] %v359
  %364 = vst [vmem:[#allocation2 + $0x18] sm:$0xff] %v360
  // Predicated region
  $region18: #{vae_forward.9} parent=0 // pred_check
    %p365 = pneg %p15
  $region19: #{vae_forward.9} parent=0 // pred_check_branch
    %367 = sbr.rel (%p365) target = $region21
  $region20: #{vae_forward.9} parent=0 // pred_region
    %v368 = vld [vmem:[#allocation2] sm:$0xff]
    %v369 = vld [vmem:[#allocation2 + $0x8] sm:$0xff]
    %v370 = vld [vmem:[#allocation2 + $0x10] sm:$0xff]
    %v371 = vld [vmem:[#allocation2 + $0x18] sm:$0xff]
    %v372 = vld [vmem:[%s2] sm:$0x1]
    %v374 = vlaneseq
    %v375 = vshrl.u32 %v374, 7
    %v376 = vsub.s32 0, %v375
    %v377 = vrot.slane %v372, %v376
    %v379 = vadd.f32 %v368, %v377
    %v380 = vadd.f32 %v369, %v377
    %v381 = vadd.f32 %v370, %v377
    %v382 = vadd.f32 %v371, %v377
    %v383 = vmax.f32 %v379, 0.0
    %v384 = vmax.f32 %v380, 0.0
    %v385 = vmax.f32 %v381, 0.0
    %v386 = vmax.f32 %v382, 0.0
    %v387 = vpack.c.bf16 %v384, %v383
    %v388 = vpack.c.bf16 %v386, %v385
    %v391 = vunpack.c.l.b16 %v387
    %v392 = vunpack.c.h.b16 %v387
    %v393 = vunpack.c.l.b16 %v388
    %v394 = vunpack.c.h.b16 %v388
    %v395 = vpack.c.b16 %v391, %v391
    %v396 = vpack.c.b16 %v392, %v392
    %v397 = vpack.c.b16 %v393, %v393
    %v398 = vpack.c.b16 %v394, %v394
    %403 = vst [vmem:[%s3] sm:$0xf] %v395
    %404 = vst [vmem:[%s3 + $0x4] sm:$0xf] %v396
    %405 = vst [vmem:[%s3 + $0x8] sm:$0xf] %v397
    %406 = vst [vmem:[%s3 + $0xc] sm:$0xf] %v398
  $region21: #{vae_forward.9} parent=0 // pred_fallthru
    _
  // Predicated region
  $region22: #{vae_forward.9} parent=0 // pred_check
    _
  $region23: #{vae_forward.9} parent=0 // pred_check_branch
    %408 = sbr.rel (0) target = $region25
  $region24: #{vae_forward.9} parent=0 // pred_region
    _
  $region25: #{vae_forward.9} parent=0 // pred_fallthru
    _
  // Predicated region
  $region26: #{vae_forward.9} parent=0 // pred_check
    _
  $region27: #{vae_forward.9} parent=0 // pred_check_branch
    %410 = sbr.rel (0) target = $region29
  $region28: #{vae_forward.9} parent=0 // pred_region
    _
  $region29: #{vae_forward.9} parent=0 // pred_fallthru
    _

// kernel: vae_forward.10
$region0: #{vae_forward.10}
  #allocation0 [shape = 'u32[]', space=smem, size = 0x4, offset = 0x4, fixed_abs, tag = 'smem constant byte address 0x4 - core index']
  #allocation1 [shape = 'u32[144,128]{1,0:T(1,128)}', space=vmem, size = 0x12000, scoped, tag = 'internal scratch']
  #allocation2 [shape = 'f32[8,128]{1,0:T(8,128)}', space=vmem, size = 0x1000, scoped, tag = 'scratch operand']
  %s0 = inlined_call_operand.vmem [shape: bf16[8,640], index: 0, kind: input, shape index: {}]
  %s1 = inlined_call_operand.vmem [shape: bf16[640,128], index: 1, kind: input, shape index: {}]
  %s2 = inlined_call_operand.vmem [shape: f32[1,128], index: 2, kind: input, shape index: {}]
  %s3 = inlined_call_operand.vmem [shape: bf16[8,128], index: 3, kind: output, shape index: {}]
  %s4 = sld [smem:[#allocation0]]
  $region53: #{vae_forward.10} parent=0
    _
  %s6 = ssub.s32 1, %s4
  %s7 = scalar_select 0, %s6, %s4
  loop: start=0, step=1, limit=7
  $region2: #{vae_forward.10} parent=0 // loop_pre_header
    _
  $region3: #{vae_forward.10} parent=0 // loop_header
    %s9 = sphi 0, %s13
    %p10 = scmp.ge.s32.totalorder %s9, 7
    %s16 = sphi 0, %s35
    %s17 = sphi 0, %s31
    %s18 = sphi 0, %s27
    %s19 = sphi 0, %s16
    %s20 = sphi 0, %s17
    %s21 = sphi 0, %s18
    %s22 = sphi 0, %s19
    %s23 = sphi 0, %s20
    %s24 = sphi 0, %s21
    %s40 = sphi 0, %s42
    %s43 = sphi 0, %s40
    %s44 = sphi 0, %s43
    %s60 = sphi 0, %s44
    %s68 = sphi 0, %s70
    %s71 = sphi 0, %s68
    %s72 = sphi 0, %s71
    %s88 = sphi 0, %s72
    %s94 = sphi 0, %s96
    %s97 = sphi 0, %s94
    %s98 = sphi 0, %s97
    %s114 = sphi 0, %s98
    %s122 = sphi 0, %s124
    %s125 = sphi 0, %s122
    %s126 = sphi 0, %s125
    %s142 = sphi 0, %s126
  $region4: #{vae_forward.10} parent=0 // loop_header_branch
    %12 = sbr.rel (%p10) target = $region8
  $region5: #{vae_forward.10} parent=0 // loop_body
    %s14 = ssub.s32 %s9, 1
    %s15 = ssub.s32 %s9, 2
    %s25 = sadd.s32 1, %s18
    %p26 = scmp.ge.s32.totalorder %s25, 5
    %s27 = scalar_select %p26, 0, %s25
    %s28 = sadd.s32 1, %s17
    %s29 = scalar_select %p26, %s28, %s17
    %p30 = scmp.ge.s32.totalorder %s29, 1
    %s31 = scalar_select %p30, 0, %s29
    %s32 = sadd.s32 1, %s16
    %s33 = scalar_select %p30, %s32, %s16
    %p34 = scmp.ge.s32.totalorder %s33, 1
    %s35 = scalar_select %p34, 0, %s33
    %s36 = ssub.s32 %s16, %s35
    %s37 = ssub.s32 %s18, %s27
    %s38 = sor.u32 %s36, %s37
    %p39 = scmp.eq.s32.totalorder %s38, 0
    %s41 = sadd.s32 %s40, 1
    %s42 = scalar_select %p39, %s40, %s41
    %p45 = pneg %p39
    %p46 = scmp.eq.s32.totalorder %s9, 4
    %p47 = por %p45, %p46
    %p48 = scmp.ne.s32.totalorder %s40, %s43
    %p49 = scmp.eq.s32.totalorder %s9, 0
    %p50 = por %p48, %p49
    %p51 = scmp.ne.s32.totalorder %s40, %s43
    %p52 = scmp.eq.s32.totalorder %s14, 4
    %p53 = por %p51, %p52
    %p54 = scmp.ne.s32.totalorder %s43, %s44
    %p55 = scmp.eq.s32.totalorder %s14, 0
    %p56 = por %p54, %p55
    %p57 = scmp.ne.s32.totalorder %s43, %s44
    %p58 = scmp.eq.s32.totalorder %s15, 4
    %p59 = por %p57, %p58
    %p61 = scmp.ne.s32.totalorder %s44, %s60
    %p62 = scmp.eq.s32.totalorder %s15, 0
    %p63 = por %p61, %p62
    %s64 = ssub.s32 %s18, %s27
    %s65 = ssub.s32 %s17, %s31
    %s66 = sor.u32 %s64, %s65
    %p67 = scmp.eq.s32.totalorder %s66, 0
    %s69 = sadd.s32 %s68, 1
    %s70 = scalar_select %p67, %s68, %s69
    %p73 = pneg %p67
    %p74 = scmp.eq.s32.totalorder %s9, 4
    %p75 = por %p73, %p74
    %p76 = scmp.ne.s32.totalorder %s68, %s71
    %p77 = scmp.eq.s32.totalorder %s9, 0
    %p78 = por %p76, %p77
    %p79 = scmp.ne.s32.totalorder %s68, %s71
    %p80 = scmp.eq.s32.totalorder %s14, 4
    %p81 = por %p79, %p80
    %p82 = scmp.ne.s32.totalorder %s71, %s72
    %p83 = scmp.eq.s32.totalorder %s14, 0
    %p84 = por %p82, %p83
    %p85 = scmp.ne.s32.totalorder %s71, %s72
    %p86 = scmp.eq.s32.totalorder %s15, 4
    %p87 = por %p85, %p86
    %p89 = scmp.ne.s32.totalorder %s72, %s88
    %p90 = scmp.eq.s32.totalorder %s15, 0
    %p91 = por %p89, %p90
    %s92 = ssub.s32 %s17, %s31
    %p93 = scmp.eq.s32.totalorder %s92, 0
    %s95 = sadd.s32 %s94, 1
    %s96 = scalar_select %p93, %s94, %s95
    %p99 = pneg %p93
    %p100 = scmp.eq.s32.totalorder %s9, 4
    %p101 = por %p99, %p100
    %p102 = scmp.ne.s32.totalorder %s94, %s97
    %p103 = scmp.eq.s32.totalorder %s9, 0
    %p104 = por %p102, %p103
    %p105 = scmp.ne.s32.totalorder %s94, %s97
    %p106 = scmp.eq.s32.totalorder %s14, 4
    %p107 = por %p105, %p106
    %p108 = scmp.ne.s32.totalorder %s97, %s98
    %p109 = scmp.eq.s32.totalorder %s14, 0
    %p110 = por %p108, %p109
    %p111 = scmp.ne.s32.totalorder %s97, %s98
    %p112 = scmp.eq.s32.totalorder %s15, 4
    %p113 = por %p111, %p112
    %p115 = scmp.ne.s32.totalorder %s98, %s114
    %p116 = scmp.eq.s32.totalorder %s15, 0
    %p117 = por %p115, %p116
    %s118 = ssub.s32 %s16, %s35
    %s119 = ssub.s32 %s17, %s31
    %s120 = sor.u32 %s118, %s119
    %p121 = scmp.eq.s32.totalorder %s120, 0
    %s123 = sadd.s32 %s122, 1
    %s124 = scalar_select %p121, %s122, %s123
    %p127 = pneg %p121
    %p128 = scmp.eq.s32.totalorder %s9, 4
    %p129 = por %p127, %p128
    %p130 = scmp.ne.s32.totalorder %s122, %s125
    %p131 = scmp.eq.s32.totalorder %s9, 0
    %p132 = por %p130, %p131
    %p133 = scmp.ne.s32.totalorder %s122, %s125
    %p134 = scmp.eq.s32.totalorder %s14, 4
    %p135 = por %p133, %p134
    %p136 = scmp.ne.s32.totalorder %s125, %s126
    %p137 = scmp.eq.s32.totalorder %s14, 0
    %p138 = por %p136, %p137
    %p139 = scmp.ne.s32.totalorder %s125, %s126
    %p140 = scmp.eq.s32.totalorder %s15, 4
    %p141 = por %p139, %p140
    %p143 = scmp.ne.s32.totalorder %s126, %s142
    %p144 = scmp.eq.s32.totalorder %s15, 0
    %p145 = por %p143, %p144
    %p146 = scmp.le.s32.totalorder 1, %s9
    %p147 = scmp.lt.s32.totalorder %s9, 6
    %p148 = pnand %p146, %p147
    %p149 = pneg %p148
    // Predicated region
    $region9: #{vae_forward.10} parent=5 // pred_check
      _
    $region10: #{vae_forward.10} parent=5 // pred_check_branch
      %151 = sbr.rel (%p148) target = $region12
    $region11: #{vae_forward.10} parent=5 // pred_region
      %s152 = ssub.s32 %s9, 1
      // Predicated region
      $region13: #{vae_forward.10} parent=11 // pred_check
        %p153 = pneg %p110
      $region14: #{vae_forward.10} parent=11 // pred_check_branch
        %155 = sbr.rel (%p153) target = $region16
      $region15: #{vae_forward.10} parent=11 // pred_region
        %p156 = scmp.lt.s32.totalorder %s20, 0
        %s157 = scalar_select %p156, %s20, 0
        %s158 = scalar_lea.vmem %s2, %s157
      $region16: #{vae_forward.10} parent=11 // pred_fallthru
        _
    $region12: #{vae_forward.10} parent=5 // pred_fallthru
      _
    %p159 = scmp.lt.s32.totalorder %s9, 5
    // Predicated region
    $region17: #{vae_forward.10} parent=5 // pred_check
      %p160 = pneg %p159
    $region18: #{vae_forward.10} parent=5 // pred_check_branch
      %162 = sbr.rel (%p160) target = $region20
    $region19: #{vae_forward.10} parent=5 // pred_region
      // Predicated region
      $region21: #{vae_forward.10} parent=19 // pred_check
        %p163 = pneg %p50
      $region22: #{vae_forward.10} parent=19 // pred_check_branch
        %165 = sbr.rel (%p163) target = $region24
      $region23: #{vae_forward.10} parent=19 // pred_region
        %p166 = scmp.lt.s32.totalorder %s16, 0
        %s167 = scalar_select %p166, %s16, 0
        %p168 = scmp.lt.s32.totalorder %s18, 4
        %s169 = scalar_select %p168, %s18, 4
        %s170 = smul.addr %s167, 5
        %s171 = sadd.s32 %s169, %s170
        %s172 = smul.addr %s171, 4
        %s173 = scalar_lea.vmem %s0, %s172
      $region24: #{vae_forward.10} parent=19 // pred_fallthru
        _
      // Predicated region
      $region25: #{vae_forward.10} parent=19 // pred_check
        %p174 = pneg %p78
      $region26: #{vae_forward.10} parent=19 // pred_check_branch
        %176 = sbr.rel (%p174) target = $region28
      $region27: #{vae_forward.10} parent=19 // pred_region
        %s177 = smul.u32 16, %s18
        %p178 = scmp.lt.s32.totalorder %s177, 79
        %s179 = scalar_select %p178, %s177, 79
        %p180 = scmp.lt.s32.totalorder %s17, 0
        %s181 = scalar_select %p180, %s17, 0
        %s182 = sadd.s32 %s181, %s179
        %s183 = smul.addr %s182, 4
        %s184 = scalar_lea.vmem %s1, %s183
        %s185 = smul.u32 16, %s18
      $region28: #{vae_forward.10} parent=19 // pred_fallthru
        _
    $region20: #{vae_forward.10} parent=5 // pred_fallthru
      _
    %p186 = scmp.le.s32.totalorder 1, %s9
    %p187 = scmp.lt.s32.totalorder %s9, 6
    %p188 = pnand %p186, %p187
    %p189 = pneg %p188
    // Predicated region
    $region29: #{vae_forward.10} parent=5 // pred_check
      _
    $region30: #{vae_forward.10} parent=5 // pred_check_branch
      %191 = sbr.rel (%p188) target = $region32
    $region31: #{vae_forward.10} parent=5 // pred_region
      %s192 = ssub.s32 %s9, 1
      %p193 = scmp.lt.s32.totalorder %s19, 0
      %s194 = scalar_select %p193, %s19, 0
      %p195 = scmp.lt.s32.totalorder %s21, 4
      %s196 = scalar_select %p195, %s21, 4
      %s197 = smul.addr %s194, 5
      %s198 = sadd.s32 %s196, %s197
      %s199 = smul.addr %s198, 4
      %s200 = scalar_lea.vmem %s0, %s199
      %p201 = pneg %p56
      %p202 = pneg %p53
      %s203 = smul.u32 16, %s21
      %p204 = scmp.lt.s32.totalorder %s203, 79
      %s205 = scalar_select %p204, %s203, 79
      %p206 = scmp.lt.s32.totalorder %s20, 0
      %s207 = scalar_select %p206, %s20, 0
      %s208 = sadd.s32 %s207, %s205
      %s209 = smul.addr %s208, 4
      %s210 = scalar_lea.vmem %s1, %s209
      %p211 = pneg %p84
      %p212 = pneg %p81
      %p213 = scmp.lt.s32.totalorder %s20, 0
      %s214 = scalar_select %p213, %s20, 0
      %s215 = scalar_lea.vmem %s2, %s214
      %p216 = pneg %p110
      %p217 = pneg %p107
      %p218 = pneg %p138
      %p219 = pneg %p135
      %p220 = scmp.lt.s32.totalorder %s19, 0
      %s221 = scalar_select %p220, %s19, 0
      %p222 = scmp.lt.s32.totalorder %s20, 0
      %s223 = scalar_select %p222, %s20, 0
      %s224 = sadd.s32 %s223, %s221
      %s225 = smul.addr %s224, 4
      %s226 = scalar_lea.vmem %s3, %s225
      %p227 = scmp.lt.s32.totalorder %s19, 0
      %s228 = scalar_select %p227, %s19, 0
      %p229 = scmp.lt.s32.totalorder %s21, 4
      %s230 = scalar_select %p229, %s21, 4
      %s231 = smul.addr %s228, 5
      %s232 = sadd.s32 %s230, %s231
      %s233 = smul.addr %s232, 4
      %s234 = scalar_lea.vmem %s0, %s233
      %s235 = smul.u32 16, %s21
      %p236 = scmp.lt.s32.totalorder %s235, 79
      %s237 = scalar_select %p236, %s235, 79
      %p238 = scmp.lt.s32.totalorder %s20, 0
      %s239 = scalar_select %p238, %s20, 0
      %s240 = sadd.s32 %s239, %s237
      %s241 = smul.addr %s240, 4
      %s242 = scalar_lea.vmem %s1, %s241
      %s243 = smul.u32 16, %s21
      %p244 = scmp.lt.s32.totalorder %s20, 0
      %s245 = scalar_select %p244, %s20, 0
      %s246 = scalar_lea.vmem %s2, %s245
      %p247 = scmp.lt.s32.totalorder %s19, 0
      %s248 = scalar_select %p247, %s19, 0
      %p249 = scmp.lt.s32.totalorder %s20, 0
      %s250 = scalar_select %p249, %s20, 0
      %s251 = sadd.s32 %s250, %s248
      %s252 = smul.addr %s251, 4
      %s253 = scalar_lea.vmem %s3, %s252
      %p255 = scmp.eq.s32.totalorder %s21, 0
      // Predicated region
      $region33: #{vae_forward.10} parent=31 // pred_check
        %p256 = pneg %p255
      $region34: #{vae_forward.10} parent=31 // pred_check_branch
        %258 = sbr.rel (%p256) target = $region36
      $region35: #{vae_forward.10} parent=31 // pred_region
        %259 = vst [vmem:[#allocation2] sm:$0xff] 0.0
      $region36: #{vae_forward.10} parent=31 // pred_fallthru
        _
      %v260 = vld [vmem:[#allocation2] sm:$0xff]
      %v261 = vld [vmem:[%s234] sm:$0xf]
      %v262 = vld [vmem:[%s242] sm:$0xf]
      %v263 = vld [vmem:[%s242 + $0x4] sm:$0xf]
      %v264 = vld [vmem:[%s242 + $0x8] sm:$0xf]
      %v265 = vld [vmem:[%s242 + $0xc] sm:$0xf]
      %v266 = vld [vmem:[%s242 + $0x10] sm:$0xf]
      %v267 = vld [vmem:[%s242 + $0x14] sm:$0xf]
      %v268 = vld [vmem:[%s242 + $0x18] sm:$0xf]
      %v269 = vld [vmem:[%s242 + $0x1c] sm:$0xf]
      %v270 = vld [vmem:[%s242 + $0x20] sm:$0xf]
      %v271 = vld [vmem:[%s242 + $0x24] sm:$0xf]
      %v272 = vld [vmem:[%s242 + $0x28] sm:$0xf]
      %v273 = vld [vmem:[%s242 + $0x2c] sm:$0xf]
      %v274 = vld [vmem:[%s242 + $0x30] sm:$0xf]
      %v275 = vld [vmem:[%s242 + $0x34] sm:$0xf]
      %v276 = vld [vmem:[%s242 + $0x38] sm:$0xf]
      %v277 = vld [vmem:[%s242 + $0x3c] sm:$0xf]
      %v294 = vunpack.c.l.b16 %v262
      %v295 = vunpack.c.l.b16 %v263
      %v296 = vunpack.c.l.b16 %v264
      %v297 = vunpack.c.l.b16 %v265
      %v298 = vunpack.c.l.b16 %v266
      %v299 = vunpack.c.l.b16 %v267
      %v300 = vunpack.c.l.b16 %v268
      %v301 = vunpack.c.l.b16 %v269
      %v302 = vunpack.c.l.b16 %v270
      %v303 = vunpack.c.l.b16 %v271
      %v304 = vunpack.c.l.b16 %v272
      %v305 = vunpack.c.l.b16 %v273
      %v306 = vunpack.c.l.b16 %v274
      %v307 = vunpack.c.l.b16 %v275
      %v308 = vunpack.c.l.b16 %v276
      %v309 = vunpack.c.l.b16 %v277
      %v310 = vpack.c.b16 %v295, %v294
      %v311 = vpack.c.b16 %v297, %v296
      %v312 = vpack.c.b16 %v299, %v298
      %v313 = vpack.c.b16 %v301, %v300
      %v314 = vpack.c.b16 %v303, %v302
      %v315 = vpack.c.b16 %v305, %v304
      %v316 = vpack.c.b16 %v307, %v306
      %v317 = vpack.c.b16 %v309, %v308
      %326 = vmatprep.subr.bf16.mxu0 0
      %327 = vmatpush1.bf16.msra.mxu0 %v310
      %328 = vmatprep.subr.bf16.mxu0 0
      %329 = vmatpush1.bf16.msra.mxu0 %v311
      %330 = vmatprep.subr.bf16.mxu0 0
      %331 = vmatpush1.bf16.msra.mxu0 %v312
      %332 = vmatprep.subr.bf16.mxu0 0
      %333 = vmatpush1.bf16.msra.mxu0 %v313
      %334 = vmatprep.subr.bf16.mxu0 0
      %335 = vmatpush1.bf16.msra.mxu0 %v314
      %336 = vmatprep.subr.bf16.mxu0 0
      %337 = vmatpush1.bf16.msra.mxu0 %v315
      %338 = vmatprep.subr.bf16.mxu0 0
      %339 = vmatpush1.bf16.msra.mxu0 %v316
      %340 = vmatprep.subr.bf16.mxu0 0
      %341 = vmatpush1.bf16.msra.mxu0 %v317
      %342 = vmatprep.subr.bf16.mxu0 0
      %343 = vmatpush1.bf16.msra.mxu0 0
      %344 = vmatprep.subr.bf16.mxu0 0
      %345 = vmatpush1.bf16.msra.mxu0 0
      %346 = vmatprep.subr.bf16.mxu0 0
      %347 = vmatpush1.bf16.msra.mxu0 0
      %348 = vmatprep.subr.bf16.mxu0 0
      %349 = vmatpush1.bf16.msra.mxu0 0
      %350 = vmatprep.subr.bf16.mxu0 0
      %351 = vmatpush1.bf16.msra.mxu0 0
      %352 = vmatprep.subr.bf16.mxu0 0
      %353 = vmatpush1.bf16.msra.mxu0 0
      %354 = vmatprep.subr.bf16.mxu0 0
      %355 = vmatpush1.bf16.msra.mxu0 0
      %356 = vmatprep.subr.bf16.mxu0 0
      %357 = vmatpush1.bf16.msra.mxu0 0
      %358 = vmatprep.mubr.bf16.mxu0 0
      %359 = vmatmul.mubr.bf16.gmra.mrb[0].mxu0 %v261
      %v360 = vpop.f32.mrb[0].mxu0
      %v361 = vadd.f32 0.0, %v360
      %v362 = vpop.f32.mrb[0].mxu0
      %v363 = vpop.f32.mrb[0].mxu0
      %v364 = vpop.f32.mrb[0].mxu0
      %365 = vdwg.mxu0
      %v366 = vadd.f32 %v260, %v361
      %367 = vst [vmem:[#allocation2] sm:$0xff] %v366
      %p368 = scmp.eq.s32.totalorder %s21, 4
      // Predicated region
      $region37: #{vae_forward.10} parent=31 // pred_check
        %p369 = pneg %p368
      $region38: #{vae_forward.10} parent=31 // pred_check_branch
        %371 = sbr.rel (%p369) target = $region40
      $region39: #{vae_forward.10} parent=31 // pred_region
        %v372 = vld [vmem:[#allocation2] sm:$0xff]
        %v373 = vld [vmem:[%s246] sm:$0x1]
        %v375 = vlaneseq
        %v376 = vshrl.u32 %v375, 7
        %v377 = vsub.s32 0, %v376
        %v378 = vrot.slane %v373, %v377
        %v380 = vadd.f32 %v372, %v378
        %v381 = vmax.f32 %v380, 0.0
        %v382 = vpack.c.bf16 %v381, %v381
        %383 = vst [vmem:[%s253] sm:$0xf] %v382
      $region40: #{vae_forward.10} parent=31 // pred_fallthru
        _
      %p384 = scmp.lt.s32.totalorder %s19, 0
      %s385 = scalar_select %p384, %s19, 0
      %p386 = scmp.lt.s32.totalorder %s20, 0
      %s387 = scalar_select %p386, %s20, 0
      %s388 = sadd.s32 %s387, %s385
      %s389 = smul.addr %s388, 4
      %s390 = scalar_lea.vmem %s3, %s389
      // Predicated region
      $region41: #{vae_forward.10} parent=31 // pred_check
        %p391 = pneg %p135
      $region42: #{vae_forward.10} parent=31 // pred_check_branch
        %393 = sbr.rel (%p391) target = $region44
      $region43: #{vae_forward.10} parent=31 // pred_region
        _
      $region44: #{vae_forward.10} parent=31 // pred_fallthru
        _
      // Predicated region
      $region45: #{vae_forward.10} parent=31 // pred_check
        %p394 = pneg %p135
      $region46: #{vae_forward.10} parent=31 // pred_check_branch
        %396 = sbr.rel (%p394) target = $region48
      $region47: #{vae_forward.10} parent=31 // pred_region
        %p397 = scmp.lt.s32.totalorder %s19, 0
        %s398 = scalar_select %p397, %s19, 0
        %p399 = scmp.lt.s32.totalorder %s20, 0
        %s400 = scalar_select %p399, %s20, 0
        %s401 = sadd.s32 %s400, %s398
        %s402 = smul.addr %s401, 4
        %s403 = scalar_lea.vmem %s3, %s402
      $region48: #{vae_forward.10} parent=31 // pred_fallthru
        _
    $region32: #{vae_forward.10} parent=5 // pred_fallthru
      _
    %p404 = scmp.le.s32.totalorder 2, %s9
    // Predicated region
    $region49: #{vae_forward.10} parent=5 // pred_check
      %p405 = pneg %p404
    $region50: #{vae_forward.10} parent=5 // pred_check_branch
      %407 = sbr.rel (%p405) target = $region52
    $region51: #{vae_forward.10} parent=5 // pred_region
      %s408 = ssub.s32 %s9, 2
    $region52: #{vae_forward.10} parent=5 // pred_fallthru
      _
  $region6: #{vae_forward.10} parent=0 // loop_footer
    %s13 = sadd.s32 1, %s9
  $region7: #{vae_forward.10} parent=0 // loop_footer_branch
    %8 = sbr.rel target = $region3
  $region8: #{vae_forward.10} parent=0 // loop_exit
    _

// kernel: vae_forward.11
$region0: #{vae_forward.11}
  #allocation0 [shape = 'u32[]', space=smem, size = 0x4, offset = 0x4, fixed_abs, tag = 'smem constant byte address 0x4 - core index']
  #allocation1 [shape = 'u32[144,128]{1,0:T(1,128)}', space=vmem, size = 0x12000, scoped, tag = 'internal scratch']
  #allocation2 [shape = 'f32[2,256]{1,0:T(2,128)}', space=vmem, size = 0x800, scoped, tag = 'scratch operand']
  %s0 = inlined_call_operand.vmem [shape: bf16[2,512], index: 0, kind: input, shape index: {}]
  %s1 = inlined_call_operand.vmem [shape: bf16[512,256], index: 1, kind: input, shape index: {}]
  %s2 = inlined_call_operand.vmem [shape: f32[1,256], index: 2, kind: input, shape index: {}]
  %s3 = inlined_call_operand.vmem [shape: f32[2,128], index: 3, kind: input, shape index: {}]
  %s4 = inlined_call_operand.hbm [shape: f32[2,128], index: 4, kind: output, shape index: {0}]
  %s5 = inlined_call_operand.hbm [shape: f32[2,128], index: 5, kind: output, shape index: {1}]
  %s6 = inlined_call_operand.vmem [shape: f32[2,128], index: 6, kind: output, shape index: {2}]
  %7 = xla_tuple %s4, %s5, %s6
  %s8 = sld [smem:[#allocation0]]
  $region50: #{vae_forward.11} parent=0
    _
  %s10 = ssub.s32 1, %s8
  %s11 = scalar_select 0, %s10, %s8
  $region1: #{vae_forward.11} parent=0
    #allocation3 [shape = 'u8[1024]{0}', space=vmem, size = 0x400, scoped, tag = 'output window, operand 0, single buffered']
    #allocation4 [shape = 's32[1]{0}', space=sflag, size = 0x4, scoped, tag = 'scoped memory for vae_forward.11']
    #allocation5 [shape = 'u8[1024]{0}', space=vmem, size = 0x400, scoped, tag = 'output window, operand 1, single buffered']
    #allocation6 [shape = 's32[1]{0}', space=sflag, size = 0x4, scoped, tag = 'scoped memory for vae_forward.11']
    %12 = vsyncpa [#allocation4], 0
    %13 = vsyncpa [#allocation6], 0
    // Predicated region
    $region2: #{vae_forward.11} parent=1 // pred_check
      _
    $region3: #{vae_forward.11} parent=1 // pred_check_branch
      %15 = sbr.rel (0) target = $region5
    $region4: #{vae_forward.11} parent=1 // pred_region
      _
    $region5: #{vae_forward.11} parent=1 // pred_fallthru
      _
    // Predicated region
    $region6: #{vae_forward.11} parent=1 // pred_check
      _
    $region7: #{vae_forward.11} parent=1 // pred_check_branch
      %17 = sbr.rel (0) target = $region9
    $region8: #{vae_forward.11} parent=1 // pred_region
      _
    $region9: #{vae_forward.11} parent=1 // pred_fallthru
      _
    // Predicated region
    $region10: #{vae_forward.11} parent=1 // pred_check
      _
    $region11: #{vae_forward.11} parent=1 // pred_check_branch
      %19 = sbr.rel (0) target = $region13
    $region12: #{vae_forward.11} parent=1 // pred_region
      _
    $region13: #{vae_forward.11} parent=1 // pred_fallthru
      _
    // Predicated region
    $region14: #{vae_forward.11} parent=1 // pred_check
      _
    $region15: #{vae_forward.11} parent=1 // pred_check_branch
      %21 = sbr.rel (0) target = $region17
    $region16: #{vae_forward.11} parent=1 // pred_region
      _
    $region17: #{vae_forward.11} parent=1 // pred_fallthru
      _
    %p22 = scmp.eq.s32.totalorder 0, 0
    // Predicated region
    $region18: #{vae_forward.11} parent=1 // pred_check
      %p23 = pneg %p22
    $region19: #{vae_forward.11} parent=1 // pred_check_branch
      %25 = sbr.rel (%p23) target = $region21
    $region20: #{vae_forward.11} parent=1 // pred_region
      %26 = vst [vmem:[#allocation2] sm:$0xf] 0.0
    $region21: #{vae_forward.11} parent=1 // pred_fallthru
      _
    %v27 = vld [vmem:[#allocation2] sm:$0xf]
    %v28 = vld [vmem:[%s0] sm:$0xf]
    %v29 = vld [vmem:[%s1] sm:$0xff]
    %v30 = vld [vmem:[%s1 + $0x8] sm:$0xff]
    %v31 = vld [vmem:[%s1 + $0x10] sm:$0xff]
    %v32 = vld [vmem:[%s1 + $0x18] sm:$0xff]
    %v33 = vld [vmem:[%s1 + $0x20] sm:$0xff]
    %v34 = vld [vmem:[%s1 + $0x28] sm:$0xff]
    %v35 = vld [vmem:[%s1 + $0x30] sm:$0xff]
    %v36 = vld [vmem:[%s1 + $0x38] sm:$0xff]
    %v37 = vld [vmem:[%s1 + $0x40] sm:$0xff]
    %v38 = vld [vmem:[%s1 + $0x48] sm:$0xff]
    %v39 = vld [vmem:[%s1 + $0x50] sm:$0xff]
    %v40 = vld [vmem:[%s1 + $0x58] sm:$0xff]
    %v41 = vld [vmem:[%s1 + $0x60] sm:$0xff]
    %v42 = vld [vmem:[%s1 + $0x68] sm:$0xff]
    %v43 = vld [vmem:[%s1 + $0x70] sm:$0xff]
    %v44 = vld [vmem:[%s1 + $0x78] sm:$0xff]
    %v45 = vld [vmem:[%s1 + $0x80] sm:$0xff]
    %v46 = vld [vmem:[%s1 + $0x88] sm:$0xff]
    %v47 = vld [vmem:[%s1 + $0x90] sm:$0xff]
    %v48 = vld [vmem:[%s1 + $0x98] sm:$0xff]
    %v49 = vld [vmem:[%s1 + $0xa0] sm:$0xff]
    %v50 = vld [vmem:[%s1 + $0xa8] sm:$0xff]
    %v51 = vld [vmem:[%s1 + $0xb0] sm:$0xff]
    %v52 = vld [vmem:[%s1 + $0xb8] sm:$0xff]
    %v53 = vld [vmem:[%s1 + $0xc0] sm:$0xff]
    %v54 = vld [vmem:[%s1 + $0xc8] sm:$0xff]
    %v55 = vld [vmem:[%s1 + $0xd0] sm:$0xff]
    %v56 = vld [vmem:[%s1 + $0xd8] sm:$0xff]
    %v57 = vld [vmem:[%s1 + $0xe0] sm:$0xff]
    %v58 = vld [vmem:[%s1 + $0xe8] sm:$0xff]
    %v59 = vld [vmem:[%s1 + $0xf0] sm:$0xff]
    %v60 = vld [vmem:[%s1 + $0xf8] sm:$0xff]
    %v61 = vld [vmem:[%s1 + $0x100] sm:$0xff]
    %v62 = vld [vmem:[%s1 + $0x108] sm:$0xff]
    %v63 = vld [vmem:[%s1 + $0x110] sm:$0xff]
    %v64 = vld [vmem:[%s1 + $0x118] sm:$0xff]
    %v65 = vld [vmem:[%s1 + $0x120] sm:$0xff]
    %v66 = vld [vmem:[%s1 + $0x128] sm:$0xff]
    %v67 = vld [vmem:[%s1 + $0x130] sm:$0xff]
    %v68 = vld [vmem:[%s1 + $0x138] sm:$0xff]
    %v69 = vld [vmem:[%s1 + $0x140] sm:$0xff]
    %v70 = vld [vmem:[%s1 + $0x148] sm:$0xff]
    %v71 = vld [vmem:[%s1 + $0x150] sm:$0xff]
    %v72 = vld [vmem:[%s1 + $0x158] sm:$0xff]
    %v73 = vld [vmem:[%s1 + $0x160] sm:$0xff]
    %v74 = vld [vmem:[%s1 + $0x168] sm:$0xff]
    %v75 = vld [vmem:[%s1 + $0x170] sm:$0xff]
    %v76 = vld [vmem:[%s1 + $0x178] sm:$0xff]
    %v77 = vld [vmem:[%s1 + $0x180] sm:$0xff]
    %v78 = vld [vmem:[%s1 + $0x188] sm:$0xff]
    %v79 = vld [vmem:[%s1 + $0x190] sm:$0xff]
    %v80 = vld [vmem:[%s1 + $0x198] sm:$0xff]
    %v81 = vld [vmem:[%s1 + $0x1a0] sm:$0xff]
    %v82 = vld [vmem:[%s1 + $0x1a8] sm:$0xff]
    %v83 = vld [vmem:[%s1 + $0x1b0] sm:$0xff]
    %v84 = vld [vmem:[%s1 + $0x1b8] sm:$0xff]
    %v85 = vld [vmem:[%s1 + $0x1c0] sm:$0xff]
    %v86 = vld [vmem:[%s1 + $0x1c8] sm:$0xff]
    %v87 = vld [vmem:[%s1 + $0x1d0] sm:$0xff]
    %v88 = vld [vmem:[%s1 + $0x1d8] sm:$0xff]
    %v89 = vld [vmem:[%s1 + $0x1e0] sm:$0xff]
    %v90 = vld [vmem:[%s1 + $0x1e8] sm:$0xff]
    %v91 = vld [vmem:[%s1 + $0x1f0] sm:$0xff]
    %v92 = vld [vmem:[%s1 + $0x1f8] sm:$0xff]
    %v95 = vunpack.c.l.s4 1966171168
    %v96 = vunpack.c.0.s8 %v95
    %v97 = vlaneseq
    %v98 = vshrl.u32 %v97, 7
    %v99 = vsub.s32 %v96, %v98
    %v100 = vrot.slane %v28, %v99
    %v101 = vcombine.high %v100, %v100
    %v103 = vunpack.c.l.s4 1966171168
    %v104 = vunpack.c.0.s8 %v103
    %v105 = vlaneseq
    %v106 = vshrl.u32 %v105, 7
    %v107 = vsub.s32 %v104, %v106
    %v108 = vrot.slane %v100, %v107
    %v110 = vunpack.c.l.s4 1966171168
    %v111 = vunpack.c.0.s8 %v110
    %v112 = vlaneseq
    %v113 = vshrl.u32 %v112, 7
    %v114 = vsub.s32 %v111, %v113
    %v115 = vrot.slane %v101, %v114
    %v116 = vcombine.high %v108, %v108
    %v117 = vcombine.high %v115, %v115
    %v186 = vunpack.c.l.b16 %v29
    %v187 = vunpack.c.h.b16 %v29
    %v188 = vunpack.c.l.b16 %v30
    %v189 = vunpack.c.h.b16 %v30
    %v190 = vunpack.c.l.b16 %v31
    %v191 = vunpack.c.h.b16 %v31
    %v192 = vunpack.c.l.b16 %v32
    %v193 = vunpack.c.h.b16 %v32
    %v194 = vunpack.c.l.b16 %v33
    %v195 = vunpack.c.h.b16 %v33
    %v196 = vunpack.c.l.b16 %v34
    %v197 = vunpack.c.h.b16 %v34
    %v198 = vunpack.c.l.b16 %v35
    %v199 = vunpack.c.h.b16 %v35
    %v200 = vunpack.c.l.b16 %v36
    %v201 = vunpack.c.h.b16 %v36
    %v202 = vunpack.c.l.b16 %v37
    %v203 = vunpack.c.h.b16 %v37
    %v204 = vunpack.c.l.b16 %v38
    %v205 = vunpack.c.h.b16 %v38
    %v206 = vunpack.c.l.b16 %v39
    %v207 = vunpack.c.h.b16 %v39
    %v208 = vunpack.c.l.b16 %v40
    %v209 = vunpack.c.h.b16 %v40
    %v210 = vunpack.c.l.b16 %v41
    %v211 = vunpack.c.h.b16 %v41
    %v212 = vunpack.c.l.b16 %v42
    %v213 = vunpack.c.h.b16 %v42
    %v214 = vunpack.c.l.b16 %v43
    %v215 = vunpack.c.h.b16 %v43
    %v216 = vunpack.c.l.b16 %v44
    %v217 = vunpack.c.h.b16 %v44
    %v218 = vunpack.c.l.b16 %v45
    %v219 = vunpack.c.h.b16 %v45
    %v220 = vunpack.c.l.b16 %v46
    %v221 = vunpack.c.h.b16 %v46
    %v222 = vunpack.c.l.b16 %v47
    %v223 = vunpack.c.h.b16 %v47
    %v224 = vunpack.c.l.b16 %v48
    %v225 = vunpack.c.h.b16 %v48
    %v226 = vunpack.c.l.b16 %v49
    %v227 = vunpack.c.h.b16 %v49
    %v228 = vunpack.c.l.b16 %v50
    %v229 = vunpack.c.h.b16 %v50
    %v230 = vunpack.c.l.b16 %v51
    %v231 = vunpack.c.h.b16 %v51
    %v232 = vunpack.c.l.b16 %v52
    %v233 = vunpack.c.h.b16 %v52
    %v234 = vunpack.c.l.b16 %v53
    %v235 = vunpack.c.h.b16 %v53
    %v236 = vunpack.c.l.b16 %v54
    %v237 = vunpack.c.h.b16 %v54
    %v238 = vunpack.c.l.b16 %v55
    %v239 = vunpack.c.h.b16 %v55
    %v240 = vunpack.c.l.b16 %v56
    %v241 = vunpack.c.h.b16 %v56
    %v242 = vunpack.c.l.b16 %v57
    %v243 = vunpack.c.h.b16 %v57
    %v244 = vunpack.c.l.b16 %v58
    %v245 = vunpack.c.h.b16 %v58
    %v246 = vunpack.c.l.b16 %v59
    %v247 = vunpack.c.h.b16 %v59
    %v248 = vunpack.c.l.b16 %v60
    %v249 = vunpack.c.h.b16 %v60
    %v250 = vunpack.c.l.b16 %v61
    %v251 = vunpack.c.h.b16 %v61
    %v252 = vunpack.c.l.b16 %v62
    %v253 = vunpack.c.h.b16 %v62
    %v254 = vunpack.c.l.b16 %v63
    %v255 = vunpack.c.h.b16 %v63
    %v256 = vunpack.c.l.b16 %v64
    %v257 = vunpack.c.h.b16 %v64
    %v258 = vunpack.c.l.b16 %v65
    %v259 = vunpack.c.h.b16 %v65
    %v260 = vunpack.c.l.b16 %v66
    %v261 = vunpack.c.h.b16 %v66
    %v262 = vunpack.c.l.b16 %v67
    %v263 = vunpack.c.h.b16 %v67
    %v264 = vunpack.c.l.b16 %v68
    %v265 = vunpack.c.h.b16 %v68
    %v266 = vunpack.c.l.b16 %v69
    %v267 = vunpack.c.h.b16 %v69
    %v268 = vunpack.c.l.b16 %v70
    %v269 = vunpack.c.h.b16 %v70
    %v270 = vunpack.c.l.b16 %v71
    %v271 = vunpack.c.h.b16 %v71
    %v272 = vunpack.c.l.b16 %v72
    %v273 = vunpack.c.h.b16 %v72
    %v274 = vunpack.c.l.b16 %v73
    %v275 = vunpack.c.h.b16 %v73
    %v276 = vunpack.c.l.b16 %v74
    %v277 = vunpack.c.h.b16 %v74
    %v278 = vunpack.c.l.b16 %v75
    %v279 = vunpack.c.h.b16 %v75
    %v280 = vunpack.c.l.b16 %v76
    %v281 = vunpack.c.h.b16 %v76
    %v282 = vunpack.c.l.b16 %v77
    %v283 = vunpack.c.h.b16 %v77
    %v284 = vunpack.c.l.b16 %v78
    %v285 = vunpack.c.h.b16 %v78
    %v286 = vunpack.c.l.b16 %v79
    %v287 = vunpack.c.h.b16 %v79
    %v288 = vunpack.c.l.b16 %v80
    %v289 = vunpack.c.h.b16 %v80
    %v290 = vunpack.c.l.b16 %v81
    %v291 = vunpack.c.h.b16 %v81
    %v292 = vunpack.c.l.b16 %v82
    %v293 = vunpack.c.h.b16 %v82
    %v294 = vunpack.c.l.b16 %v83
    %v295 = vunpack.c.h.b16 %v83
    %v296 = vunpack.c.l.b16 %v84
    %v297 = vunpack.c.h.b16 %v84
    %v298 = vunpack.c.l.b16 %v85
    %v299 = vunpack.c.h.b16 %v85
    %v300 = vunpack.c.l.b16 %v86
    %v301 = vunpack.c.h.b16 %v86
    %v302 = vunpack.c.l.b16 %v87
    %v303 = vunpack.c.h.b16 %v87
    %v304 = vunpack.c.l.b16 %v88
    %v305 = vunpack.c.h.b16 %v88
    %v306 = vunpack.c.l.b16 %v89
    %v307 = vunpack.c.h.b16 %v89
    %v308 = vunpack.c.l.b16 %v90
    %v309 = vunpack.c.h.b16 %v90
    %v310 = vunpack.c.l.b16 %v91
    %v311 = vunpack.c.h.b16 %v91
    %v312 = vunpack.c.l.b16 %v92
    %v313 = vunpack.c.h.b16 %v92
    %v314 = vpack.c.b16 %v188, %v186
    %v315 = vpack.c.b16 %v189, %v187
    %v316 = vpack.c.b16 %v192, %v190
    %v317 = vpack.c.b16 %v193, %v191
    %v318 = vpack.c.b16 %v196, %v194
    %v319 = vpack.c.b16 %v197, %v195
    %v320 = vpack.c.b16 %v200, %v198
    %v321 = vpack.c.b16 %v201, %v199
    %v322 = vpack.c.b16 %v204, %v202
    %v323 = vpack.c.b16 %v205, %v203
    %v324 = vpack.c.b16 %v208, %v206
    %v325 = vpack.c.b16 %v209, %v207
    %v326 = vpack.c.b16 %v212, %v210
    %v327 = vpack.c.b16 %v213, %v211
    %v328 = vpack.c.b16 %v216, %v214
    %v329 = vpack.c.b16 %v217, %v215
    %v330 = vpack.c.b16 %v220, %v218
    %v331 = vpack.c.b16 %v221, %v219
    %v332 = vpack.c.b16 %v224, %v222
    %v333 = vpack.c.b16 %v225, %v223
    %v334 = vpack.c.b16 %v228, %v226
    %v335 = vpack.c.b16 %v229, %v227
    %v336 = vpack.c.b16 %v232, %v230
    %v337 = vpack.c.b16 %v233, %v231
    %v338 = vpack.c.b16 %v236, %v234
    %v339 = vpack.c.b16 %v237, %v235
    %v340 = vpack.c.b16 %v240, %v238
    %v341 = vpack.c.b16 %v241, %v239
    %v342 = vpack.c.b16 %v244, %v242
    %v343 = vpack.c.b16 %v245, %v243
    %v344 = vpack.c.b16 %v248, %v246
    %v345 = vpack.c.b16 %v249, %v247
    %v346 = vpack.c.b16 %v252, %v250
    %v347 = vpack.c.b16 %v253, %v251
    %v348 = vpack.c.b16 %v256, %v254
    %v349 = vpack.c.b16 %v257, %v255
    %v350 = vpack.c.b16 %v260, %v258
    %v351 = vpack.c.b16 %v261, %v259
    %v352 = vpack.c.b16 %v264, %v262
    %v353 = vpack.c.b16 %v265, %v263
    %v354 = vpack.c.b16 %v268, %v266
    %v355 = vpack.c.b16 %v269, %v267
    %v356 = vpack.c.b16 %v272, %v270
    %v357 = vpack.c.b16 %v273, %v271
    %v358 = vpack.c.b16 %v276, %v274
    %v359 = vpack.c.b16 %v277, %v275
    %v360 = vpack.c.b16 %v280, %v278
    %v361 = vpack.c.b16 %v281, %v279
    %v362 = vpack.c.b16 %v284, %v282
    %v363 = vpack.c.b16 %v285, %v283
    %v364 = vpack.c.b16 %v288, %v286
    %v365 = vpack.c.b16 %v289, %v287
    %v366 = vpack.c.b16 %v292, %v290
    %v367 = vpack.c.b16 %v293, %v291
    %v368 = vpack.c.b16 %v296, %v294
    %v369 = vpack.c.b16 %v297, %v295
    %v370 = vpack.c.b16 %v300, %v298
    %v371 = vpack.c.b16 %v301, %v299
    %v372 = vpack.c.b16 %v304, %v302
    %v373 = vpack.c.b16 %v305, %v303
    %v374 = vpack.c.b16 %v308, %v306
    %v375 = vpack.c.b16 %v309, %v307
    %v376 = vpack.c.b16 %v312, %v310
    %v377 = vpack.c.b16 %v313, %v311
    %442 = vmatprep.subr.bf16.mxu0 %v315
    %443 = vmatpush1.bf16.msra.mxu0 %v314
    %444 = vmatprep.subr.bf16.mxu0 %v317
    %445 = vmatpush1.bf16.msra.mxu0 %v316
    %446 = vmatprep.subr.bf16.mxu0 %v319
    %447 = vmatpush1.bf16.msra.mxu0 %v318
    %448 = vmatprep.subr.bf16.mxu0 %v321
    %449 = vmatpush1.bf16.msra.mxu0 %v320
    %450 = vmatprep.subr.bf16.mxu0 %v323
    %451 = vmatpush1.bf16.msra.mxu0 %v322
    %452 = vmatprep.subr.bf16.mxu0 %v325
    %453 = vmatpush1.bf16.msra.mxu0 %v324
    %454 = vmatprep.subr.bf16.mxu0 %v327
    %455 = vmatpush1.bf16.msra.mxu0 %v326
    %456 = vmatprep.subr.bf16.mxu0 %v329
    %457 = vmatpush1.bf16.msra.mxu0 %v328
    %458 = vmatprep.subr.bf16.mxu0 %v331
    %459 = vmatpush1.bf16.msra.mxu0 %v330
    %460 = vmatprep.subr.bf16.mxu0 %v333
    %461 = vmatpush1.bf16.msra.mxu0 %v332
    %462 = vmatprep.subr.bf16.mxu0 %v335
    %463 = vmatpush1.bf16.msra.mxu0 %v334
    %464 = vmatprep.subr.bf16.mxu0 %v337
    %465 = vmatpush1.bf16.msra.mxu0 %v336
    %466 = vmatprep.subr.bf16.mxu0 %v339
    %467 = vmatpush1.bf16.msra.mxu0 %v338
    %468 = vmatprep.subr.bf16.mxu0 %v341
    %469 = vmatpush1.bf16.msra.mxu0 %v340
    %470 = vmatprep.subr.bf16.mxu0 %v343
    %471 = vmatpush1.bf16.msra.mxu0 %v342
    %472 = vmatprep.subr.bf16.mxu0 %v345
    %473 = vmatpush1.bf16.msra.mxu0 %v344
    %474 = vmatprep.mubr.bf16.mxu0 %v115
    %475 = vmatmul.mubr.bf16.gmra.mrb[0].mxu0 %v108
    %v476 = vpop.f32.mrb[0].mxu0
    %v477 = vadd.f32 0.0, %v476
    %v478 = vpop.f32.mrb[0].mxu0
    %v479 = vadd.f32 0.0, %v478
    %v480 = vpop.f32.mrb[0].mxu0
    %v481 = vpop.f32.mrb[0].mxu0
    %482 = vdwg.mxu0
    %483 = vmatprep.subr.bf16.mxu0 %v347
    %484 = vmatpush1.bf16.msra.mxu0 %v346
    %485 = vmatprep.subr.bf16.mxu0 %v349
    %486 = vmatpush1.bf16.msra.mxu0 %v348
    %487 = vmatprep.subr.bf16.mxu0 %v351
    %488 = vmatpush1.bf16.msra.mxu0 %v350
    %489 = vmatprep.subr.bf16.mxu0 %v353
    %490 = vmatpush1.bf16.msra.mxu0 %v352
    %491 = vmatprep.subr.bf16.mxu0 %v355
    %492 = vmatpush1.bf16.msra.mxu0 %v354
    %493 = vmatprep.subr.bf16.mxu0 %v357
    %494 = vmatpush1.bf16.msra.mxu0 %v356
    %495 = vmatprep.subr.bf16.mxu0 %v359
    %496 = vmatpush1.bf16.msra.mxu0 %v358
    %497 = vmatprep.subr.bf16.mxu0 %v361
    %498 = vmatpush1.bf16.msra.mxu0 %v360
    %499 = vmatprep.subr.bf16.mxu0 %v363
    %500 = vmatpush1.bf16.msra.mxu0 %v362
    %501 = vmatprep.subr.bf16.mxu0 %v365
    %502 = vmatpush1.bf16.msra.mxu0 %v364
    %503 = vmatprep.subr.bf16.mxu0 %v367
    %504 = vmatpush1.bf16.msra.mxu0 %v366
    %505 = vmatprep.subr.bf16.mxu0 %v369
    %506 = vmatpush1.bf16.msra.mxu0 %v368
    %507 = vmatprep.subr.bf16.mxu0 %v371
    %508 = vmatpush1.bf16.msra.mxu0 %v370
    %509 = vmatprep.subr.bf16.mxu0 %v373
    %510 = vmatpush1.bf16.msra.mxu0 %v372
    %511 = vmatprep.subr.bf16.mxu0 %v375
    %512 = vmatpush1.bf16.msra.mxu0 %v374
    %513 = vmatprep.subr.bf16.mxu0 %v377
    %514 = vmatpush1.bf16.msra.mxu0 %v376
    %515 = vmatprep.mubr.bf16.mxu0 %v117
    %516 = vmatmul.mubr.bf16.gmra.mrb[0].mxu0 %v116
    %v517 = vpop.f32.mrb[0].mxu0
    %v518 = vadd.f32 %v477, %v517
    %v519 = vpop.f32.mrb[0].mxu0
    %v520 = vadd.f32 %v479, %v519
    %v521 = vpop.f32.mrb[0].mxu0
    %v522 = vpop.f32.mrb[0].mxu0
    %523 = vdwg.mxu0
    %v526 = vcombine.low %v518, %v520
    %v528 = vunpack.c.l.s4 1983009808
    %v529 = vunpack.c.0.s8 %v528
    %v530 = vlaneseq
    %v531 = vshrl.u32 %v530, 7
    %v532 = vsub.s32 %v529, %v531
    %v533 = vrot.slane %v526, %v532
    %v535 = vadd.f32 %v27, %v533
    %536 = vst [vmem:[#allocation2] sm:$0xf] %v535
    // Predicated region
    $region22: #{vae_forward.11} parent=1 // pred_check
      %p537 = pneg %p22
    $region23: #{vae_forward.11} parent=1 // pred_check_branch
      %539 = sbr.rel (%p537) target = $region25
    $region24: #{vae_forward.11} parent=1 // pred_region
      %v540 = vld [vmem:[#allocation2] sm:$0xf]
      %v541 = vld [vmem:[%s2] sm:$0x3]
      %v543 = vlaneseq
      %v544 = vshrl.u32 %v543, 7
      %v545 = vsub.s32 0, %v544
      %v546 = vrot.slane %v541, %v545
      %v547 = vlaneseq
      %v548 = vshrl.u32 %v547, 7
      %v549 = vsub.s32 1, %v548
      %v550 = vrot.slane %v541, %v549
      %v551 = vcombine.low %v546, %v550
      %v553 = vunpack.c.l.s4 1983009808
      %v554 = vunpack.c.0.s8 %v553
      %v555 = vlaneseq
      %v556 = vshrl.u32 %v555, 7
      %v557 = vsub.s32 %v554, %v556
      %v558 = vrot.slane %v551, %v557
      %v560 = vadd.f32 %v540, %v558
      %561 = vst [vmem:[#allocation3] sm:$0x3] %v560
      %v564 = vunpack.c.l.s4 1983009808
      %v565 = vunpack.c.0.s8 %v564
      %v566 = vlaneseq
      %v567 = vshrl.u32 %v566, 7
      %v568 = vsub.s32 %v565, %v567
      %v569 = vrot.slane %v560, %v568
      %v570 = vcombine.high %v569, %v569
      %572 = vst [vmem:[#allocation5] sm:$0x3] %v570
      %v573 = vld [vmem:[%s3] sm:$0x3]
      %v574 = vrot.slane %v560, 2
      %v576 = vmul.f32 %v574, 0.5
      %v577 = vmul.f32 %v576, 1.442695
      %v578 = vpow.pop %v577
      %v579 = vmul.f32 %v573, %v578
      %v580 = vadd.f32 %v560, %v579
      %581 = vst [vmem:[%s6] sm:$0x3] %v580
    $region25: #{vae_forward.11} parent=1 // pred_fallthru
      _
    // Predicated region
    $region26: #{vae_forward.11} parent=1 // pred_check
      _
    $region27: #{vae_forward.11} parent=1 // pred_check_branch
      %583 = sbr.rel (0) target = $region29
    $region28: #{vae_forward.11} parent=1 // pred_region
      %s585 = ssub.s32 32, 32
      %586 = vsyncadd [#allocation4], %s585
      %s588 = sshll.u32 [#allocation3], 4
      %s589 = int_to_ptr.vmem [resolvable:$true] %s588
      %591 = dma.vmem_to_hbm [thread:$0]  %s589, 32, %s4, [#allocation4]
    $region29: #{vae_forward.11} parent=1 // pred_fallthru
      _
    // Predicated region
    $region30: #{vae_forward.11} parent=1 // pred_check
      _
    $region31: #{vae_forward.11} parent=1 // pred_check_branch
      %593 = sbr.rel (0) target = $region33
    $region32: #{vae_forward.11} parent=1 // pred_region
      %s595 = ssub.s32 32, 32
      %596 = vsyncadd [#allocation6], %s595
      %s598 = sshll.u32 [#allocation5], 4
      %s599 = int_to_ptr.vmem [resolvable:$true] %s598
      %601 = dma.vmem_to_hbm [thread:$0]  %s599, 32, %s5, [#allocation6]
    $region33: #{vae_forward.11} parent=1 // pred_fallthru
      _
    // Predicated region
    $region34: #{vae_forward.11} parent=1 // pred_check
      _
    $region35: #{vae_forward.11} parent=1 // pred_check_branch
      %603 = sbr.rel (0) target = $region37
    $region36: #{vae_forward.11} parent=1 // pred_region
      _
    $region37: #{vae_forward.11} parent=1 // pred_fallthru
      _
    // Predicated region
    $region38: #{vae_forward.11} parent=1 // pred_check
      _
    $region39: #{vae_forward.11} parent=1 // pred_check_branch
      %605 = sbr.rel (0) target = $region41
    $region40: #{vae_forward.11} parent=1 // pred_region
      %606 = dma.done [#allocation4], 32
    $region41: #{vae_forward.11} parent=1 // pred_fallthru
      _
    // Predicated region
    $region42: #{vae_forward.11} parent=1 // pred_check
      _
    $region43: #{vae_forward.11} parent=1 // pred_check_branch
      %608 = sbr.rel (0) target = $region45
    $region44: #{vae_forward.11} parent=1 // pred_region
      %609 = dma.done [#allocation6], 32
    $region45: #{vae_forward.11} parent=1 // pred_fallthru
      _
    // Predicated region
    $region46: #{vae_forward.11} parent=1 // pred_check
      _
    $region47: #{vae_forward.11} parent=1 // pred_check_branch
      %611 = sbr.rel (0) target = $region49
    $region48: #{vae_forward.11} parent=1 // pred_region
      _
    $region49: #{vae_forward.11} parent=1 // pred_fallthru
      _
    %612 = vsyncpa [#allocation4], 1
    %613 = vsyncpa [#allocation6], 1

// kernel: vae_forward.12
$region0: #{vae_forward.12}
  #allocation0 [shape = 'u32[]', space=smem, size = 0x4, offset = 0x4, fixed_abs, tag = 'smem constant byte address 0x4 - core index']
  #allocation1 [shape = 'u32[144,128]{1,0:T(1,128)}', space=vmem, size = 0x12000, scoped, tag = 'internal scratch']
  #allocation2 [shape = 'f32[2,512]{1,0:T(2,128)}', space=vmem, size = 0x1000, scoped, tag = 'scratch operand']
  %s0 = inlined_call_operand.vmem [shape: bf16[2,128], index: 0, kind: input, shape index: {}]
  %s1 = inlined_call_operand.vmem [shape: bf16[128,512], index: 1, kind: input, shape index: {}]
  %s2 = inlined_call_operand.vmem [shape: f32[1,512], index: 2, kind: input, shape index: {}]
  %s3 = inlined_call_operand.vmem [shape: bf16[2,512], index: 3, kind: output, shape index: {}]
  %s4 = sld [smem:[#allocation0]]
  $region30: #{vae_forward.12} parent=0
    _
  %s6 = ssub.s32 1, %s4
  %s7 = scalar_select 0, %s6, %s4
  // Predicated region
  $region2: #{vae_forward.12} parent=0 // pred_check
    _
  $region3: #{vae_forward.12} parent=0 // pred_check_branch
    %9 = sbr.rel (0) target = $region5
  $region4: #{vae_forward.12} parent=0 // pred_region
    _
  $region5: #{vae_forward.12} parent=0 // pred_fallthru
    _
  // Predicated region
  $region6: #{vae_forward.12} parent=0 // pred_check
    _
  $region7: #{vae_forward.12} parent=0 // pred_check_branch
    %11 = sbr.rel (0) target = $region9
  $region8: #{vae_forward.12} parent=0 // pred_region
    _
  $region9: #{vae_forward.12} parent=0 // pred_fallthru
    _
  // Predicated region
  $region10: #{vae_forward.12} parent=0 // pred_check
    _
  $region11: #{vae_forward.12} parent=0 // pred_check_branch
    %13 = sbr.rel (0) target = $region13
  $region12: #{vae_forward.12} parent=0 // pred_region
    _
  $region13: #{vae_forward.12} parent=0 // pred_fallthru
    _
  %p15 = scmp.eq.s32.totalorder 0, 0
  // Predicated region
  $region14: #{vae_forward.12} parent=0 // pred_check
    %p16 = pneg %p15
  $region15: #{vae_forward.12} parent=0 // pred_check_branch
    %18 = sbr.rel (%p16) target = $region17
  $region16: #{vae_forward.12} parent=0 // pred_region
    %19 = vst [vmem:[#allocation2] sm:$0xff] 0.0
  $region17: #{vae_forward.12} parent=0 // pred_fallthru
    _
  %v20 = vld [vmem:[#allocation2] sm:$0xff]
  %v21 = vld [vmem:[%s0] sm:$0x1]
  %v22 = vld [vmem:[%s1] sm:$0xff]
  %v23 = vld [vmem:[%s1 + $0x8] sm:$0xff]
  %v24 = vld [vmem:[%s1 + $0x10] sm:$0xff]
  %v25 = vld [vmem:[%s1 + $0x18] sm:$0xff]
  %v26 = vld [vmem:[%s1 + $0x20] sm:$0xff]
  %v27 = vld [vmem:[%s1 + $0x28] sm:$0xff]
  %v28 = vld [vmem:[%s1 + $0x30] sm:$0xff]
  %v29 = vld [vmem:[%s1 + $0x38] sm:$0xff]
  %v30 = vld [vmem:[%s1 + $0x40] sm:$0xff]
  %v31 = vld [vmem:[%s1 + $0x48] sm:$0xff]
  %v32 = vld [vmem:[%s1 + $0x50] sm:$0xff]
  %v33 = vld [vmem:[%s1 + $0x58] sm:$0xff]
  %v34 = vld [vmem:[%s1 + $0x60] sm:$0xff]
  %v35 = vld [vmem:[%s1 + $0x68] sm:$0xff]
  %v36 = vld [vmem:[%s1 + $0x70] sm:$0xff]
  %v37 = vld [vmem:[%s1 + $0x78] sm:$0xff]
  %v38 = vld [vmem:[%s1 + $0x80] sm:$0xff]
  %v39 = vld [vmem:[%s1 + $0x88] sm:$0xff]
  %v40 = vld [vmem:[%s1 + $0x90] sm:$0xff]
  %v41 = vld [vmem:[%s1 + $0x98] sm:$0xff]
  %v42 = vld [vmem:[%s1 + $0xa0] sm:$0xff]
  %v43 = vld [vmem:[%s1 + $0xa8] sm:$0xff]
  %v44 = vld [vmem:[%s1 + $0xb0] sm:$0xff]
  %v45 = vld [vmem:[%s1 + $0xb8] sm:$0xff]
  %v46 = vld [vmem:[%s1 + $0xc0] sm:$0xff]
  %v47 = vld [vmem:[%s1 + $0xc8] sm:$0xff]
  %v48 = vld [vmem:[%s1 + $0xd0] sm:$0xff]
  %v49 = vld [vmem:[%s1 + $0xd8] sm:$0xff]
  %v50 = vld [vmem:[%s1 + $0xe0] sm:$0xff]
  %v51 = vld [vmem:[%s1 + $0xe8] sm:$0xff]
  %v52 = vld [vmem:[%s1 + $0xf0] sm:$0xff]
  %v53 = vld [vmem:[%s1 + $0xf8] sm:$0xff]
  %v86 = vunpack.c.l.b16 %v22
  %v87 = vunpack.c.h.b16 %v22
  %v88 = vunpack.c.l.b16 %v23
  %v89 = vunpack.c.h.b16 %v23
  %v90 = vunpack.c.l.b16 %v24
  %v91 = vunpack.c.h.b16 %v24
  %v92 = vunpack.c.l.b16 %v25
  %v93 = vunpack.c.h.b16 %v25
  %v94 = vunpack.c.l.b16 %v26
  %v95 = vunpack.c.h.b16 %v26
  %v96 = vunpack.c.l.b16 %v27
  %v97 = vunpack.c.h.b16 %v27
  %v98 = vunpack.c.l.b16 %v28
  %v99 = vunpack.c.h.b16 %v28
  %v100 = vunpack.c.l.b16 %v29
  %v101 = vunpack.c.h.b16 %v29
  %v102 = vunpack.c.l.b16 %v30
  %v103 = vunpack.c.h.b16 %v30
  %v104 = vunpack.c.l.b16 %v31
  %v105 = vunpack.c.h.b16 %v31
  %v106 = vunpack.c.l.b16 %v32
  %v107 = vunpack.c.h.b16 %v32
  %v108 = vunpack.c.l.b16 %v33
  %v109 = vunpack.c.h.b16 %v33
  %v110 = vunpack.c.l.b16 %v34
  %v111 = vunpack.c.h.b16 %v34
  %v112 = vunpack.c.l.b16 %v35
  %v113 = vunpack.c.h.b16 %v35
  %v114 = vunpack.c.l.b16 %v36
  %v115 = vunpack.c.h.b16 %v36
  %v116 = vunpack.c.l.b16 %v37
  %v117 = vunpack.c.h.b16 %v37
  %v118 = vunpack.c.l.b16 %v38
  %v119 = vunpack.c.h.b16 %v38
  %v120 = vunpack.c.l.b16 %v39
  %v121 = vunpack.c.h.b16 %v39
  %v122 = vunpack.c.l.b16 %v40
  %v123 = vunpack.c.h.b16 %v40
  %v124 = vunpack.c.l.b16 %v41
  %v125 = vunpack.c.h.b16 %v41
  %v126 = vunpack.c.l.b16 %v42
  %v127 = vunpack.c.h.b16 %v42
  %v128 = vunpack.c.l.b16 %v43
  %v129 = vunpack.c.h.b16 %v43
  %v130 = vunpack.c.l.b16 %v44
  %v131 = vunpack.c.h.b16 %v44
  %v132 = vunpack.c.l.b16 %v45
  %v133 = vunpack.c.h.b16 %v45
  %v134 = vunpack.c.l.b16 %v46
  %v135 = vunpack.c.h.b16 %v46
  %v136 = vunpack.c.l.b16 %v47
  %v137 = vunpack.c.h.b16 %v47
  %v138 = vunpack.c.l.b16 %v48
  %v139 = vunpack.c.h.b16 %v48
  %v140 = vunpack.c.l.b16 %v49
  %v141 = vunpack.c.h.b16 %v49
  %v142 = vunpack.c.l.b16 %v50
  %v143 = vunpack.c.h.b16 %v50
  %v144 = vunpack.c.l.b16 %v51
  %v145 = vunpack.c.h.b16 %v51
  %v146 = vunpack.c.l.b16 %v52
  %v147 = vunpack.c.h.b16 %v52
  %v148 = vunpack.c.l.b16 %v53
  %v149 = vunpack.c.h.b16 %v53
  %v150 = vpack.c.b16 %v90, %v86
  %v151 = vpack.c.b16 %v91, %v87
  %v152 = vpack.c.b16 %v92, %v88
  %v153 = vpack.c.b16 %v93, %v89
  %v154 = vpack.c.b16 %v98, %v94
  %v155 = vpack.c.b16 %v99, %v95
  %v156 = vpack.c.b16 %v100, %v96
  %v157 = vpack.c.b16 %v101, %v97
  %v158 = vpack.c.b16 %v106, %v102
  %v159 = vpack.c.b16 %v107, %v103
  %v160 = vpack.c.b16 %v108, %v104
  %v161 = vpack.c.b16 %v109, %v105
  %v162 = vpack.c.b16 %v114, %v110
  %v163 = vpack.c.b16 %v115, %v111
  %v164 = vpack.c.b16 %v116, %v112
  %v165 = vpack.c.b16 %v117, %v113
  %v166 = vpack.c.b16 %v122, %v118
  %v167 = vpack.c.b16 %v123, %v119
  %v168 = vpack.c.b16 %v124, %v120
  %v169 = vpack.c.b16 %v125, %v121
  %v170 = vpack.c.b16 %v130, %v126
  %v171 = vpack.c.b16 %v131, %v127
  %v172 = vpack.c.b16 %v132, %v128
  %v173 = vpack.c.b16 %v133, %v129
  %v174 = vpack.c.b16 %v138, %v134
  %v175 = vpack.c.b16 %v139, %v135
  %v176 = vpack.c.b16 %v140, %v136
  %v177 = vpack.c.b16 %v141, %v137
  %v178 = vpack.c.b16 %v146, %v142
  %v179 = vpack.c.b16 %v147, %v143
  %v180 = vpack.c.b16 %v148, %v144
  %v181 = vpack.c.b16 %v149, %v145
  %214 = vmatprep.subr.bf16.mxu0 %v151
  %215 = vmatpush1.bf16.msra.mxu0 %v150
  %216 = vmatprep.subr.bf16.mxu0 %v155
  %217 = vmatpush1.bf16.msra.mxu0 %v154
  %218 = vmatprep.subr.bf16.mxu0 %v159
  %219 = vmatpush1.bf16.msra.mxu0 %v158
  %220 = vmatprep.subr.bf16.mxu0 %v163
  %221 = vmatpush1.bf16.msra.mxu0 %v162
  %222 = vmatprep.subr.bf16.mxu0 %v167
  %223 = vmatpush1.bf16.msra.mxu0 %v166
  %224 = vmatprep.subr.bf16.mxu0 %v171
  %225 = vmatpush1.bf16.msra.mxu0 %v170
  %226 = vmatprep.subr.bf16.mxu0 %v175
  %227 = vmatpush1.bf16.msra.mxu0 %v174
  %228 = vmatprep.subr.bf16.mxu0 %v179
  %229 = vmatpush1.bf16.msra.mxu0 %v178
  %230 = vmatprep.subr.bf16.mxu0 0
  %231 = vmatpush1.bf16.msra.mxu0 0
  %232 = vmatprep.subr.bf16.mxu0 0
  %233 = vmatpush1.bf16.msra.mxu0 0
  %234 = vmatprep.subr.bf16.mxu0 0
  %235 = vmatpush1.bf16.msra.mxu0 0
  %236 = vmatprep.subr.bf16.mxu0 0
  %237 = vmatpush1.bf16.msra.mxu0 0
  %238 = vmatprep.subr.bf16.mxu0 0
  %239 = vmatpush1.bf16.msra.mxu0 0
  %240 = vmatprep.subr.bf16.mxu0 0
  %241 = vmatpush1.bf16.msra.mxu0 0
  %242 = vmatprep.subr.bf16.mxu0 0
  %243 = vmatpush1.bf16.msra.mxu0 0
  %244 = vmatprep.subr.bf16.mxu0 0
  %245 = vmatpush1.bf16.msra.mxu0 0
  %246 = vmatprep.mubr.bf16.mxu0 0
  %247 = vmatmul.mubr.bf16.gmra.mrb[0].mxu0 %v21
  %v248 = vpop.f32.mrb[0].mxu0
  %v249 = vadd.f32 0.0, %v248
  %v250 = vpop.f32.mrb[0].mxu0
  %v251 = vadd.f32 0.0, %v250
  %v252 = vpop.f32.mrb[0].mxu0
  %v253 = vpop.f32.mrb[0].mxu0
  %254 = vdwg.mxu0
  %255 = vmatprep.subr.bf16.mxu0 %v153
  %256 = vmatpush1.bf16.msra.mxu0 %v152
  %257 = vmatprep.subr.bf16.mxu0 %v157
  %258 = vmatpush1.bf16.msra.mxu0 %v156
  %259 = vmatprep.subr.bf16.mxu0 %v161
  %260 = vmatpush1.bf16.msra.mxu0 %v160
  %261 = vmatprep.subr.bf16.mxu0 %v165
  %262 = vmatpush1.bf16.msra.mxu0 %v164
  %263 = vmatprep.subr.bf16.mxu0 %v169
  %264 = vmatpush1.bf16.msra.mxu0 %v168
  %265 = vmatprep.subr.bf16.mxu0 %v173
  %266 = vmatpush1.bf16.msra.mxu0 %v172
  %267 = vmatprep.subr.bf16.mxu0 %v177
  %268 = vmatpush1.bf16.msra.mxu0 %v176
  %269 = vmatprep.subr.bf16.mxu0 %v181
  %270 = vmatpush1.bf16.msra.mxu0 %v180
  %271 = vmatprep.subr.bf16.mxu0 0
  %272 = vmatpush1.bf16.msra.mxu0 0
  %273 = vmatprep.subr.bf16.mxu0 0
  %274 = vmatpush1.bf16.msra.mxu0 0
  %275 = vmatprep.subr.bf16.mxu0 0
  %276 = vmatpush1.bf16.msra.mxu0 0
  %277 = vmatprep.subr.bf16.mxu0 0
  %278 = vmatpush1.bf16.msra.mxu0 0
  %279 = vmatprep.subr.bf16.mxu0 0
  %280 = vmatpush1.bf16.msra.mxu0 0
  %281 = vmatprep.subr.bf16.mxu0 0
  %282 = vmatpush1.bf16.msra.mxu0 0
  %283 = vmatprep.subr.bf16.mxu0 0
  %284 = vmatpush1.bf16.msra.mxu0 0
  %285 = vmatprep.subr.bf16.mxu0 0
  %286 = vmatpush1.bf16.msra.mxu0 0
  %287 = vmatprep.mubr.bf16.mxu0 0
  %288 = vmatmul.mubr.bf16.gmra.mrb[0].mxu0 %v21
  %v289 = vpop.f32.mrb[0].mxu0
  %v290 = vadd.f32 0.0, %v289
  %v291 = vpop.f32.mrb[0].mxu0
  %v292 = vadd.f32 0.0, %v291
  %v293 = vpop.f32.mrb[0].mxu0
  %v294 = vpop.f32.mrb[0].mxu0
  %295 = vdwg.mxu0
  %v300 = vcombine.low %v249, %v251
  %v301 = vcombine.low %v290, %v292
  %v303 = vunpack.c.l.s4 1983009808
  %v304 = vunpack.c.0.s8 %v303
  %v305 = vlaneseq
  %v306 = vshrl.u32 %v305, 7
  %v307 = vsub.s32 %v304, %v306
  %v308 = vrot.slane %v300, %v307
  %v310 = vunpack.c.l.s4 1983009808
  %v311 = vunpack.c.0.s8 %v310
  %v312 = vlaneseq
  %v313 = vshrl.u32 %v312, 7
  %v314 = vsub.s32 %v311, %v313
  %v315 = vrot.slane %v301, %v314
  %v316 = vcombine.low %v308, %v315
  %v318 = vadd.f32 %v20, %v316
  %319 = vst [vmem:[#allocation2] sm:$0xff] %v318
  // Predicated region
  $region18: #{vae_forward.12} parent=0 // pred_check
    %p320 = pneg %p15
  $region19: #{vae_forward.12} parent=0 // pred_check_branch
    %322 = sbr.rel (%p320) target = $region21
  $region20: #{vae_forward.12} parent=0 // pred_region
    %v323 = vld [vmem:[#allocation2] sm:$0xff]
    %v324 = vld [vmem:[%s2] sm:$0xf]
    %v326 = vlaneseq
    %v327 = vshrl.u32 %v326, 7
    %v328 = vsub.s32 0, %v327
    %v329 = vrot.slane %v324, %v328
    %v330 = vlaneseq
    %v331 = vshrl.u32 %v330, 7
    %v332 = vsub.s32 1, %v331
    %v333 = vrot.slane %v324, %v332
    %v334 = vlaneseq
    %v335 = vshrl.u32 %v334, 7
    %v336 = vsub.s32 2, %v335
    %v337 = vrot.slane %v324, %v336
    %v338 = vlaneseq
    %v339 = vshrl.u32 %v338, 7
    %v340 = vsub.s32 3, %v339
    %v341 = vrot.slane %v324, %v340
    %v342 = vcombine.low %v329, %v333
    %v343 = vcombine.low %v337, %v341
    %v345 = vunpack.c.l.s4 1983009808
    %v346 = vunpack.c.0.s8 %v345
    %v347 = vlaneseq
    %v348 = vshrl.u32 %v347, 7
    %v349 = vsub.s32 %v346, %v348
    %v350 = vrot.slane %v342, %v349
    %v352 = vunpack.c.l.s4 1983009808
    %v353 = vunpack.c.0.s8 %v352
    %v354 = vlaneseq
    %v355 = vshrl.u32 %v354, 7
    %v356 = vsub.s32 %v353, %v355
    %v357 = vrot.slane %v343, %v356
    %v358 = vcombine.low %v350, %v357
    %v360 = vadd.f32 %v323, %v358
    %v361 = vmax.f32 %v360, 0.0
    %v363 = vcombine.high %v361, %v361
    %v365 = vunpack.c.l.s4 1983009808
    %v366 = vunpack.c.0.s8 %v365
    %v367 = vlaneseq
    %v368 = vshrl.u32 %v367, 7
    %v369 = vsub.s32 %v366, %v368
    %v370 = vrot.slane %v361, %v369
    %v372 = vunpack.c.l.s4 1983009808
    %v373 = vunpack.c.0.s8 %v372
    %v374 = vlaneseq
    %v375 = vshrl.u32 %v374, 7
    %v376 = vsub.s32 %v373, %v375
    %v377 = vrot.slane %v363, %v376
    %v378 = vcombine.high %v370, %v370
    %v379 = vcombine.high %v377, %v377
    %v384 = vpack.c.bf16 %v370, %v370
    %v385 = vpack.c.bf16 %v378, %v378
    %v386 = vpack.c.bf16 %v377, %v377
    %v387 = vpack.c.bf16 %v379, %v379
    %v392 = vcombine.low %v384, %v385
    %v393 = vcombine.low %v386, %v387
    %v395 = vunpack.c.l.s4 1966171168
    %v396 = vunpack.c.0.s8 %v395
    %v397 = vlaneseq
    %v398 = vshrl.u32 %v397, 7
    %v399 = vsub.s32 %v396, %v398
    %v400 = vrot.slane %v392, %v399
    %v402 = vunpack.c.l.s4 1966171168
    %v403 = vunpack.c.0.s8 %v402
    %v404 = vlaneseq
    %v405 = vshrl.u32 %v404, 7
    %v406 = vsub.s32 %v403, %v405
    %v407 = vrot.slane %v393, %v406
    %v408 = vcombine.low %v400, %v407
    %v410 = vunpack.c.l.s4 1966171168
    %v411 = vunpack.c.0.s8 %v410
    %v412 = vlaneseq
    %v413 = vshrl.u32 %v412, 7
    %v414 = vsub.s32 %v411, %v413
    %v415 = vrot.slane %v408, %v414
    %417 = vst [vmem:[%s3] sm:$0xf] %v415
  $region21: #{vae_forward.12} parent=0 // pred_fallthru
    _
  // Predicated region
  $region22: #{vae_forward.12} parent=0 // pred_check
    _
  $region23: #{vae_forward.12} parent=0 // pred_check_branch
    %419 = sbr.rel (0) target = $region25
  $region24: #{vae_forward.12} parent=0 // pred_region
    _
  $region25: #{vae_forward.12} parent=0 // pred_fallthru
    _
  // Predicated region
  $region26: #{vae_forward.12} parent=0 // pred_check
    _
  $region27: #{vae_forward.12} parent=0 // pred_check_branch
    %421 = sbr.rel (0) target = $region29
  $region28: #{vae_forward.12} parent=0 // pred_region
    _
  $region29: #{vae_forward.12} parent=0 // pred_fallthru
    _

// kernel: vae_forward.13
$region0: #{vae_forward.13}
  #allocation0 [shape = 'u32[]', space=smem, size = 0x4, offset = 0x4, fixed_abs, tag = 'smem constant byte address 0x4 - core index']
  #allocation1 [shape = 'u32[144,128]{1,0:T(1,128)}', space=vmem, size = 0x12000, scoped, tag = 'internal scratch']
  #allocation2 [shape = 'f32[8,256]{1,0:T(8,128)}', space=vmem, size = 0x2000, scoped, tag = 'scratch operand']
  %s0 = inlined_call_operand.vmem [shape: bf16[8,512], index: 0, kind: input, shape index: {}]
  %s1 = inlined_call_operand.vmem [shape: bf16[512,256], index: 1, kind: input, shape index: {}]
  %s2 = inlined_call_operand.vmem [shape: f32[1,256], index: 2, kind: input, shape index: {}]
  %s3 = inlined_call_operand.vmem [shape: bf16[8,256], index: 3, kind: output, shape index: {}]
  %s4 = sld [smem:[#allocation0]]
  $region30: #{vae_forward.13} parent=0
    _
  %s6 = ssub.s32 1, %s4
  %s7 = scalar_select 0, %s6, %s4
  // Predicated region
  $region2: #{vae_forward.13} parent=0 // pred_check
    _
  $region3: #{vae_forward.13} parent=0 // pred_check_branch
    %9 = sbr.rel (0) target = $region5
  $region4: #{vae_forward.13} parent=0 // pred_region
    _
  $region5: #{vae_forward.13} parent=0 // pred_fallthru
    _
  // Predicated region
  $region6: #{vae_forward.13} parent=0 // pred_check
    _
  $region7: #{vae_forward.13} parent=0 // pred_check_branch
    %11 = sbr.rel (0) target = $region9
  $region8: #{vae_forward.13} parent=0 // pred_region
    _
  $region9: #{vae_forward.13} parent=0 // pred_fallthru
    _
  // Predicated region
  $region10: #{vae_forward.13} parent=0 // pred_check
    _
  $region11: #{vae_forward.13} parent=0 // pred_check_branch
    %13 = sbr.rel (0) target = $region13
  $region12: #{vae_forward.13} parent=0 // pred_region
    _
  $region13: #{vae_forward.13} parent=0 // pred_fallthru
    _
  %p14 = scmp.eq.s32.totalorder 0, 0
  // Predicated region
  $region14: #{vae_forward.13} parent=0 // pred_check
    %p15 = pneg %p14
  $region15: #{vae_forward.13} parent=0 // pred_check_branch
    %17 = sbr.rel (%p15) target = $region17
  $region16: #{vae_forward.13} parent=0 // pred_region
    %18 = vst [vmem:[#allocation2] sm:$0xff] 0.0
    %19 = vst [vmem:[#allocation2 + $0x8] sm:$0xff] 0.0
  $region17: #{vae_forward.13} parent=0 // pred_fallthru
    _
  %v20 = vld [vmem:[#allocation2] sm:$0xff]
  %v21 = vld [vmem:[#allocation2 + $0x8] sm:$0xff]
  %v22 = vld [vmem:[%s0] sm:$0xff]
  %v23 = vld [vmem:[%s0 + $0x8] sm:$0xff]
  %v24 = vld [vmem:[%s1] sm:$0xff]
  %v25 = vld [vmem:[%s1 + $0x8] sm:$0xff]
  %v26 = vld [vmem:[%s1 + $0x10] sm:$0xff]
  %v27 = vld [vmem:[%s1 + $0x18] sm:$0xff]
  %v28 = vld [vmem:[%s1 + $0x20] sm:$0xff]
  %v29 = vld [vmem:[%s1 + $0x28] sm:$0xff]
  %v30 = vld [vmem:[%s1 + $0x30] sm:$0xff]
  %v31 = vld [vmem:[%s1 + $0x38] sm:$0xff]
  %v32 = vld [vmem:[%s1 + $0x40] sm:$0xff]
  %v33 = vld [vmem:[%s1 + $0x48] sm:$0xff]
  %v34 = vld [vmem:[%s1 + $0x50] sm:$0xff]
  %v35 = vld [vmem:[%s1 + $0x58] sm:$0xff]
  %v36 = vld [vmem:[%s1 + $0x60] sm:$0xff]
  %v37 = vld [vmem:[%s1 + $0x68] sm:$0xff]
  %v38 = vld [vmem:[%s1 + $0x70] sm:$0xff]
  %v39 = vld [vmem:[%s1 + $0x78] sm:$0xff]
  %v40 = vld [vmem:[%s1 + $0x80] sm:$0xff]
  %v41 = vld [vmem:[%s1 + $0x88] sm:$0xff]
  %v42 = vld [vmem:[%s1 + $0x90] sm:$0xff]
  %v43 = vld [vmem:[%s1 + $0x98] sm:$0xff]
  %v44 = vld [vmem:[%s1 + $0xa0] sm:$0xff]
  %v45 = vld [vmem:[%s1 + $0xa8] sm:$0xff]
  %v46 = vld [vmem:[%s1 + $0xb0] sm:$0xff]
  %v47 = vld [vmem:[%s1 + $0xb8] sm:$0xff]
  %v48 = vld [vmem:[%s1 + $0xc0] sm:$0xff]
  %v49 = vld [vmem:[%s1 + $0xc8] sm:$0xff]
  %v50 = vld [vmem:[%s1 + $0xd0] sm:$0xff]
  %v51 = vld [vmem:[%s1 + $0xd8] sm:$0xff]
  %v52 = vld [vmem:[%s1 + $0xe0] sm:$0xff]
  %v53 = vld [vmem:[%s1 + $0xe8] sm:$0xff]
  %v54 = vld [vmem:[%s1 + $0xf0] sm:$0xff]
  %v55 = vld [vmem:[%s1 + $0xf8] sm:$0xff]
  %v56 = vld [vmem:[%s1 + $0x100] sm:$0xff]
  %v57 = vld [vmem:[%s1 + $0x108] sm:$0xff]
  %v58 = vld [vmem:[%s1 + $0x110] sm:$0xff]
  %v59 = vld [vmem:[%s1 + $0x118] sm:$0xff]
  %v60 = vld [vmem:[%s1 + $0x120] sm:$0xff]
  %v61 = vld [vmem:[%s1 + $0x128] sm:$0xff]
  %v62 = vld [vmem:[%s1 + $0x130] sm:$0xff]
  %v63 = vld [vmem:[%s1 + $0x138] sm:$0xff]
  %v64 = vld [vmem:[%s1 + $0x140] sm:$0xff]
  %v65 = vld [vmem:[%s1 + $0x148] sm:$0xff]
  %v66 = vld [vmem:[%s1 + $0x150] sm:$0xff]
  %v67 = vld [vmem:[%s1 + $0x158] sm:$0xff]
  %v68 = vld [vmem:[%s1 + $0x160] sm:$0xff]
  %v69 = vld [vmem:[%s1 + $0x168] sm:$0xff]
  %v70 = vld [vmem:[%s1 + $0x170] sm:$0xff]
  %v71 = vld [vmem:[%s1 + $0x178] sm:$0xff]
  %v72 = vld [vmem:[%s1 + $0x180] sm:$0xff]
  %v73 = vld [vmem:[%s1 + $0x188] sm:$0xff]
  %v74 = vld [vmem:[%s1 + $0x190] sm:$0xff]
  %v75 = vld [vmem:[%s1 + $0x198] sm:$0xff]
  %v76 = vld [vmem:[%s1 + $0x1a0] sm:$0xff]
  %v77 = vld [vmem:[%s1 + $0x1a8] sm:$0xff]
  %v78 = vld [vmem:[%s1 + $0x1b0] sm:$0xff]
  %v79 = vld [vmem:[%s1 + $0x1b8] sm:$0xff]
  %v80 = vld [vmem:[%s1 + $0x1c0] sm:$0xff]
  %v81 = vld [vmem:[%s1 + $0x1c8] sm:$0xff]
  %v82 = vld [vmem:[%s1 + $0x1d0] sm:$0xff]
  %v83 = vld [vmem:[%s1 + $0x1d8] sm:$0xff]
  %v84 = vld [vmem:[%s1 + $0x1e0] sm:$0xff]
  %v85 = vld [vmem:[%s1 + $0x1e8] sm:$0xff]
  %v86 = vld [vmem:[%s1 + $0x1f0] sm:$0xff]
  %v87 = vld [vmem:[%s1 + $0x1f8] sm:$0xff]
  %v90 = vunpack.c.l.b16 %v22
  %v91 = vunpack.c.h.b16 %v22
  %v92 = vunpack.c.l.b16 %v23
  %v93 = vunpack.c.h.b16 %v23
  %v94 = vpack.c.b16 %v90, %v90
  %v95 = vpack.c.b16 %v91, %v91
  %v96 = vpack.c.b16 %v92, %v92
  %v97 = vpack.c.b16 %v93, %v93
  %v166 = vunpack.c.l.b16 %v24
  %v167 = vunpack.c.h.b16 %v24
  %v168 = vunpack.c.l.b16 %v25
  %v169 = vunpack.c.h.b16 %v25
  %v170 = vunpack.c.l.b16 %v26
  %v171 = vunpack.c.h.b16 %v26
  %v172 = vunpack.c.l.b16 %v27
  %v173 = vunpack.c.h.b16 %v27
  %v174 = vunpack.c.l.b16 %v28
  %v175 = vunpack.c.h.b16 %v28
  %v176 = vunpack.c.l.b16 %v29
  %v177 = vunpack.c.h.b16 %v29
  %v178 = vunpack.c.l.b16 %v30
  %v179 = vunpack.c.h.b16 %v30
  %v180 = vunpack.c.l.b16 %v31
  %v181 = vunpack.c.h.b16 %v31
  %v182 = vunpack.c.l.b16 %v32
  %v183 = vunpack.c.h.b16 %v32
  %v184 = vunpack.c.l.b16 %v33
  %v185 = vunpack.c.h.b16 %v33
  %v186 = vunpack.c.l.b16 %v34
  %v187 = vunpack.c.h.b16 %v34
  %v188 = vunpack.c.l.b16 %v35
  %v189 = vunpack.c.h.b16 %v35
  %v190 = vunpack.c.l.b16 %v36
  %v191 = vunpack.c.h.b16 %v36
  %v192 = vunpack.c.l.b16 %v37
  %v193 = vunpack.c.h.b16 %v37
  %v194 = vunpack.c.l.b16 %v38
  %v195 = vunpack.c.h.b16 %v38
  %v196 = vunpack.c.l.b16 %v39
  %v197 = vunpack.c.h.b16 %v39
  %v198 = vunpack.c.l.b16 %v40
  %v199 = vunpack.c.h.b16 %v40
  %v200 = vunpack.c.l.b16 %v41
  %v201 = vunpack.c.h.b16 %v41
  %v202 = vunpack.c.l.b16 %v42
  %v203 = vunpack.c.h.b16 %v42
  %v204 = vunpack.c.l.b16 %v43
  %v205 = vunpack.c.h.b16 %v43
  %v206 = vunpack.c.l.b16 %v44
  %v207 = vunpack.c.h.b16 %v44
  %v208 = vunpack.c.l.b16 %v45
  %v209 = vunpack.c.h.b16 %v45
  %v210 = vunpack.c.l.b16 %v46
  %v211 = vunpack.c.h.b16 %v46
  %v212 = vunpack.c.l.b16 %v47
  %v213 = vunpack.c.h.b16 %v47
  %v214 = vunpack.c.l.b16 %v48
  %v215 = vunpack.c.h.b16 %v48
  %v216 = vunpack.c.l.b16 %v49
  %v217 = vunpack.c.h.b16 %v49
  %v218 = vunpack.c.l.b16 %v50
  %v219 = vunpack.c.h.b16 %v50
  %v220 = vunpack.c.l.b16 %v51
  %v221 = vunpack.c.h.b16 %v51
  %v222 = vunpack.c.l.b16 %v52
  %v223 = vunpack.c.h.b16 %v52
  %v224 = vunpack.c.l.b16 %v53
  %v225 = vunpack.c.h.b16 %v53
  %v226 = vunpack.c.l.b16 %v54
  %v227 = vunpack.c.h.b16 %v54
  %v228 = vunpack.c.l.b16 %v55
  %v229 = vunpack.c.h.b16 %v55
  %v230 = vunpack.c.l.b16 %v56
  %v231 = vunpack.c.h.b16 %v56
  %v232 = vunpack.c.l.b16 %v57
  %v233 = vunpack.c.h.b16 %v57
  %v234 = vunpack.c.l.b16 %v58
  %v235 = vunpack.c.h.b16 %v58
  %v236 = vunpack.c.l.b16 %v59
  %v237 = vunpack.c.h.b16 %v59
  %v238 = vunpack.c.l.b16 %v60
  %v239 = vunpack.c.h.b16 %v60
  %v240 = vunpack.c.l.b16 %v61
  %v241 = vunpack.c.h.b16 %v61
  %v242 = vunpack.c.l.b16 %v62
  %v243 = vunpack.c.h.b16 %v62
  %v244 = vunpack.c.l.b16 %v63
  %v245 = vunpack.c.h.b16 %v63
  %v246 = vunpack.c.l.b16 %v64
  %v247 = vunpack.c.h.b16 %v64
  %v248 = vunpack.c.l.b16 %v65
  %v249 = vunpack.c.h.b16 %v65
  %v250 = vunpack.c.l.b16 %v66
  %v251 = vunpack.c.h.b16 %v66
  %v252 = vunpack.c.l.b16 %v67
  %v253 = vunpack.c.h.b16 %v67
  %v254 = vunpack.c.l.b16 %v68
  %v255 = vunpack.c.h.b16 %v68
  %v256 = vunpack.c.l.b16 %v69
  %v257 = vunpack.c.h.b16 %v69
  %v258 = vunpack.c.l.b16 %v70
  %v259 = vunpack.c.h.b16 %v70
  %v260 = vunpack.c.l.b16 %v71
  %v261 = vunpack.c.h.b16 %v71
  %v262 = vunpack.c.l.b16 %v72
  %v263 = vunpack.c.h.b16 %v72
  %v264 = vunpack.c.l.b16 %v73
  %v265 = vunpack.c.h.b16 %v73
  %v266 = vunpack.c.l.b16 %v74
  %v267 = vunpack.c.h.b16 %v74
  %v268 = vunpack.c.l.b16 %v75
  %v269 = vunpack.c.h.b16 %v75
  %v270 = vunpack.c.l.b16 %v76
  %v271 = vunpack.c.h.b16 %v76
  %v272 = vunpack.c.l.b16 %v77
  %v273 = vunpack.c.h.b16 %v77
  %v274 = vunpack.c.l.b16 %v78
  %v275 = vunpack.c.h.b16 %v78
  %v276 = vunpack.c.l.b16 %v79
  %v277 = vunpack.c.h.b16 %v79
  %v278 = vunpack.c.l.b16 %v80
  %v279 = vunpack.c.h.b16 %v80
  %v280 = vunpack.c.l.b16 %v81
  %v281 = vunpack.c.h.b16 %v81
  %v282 = vunpack.c.l.b16 %v82
  %v283 = vunpack.c.h.b16 %v82
  %v284 = vunpack.c.l.b16 %v83
  %v285 = vunpack.c.h.b16 %v83
  %v286 = vunpack.c.l.b16 %v84
  %v287 = vunpack.c.h.b16 %v84
  %v288 = vunpack.c.l.b16 %v85
  %v289 = vunpack.c.h.b16 %v85
  %v290 = vunpack.c.l.b16 %v86
  %v291 = vunpack.c.h.b16 %v86
  %v292 = vunpack.c.l.b16 %v87
  %v293 = vunpack.c.h.b16 %v87
  %v294 = vpack.c.b16 %v168, %v166
  %v295 = vpack.c.b16 %v169, %v167
  %v296 = vpack.c.b16 %v172, %v170
  %v297 = vpack.c.b16 %v173, %v171
  %v298 = vpack.c.b16 %v176, %v174
  %v299 = vpack.c.b16 %v177, %v175
  %v300 = vpack.c.b16 %v180, %v178
  %v301 = vpack.c.b16 %v181, %v179
  %v302 = vpack.c.b16 %v184, %v182
  %v303 = vpack.c.b16 %v185, %v183
  %v304 = vpack.c.b16 %v188, %v186
  %v305 = vpack.c.b16 %v189, %v187
  %v306 = vpack.c.b16 %v192, %v190
  %v307 = vpack.c.b16 %v193, %v191
  %v308 = vpack.c.b16 %v196, %v194
  %v309 = vpack.c.b16 %v197, %v195
  %v310 = vpack.c.b16 %v200, %v198
  %v311 = vpack.c.b16 %v201, %v199
  %v312 = vpack.c.b16 %v204, %v202
  %v313 = vpack.c.b16 %v205, %v203
  %v314 = vpack.c.b16 %v208, %v206
  %v315 = vpack.c.b16 %v209, %v207
  %v316 = vpack.c.b16 %v212, %v210
  %v317 = vpack.c.b16 %v213, %v211
  %v318 = vpack.c.b16 %v216, %v214
  %v319 = vpack.c.b16 %v217, %v215
  %v320 = vpack.c.b16 %v220, %v218
  %v321 = vpack.c.b16 %v221, %v219
  %v322 = vpack.c.b16 %v224, %v222
  %v323 = vpack.c.b16 %v225, %v223
  %v324 = vpack.c.b16 %v228, %v226
  %v325 = vpack.c.b16 %v229, %v227
  %v326 = vpack.c.b16 %v232, %v230
  %v327 = vpack.c.b16 %v233, %v231
  %v328 = vpack.c.b16 %v236, %v234
  %v329 = vpack.c.b16 %v237, %v235
  %v330 = vpack.c.b16 %v240, %v238
  %v331 = vpack.c.b16 %v241, %v239
  %v332 = vpack.c.b16 %v244, %v242
  %v333 = vpack.c.b16 %v245, %v243
  %v334 = vpack.c.b16 %v248, %v246
  %v335 = vpack.c.b16 %v249, %v247
  %v336 = vpack.c.b16 %v252, %v250
  %v337 = vpack.c.b16 %v253, %v251
  %v338 = vpack.c.b16 %v256, %v254
  %v339 = vpack.c.b16 %v257, %v255
  %v340 = vpack.c.b16 %v260, %v258
  %v341 = vpack.c.b16 %v261, %v259
  %v342 = vpack.c.b16 %v264, %v262
  %v343 = vpack.c.b16 %v265, %v263
  %v344 = vpack.c.b16 %v268, %v266
  %v345 = vpack.c.b16 %v269, %v267
  %v346 = vpack.c.b16 %v272, %v270
  %v347 = vpack.c.b16 %v273, %v271
  %v348 = vpack.c.b16 %v276, %v274
  %v349 = vpack.c.b16 %v277, %v275
  %v350 = vpack.c.b16 %v280, %v278
  %v351 = vpack.c.b16 %v281, %v279
  %v352 = vpack.c.b16 %v284, %v282
  %v353 = vpack.c.b16 %v285, %v283
  %v354 = vpack.c.b16 %v288, %v286
  %v355 = vpack.c.b16 %v289, %v287
  %v356 = vpack.c.b16 %v292, %v290
  %v357 = vpack.c.b16 %v293, %v291
  %422 = vmatprep.subr.bf16.mxu0 %v295
  %423 = vmatpush1.bf16.msra.mxu0 %v294
  %424 = vmatprep.subr.bf16.mxu0 %v297
  %425 = vmatpush1.bf16.msra.mxu0 %v296
  %426 = vmatprep.subr.bf16.mxu0 %v299
  %427 = vmatpush1.bf16.msra.mxu0 %v298
  %428 = vmatprep.subr.bf16.mxu0 %v301
  %429 = vmatpush1.bf16.msra.mxu0 %v300
  %430 = vmatprep.subr.bf16.mxu0 %v303
  %431 = vmatpush1.bf16.msra.mxu0 %v302
  %432 = vmatprep.subr.bf16.mxu0 %v305
  %433 = vmatpush1.bf16.msra.mxu0 %v304
  %434 = vmatprep.subr.bf16.mxu0 %v307
  %435 = vmatpush1.bf16.msra.mxu0 %v306
  %436 = vmatprep.subr.bf16.mxu0 %v309
  %437 = vmatpush1.bf16.msra.mxu0 %v308
  %438 = vmatprep.subr.bf16.mxu0 %v311
  %439 = vmatpush1.bf16.msra.mxu0 %v310
  %440 = vmatprep.subr.bf16.mxu0 %v313
  %441 = vmatpush1.bf16.msra.mxu0 %v312
  %442 = vmatprep.subr.bf16.mxu0 %v315
  %443 = vmatpush1.bf16.msra.mxu0 %v314
  %444 = vmatprep.subr.bf16.mxu0 %v317
  %445 = vmatpush1.bf16.msra.mxu0 %v316
  %446 = vmatprep.subr.bf16.mxu0 %v319
  %447 = vmatpush1.bf16.msra.mxu0 %v318
  %448 = vmatprep.subr.bf16.mxu0 %v321
  %449 = vmatpush1.bf16.msra.mxu0 %v320
  %450 = vmatprep.subr.bf16.mxu0 %v323
  %451 = vmatpush1.bf16.msra.mxu0 %v322
  %452 = vmatprep.subr.bf16.mxu0 %v325
  %453 = vmatpush1.bf16.msra.mxu0 %v324
  %454 = vmatprep.mubr.bf16.mxu0 %v95
  %455 = vmatmul.mubr.bf16.gmra.mrb[0].mxu0 %v94
  %v456 = vpop.f32.mrb[0].mxu0
  %v457 = vadd.f32 0.0, %v456
  %v458 = vpop.f32.mrb[0].mxu0
  %v459 = vadd.f32 0.0, %v458
  %v460 = vpop.f32.mrb[0].mxu0
  %v461 = vpop.f32.mrb[0].mxu0
  %462 = vdwg.mxu0
  %463 = vmatprep.subr.bf16.mxu0 %v327
  %464 = vmatpush1.bf16.msra.mxu0 %v326
  %465 = vmatprep.subr.bf16.mxu0 %v329
  %466 = vmatpush1.bf16.msra.mxu0 %v328
  %467 = vmatprep.subr.bf16.mxu0 %v331
  %468 = vmatpush1.bf16.msra.mxu0 %v330
  %469 = vmatprep.subr.bf16.mxu0 %v333
  %470 = vmatpush1.bf16.msra.mxu0 %v332
  %471 = vmatprep.subr.bf16.mxu0 %v335
  %472 = vmatpush1.bf16.msra.mxu0 %v334
  %473 = vmatprep.subr.bf16.mxu0 %v337
  %474 = vmatpush1.bf16.msra.mxu0 %v336
  %475 = vmatprep.subr.bf16.mxu0 %v339
  %476 = vmatpush1.bf16.msra.mxu0 %v338
  %477 = vmatprep.subr.bf16.mxu0 %v341
  %478 = vmatpush1.bf16.msra.mxu0 %v340
  %479 = vmatprep.subr.bf16.mxu0 %v343
  %480 = vmatpush1.bf16.msra.mxu0 %v342
  %481 = vmatprep.subr.bf16.mxu0 %v345
  %482 = vmatpush1.bf16.msra.mxu0 %v344
  %483 = vmatprep.subr.bf16.mxu0 %v347
  %484 = vmatpush1.bf16.msra.mxu0 %v346
  %485 = vmatprep.subr.bf16.mxu0 %v349
  %486 = vmatpush1.bf16.msra.mxu0 %v348
  %487 = vmatprep.subr.bf16.mxu0 %v351
  %488 = vmatpush1.bf16.msra.mxu0 %v350
  %489 = vmatprep.subr.bf16.mxu0 %v353
  %490 = vmatpush1.bf16.msra.mxu0 %v352
  %491 = vmatprep.subr.bf16.mxu0 %v355
  %492 = vmatpush1.bf16.msra.mxu0 %v354
  %493 = vmatprep.subr.bf16.mxu0 %v357
  %494 = vmatpush1.bf16.msra.mxu0 %v356
  %495 = vmatprep.mubr.bf16.mxu0 %v97
  %496 = vmatmul.mubr.bf16.gmra.mrb[0].mxu0 %v96
  %v497 = vpop.f32.mrb[0].mxu0
  %v498 = vadd.f32 %v457, %v497
  %v499 = vpop.f32.mrb[0].mxu0
  %v500 = vadd.f32 %v459, %v499
  %v501 = vpop.f32.mrb[0].mxu0
  %v502 = vpop.f32.mrb[0].mxu0
  %503 = vdwg.mxu0
  %v504 = vadd.f32 %v20, %v498
  %v505 = vadd.f32 %v21, %v500
  %506 = vst [vmem:[#allocation2] sm:$0xff] %v504
  %507 = vst [vmem:[#allocation2 + $0x8] sm:$0xff] %v505
  // Predicated region
  $region18: #{vae_forward.13} parent=0 // pred_check
    %p508 = pneg %p14
  $region19: #{vae_forward.13} parent=0 // pred_check_branch
    %510 = sbr.rel (%p508) target = $region21
  $region20: #{vae_forward.13} parent=0 // pred_region
    %v511 = vld [vmem:[#allocation2] sm:$0xff]
    %v512 = vld [vmem:[#allocation2 + $0x8] sm:$0xff]
    %v513 = vld [vmem:[%s2] sm:$0x3]
    %v515 = vlaneseq
    %v516 = vshrl.u32 %v515, 7
    %v517 = vsub.s32 0, %v516
    %v518 = vrot.slane %v513, %v517
    %v519 = vlaneseq
    %v520 = vshrl.u32 %v519, 7
    %v521 = vsub.s32 1, %v520
    %v522 = vrot.slane %v513, %v521
    %v525 = vadd.f32 %v511, %v518
    %v526 = vadd.f32 %v512, %v522
    %v527 = vmax.f32 %v525, 0.0
    %v528 = vmax.f32 %v526, 0.0
    %v529 = vpack.c.bf16 %v527, %v527
    %v530 = vpack.c.bf16 %v528, %v528
    %v533 = vunpack.c.l.b16 %v529
    %v534 = vunpack.c.l.b16 %v530
    %v535 = vpack.c.b16 %v534, %v533
    %537 = vst [vmem:[%s3] sm:$0xff] %v535
  $region21: #{vae_forward.13} parent=0 // pred_fallthru
    _
  // Predicated region
  $region22: #{vae_forward.13} parent=0 // pred_check
    _
  $region23: #{vae_forward.13} parent=0 // pred_check_branch
    %539 = sbr.rel (0) target = $region25
  $region24: #{vae_forward.13} parent=0 // pred_region
    _
  $region25: #{vae_forward.13} parent=0 // pred_fallthru
    _
  // Predicated region
  $region26: #{vae_forward.13} parent=0 // pred_check
    _
  $region27: #{vae_forward.13} parent=0 // pred_check_branch
    %541 = sbr.rel (0) target = $region29
  $region28: #{vae_forward.13} parent=0 // pred_region
    _
  $region29: #{vae_forward.13} parent=0 // pred_fallthru
    _

// kernel: vae_forward.14
$region0: #{vae_forward.14}
  #allocation0 [shape = 'u32[]', space=smem, size = 0x4, offset = 0x4, fixed_abs, tag = 'smem constant byte address 0x4 - core index']
  #allocation1 [shape = 'u32[144,128]{1,0:T(1,128)}', space=vmem, size = 0x12000, scoped, tag = 'internal scratch']
  #allocation2 [shape = 'f32[32,128]{1,0:T(8,128)}', space=vmem, size = 0x4000, scoped, tag = 'scratch operand']
  %s0 = inlined_call_operand.vmem [shape: bf16[32,256], index: 0, kind: input, shape index: {}]
  %s1 = inlined_call_operand.vmem [shape: bf16[256,128], index: 1, kind: input, shape index: {}]
  %s2 = inlined_call_operand.vmem [shape: f32[1,128], index: 2, kind: input, shape index: {}]
  %s3 = inlined_call_operand.vmem [shape: bf16[32,128], index: 3, kind: output, shape index: {}]
  %s4 = sld [smem:[#allocation0]]
  $region30: #{vae_forward.14} parent=0
    _
  %s6 = ssub.s32 1, %s4
  %s7 = scalar_select 0, %s6, %s4
  // Predicated region
  $region2: #{vae_forward.14} parent=0 // pred_check
    _
  $region3: #{vae_forward.14} parent=0 // pred_check_branch
    %9 = sbr.rel (0) target = $region5
  $region4: #{vae_forward.14} parent=0 // pred_region
    _
  $region5: #{vae_forward.14} parent=0 // pred_fallthru
    _
  // Predicated region
  $region6: #{vae_forward.14} parent=0 // pred_check
    _
  $region7: #{vae_forward.14} parent=0 // pred_check_branch
    %11 = sbr.rel (0) target = $region9
  $region8: #{vae_forward.14} parent=0 // pred_region
    _
  $region9: #{vae_forward.14} parent=0 // pred_fallthru
    _
  // Predicated region
  $region10: #{vae_forward.14} parent=0 // pred_check
    _
  $region11: #{vae_forward.14} parent=0 // pred_check_branch
    %13 = sbr.rel (0) target = $region13
  $region12: #{vae_forward.14} parent=0 // pred_region
    _
  $region13: #{vae_forward.14} parent=0 // pred_fallthru
    _
  %p15 = scmp.eq.s32.totalorder 0, 0
  // Predicated region
  $region14: #{vae_forward.14} parent=0 // pred_check
    %p16 = pneg %p15
  $region15: #{vae_forward.14} parent=0 // pred_check_branch
    %18 = sbr.rel (%p16) target = $region17
  $region16: #{vae_forward.14} parent=0 // pred_region
    %19 = vst [vmem:[#allocation2] sm:$0xff] 0.0
    %20 = vst [vmem:[#allocation2 + $0x8] sm:$0xff] 0.0
    %21 = vst [vmem:[#allocation2 + $0x10] sm:$0xff] 0.0
    %22 = vst [vmem:[#allocation2 + $0x18] sm:$0xff] 0.0
  $region17: #{vae_forward.14} parent=0 // pred_fallthru
    _
  %v23 = vld [vmem:[#allocation2] sm:$0xff]
  %v24 = vld [vmem:[#allocation2 + $0x8] sm:$0xff]
  %v25 = vld [vmem:[#allocation2 + $0x10] sm:$0xff]
  %v26 = vld [vmem:[#allocation2 + $0x18] sm:$0xff]
  %v27 = vld [vmem:[%s0] sm:$0xff]
  %v28 = vld [vmem:[%s0 + $0x8] sm:$0xff]
  %v29 = vld [vmem:[%s0 + $0x10] sm:$0xff]
  %v30 = vld [vmem:[%s0 + $0x18] sm:$0xff]
  %v31 = vld [vmem:[%s1] sm:$0xf]
  %v32 = vld [vmem:[%s1 + $0x4] sm:$0xf]
  %v33 = vld [vmem:[%s1 + $0x8] sm:$0xf]
  %v34 = vld [vmem:[%s1 + $0xc] sm:$0xf]
  %v35 = vld [vmem:[%s1 + $0x10] sm:$0xf]
  %v36 = vld [vmem:[%s1 + $0x14] sm:$0xf]
  %v37 = vld [vmem:[%s1 + $0x18] sm:$0xf]
  %v38 = vld [vmem:[%s1 + $0x1c] sm:$0xf]
  %v39 = vld [vmem:[%s1 + $0x20] sm:$0xf]
  %v40 = vld [vmem:[%s1 + $0x24] sm:$0xf]
  %v41 = vld [vmem:[%s1 + $0x28] sm:$0xf]
  %v42 = vld [vmem:[%s1 + $0x2c] sm:$0xf]
  %v43 = vld [vmem:[%s1 + $0x30] sm:$0xf]
  %v44 = vld [vmem:[%s1 + $0x34] sm:$0xf]
  %v45 = vld [vmem:[%s1 + $0x38] sm:$0xf]
  %v46 = vld [vmem:[%s1 + $0x3c] sm:$0xf]
  %v47 = vld [vmem:[%s1 + $0x40] sm:$0xf]
  %v48 = vld [vmem:[%s1 + $0x44] sm:$0xf]
  %v49 = vld [vmem:[%s1 + $0x48] sm:$0xf]
  %v50 = vld [vmem:[%s1 + $0x4c] sm:$0xf]
  %v51 = vld [vmem:[%s1 + $0x50] sm:$0xf]
  %v52 = vld [vmem:[%s1 + $0x54] sm:$0xf]
  %v53 = vld [vmem:[%s1 + $0x58] sm:$0xf]
  %v54 = vld [vmem:[%s1 + $0x5c] sm:$0xf]
  %v55 = vld [vmem:[%s1 + $0x60] sm:$0xf]
  %v56 = vld [vmem:[%s1 + $0x64] sm:$0xf]
  %v57 = vld [vmem:[%s1 + $0x68] sm:$0xf]
  %v58 = vld [vmem:[%s1 + $0x6c] sm:$0xf]
  %v59 = vld [vmem:[%s1 + $0x70] sm:$0xf]
  %v60 = vld [vmem:[%s1 + $0x74] sm:$0xf]
  %v61 = vld [vmem:[%s1 + $0x78] sm:$0xf]
  %v62 = vld [vmem:[%s1 + $0x7c] sm:$0xf]
  %v67 = vunpack.c.l.b16 %v27
  %v68 = vunpack.c.h.b16 %v27
  %v69 = vunpack.c.l.b16 %v28
  %v70 = vunpack.c.h.b16 %v28
  %v71 = vunpack.c.l.b16 %v29
  %v72 = vunpack.c.h.b16 %v29
  %v73 = vunpack.c.l.b16 %v30
  %v74 = vunpack.c.h.b16 %v30
  %v75 = vpack.c.b16 %v69, %v67
  %v76 = vpack.c.b16 %v70, %v68
  %v77 = vpack.c.b16 %v73, %v71
  %v78 = vpack.c.b16 %v74, %v72
  %v115 = vunpack.c.l.b16 %v31
  %v116 = vunpack.c.l.b16 %v32
  %v117 = vunpack.c.l.b16 %v33
  %v118 = vunpack.c.l.b16 %v34
  %v119 = vunpack.c.l.b16 %v35
  %v120 = vunpack.c.l.b16 %v36
  %v121 = vunpack.c.l.b16 %v37
  %v122 = vunpack.c.l.b16 %v38
  %v123 = vunpack.c.l.b16 %v39
  %v124 = vunpack.c.l.b16 %v40
  %v125 = vunpack.c.l.b16 %v41
  %v126 = vunpack.c.l.b16 %v42
  %v127 = vunpack.c.l.b16 %v43
  %v128 = vunpack.c.l.b16 %v44
  %v129 = vunpack.c.l.b16 %v45
  %v130 = vunpack.c.l.b16 %v46
  %v131 = vunpack.c.l.b16 %v47
  %v132 = vunpack.c.l.b16 %v48
  %v133 = vunpack.c.l.b16 %v49
  %v134 = vunpack.c.l.b16 %v50
  %v135 = vunpack.c.l.b16 %v51
  %v136 = vunpack.c.l.b16 %v52
  %v137 = vunpack.c.l.b16 %v53
  %v138 = vunpack.c.l.b16 %v54
  %v139 = vunpack.c.l.b16 %v55
  %v140 = vunpack.c.l.b16 %v56
  %v141 = vunpack.c.l.b16 %v57
  %v142 = vunpack.c.l.b16 %v58
  %v143 = vunpack.c.l.b16 %v59
  %v144 = vunpack.c.l.b16 %v60
  %v145 = vunpack.c.l.b16 %v61
  %v146 = vunpack.c.l.b16 %v62
  %v147 = vpack.c.b16 %v116, %v115
  %v148 = vpack.c.b16 %v118, %v117
  %v149 = vpack.c.b16 %v120, %v119
  %v150 = vpack.c.b16 %v122, %v121
  %v151 = vpack.c.b16 %v124, %v123
  %v152 = vpack.c.b16 %v126, %v125
  %v153 = vpack.c.b16 %v128, %v127
  %v154 = vpack.c.b16 %v130, %v129
  %v155 = vpack.c.b16 %v132, %v131
  %v156 = vpack.c.b16 %v134, %v133
  %v157 = vpack.c.b16 %v136, %v135
  %v158 = vpack.c.b16 %v138, %v137
  %v159 = vpack.c.b16 %v140, %v139
  %v160 = vpack.c.b16 %v142, %v141
  %v161 = vpack.c.b16 %v144, %v143
  %v162 = vpack.c.b16 %v146, %v145
  %179 = vmatprep.subr.bf16.mxu0 0
  %180 = vmatpush1.bf16.msra.mxu0 %v147
  %181 = vmatprep.subr.bf16.mxu0 0
  %182 = vmatpush1.bf16.msra.mxu0 %v148
  %183 = vmatprep.subr.bf16.mxu0 0
  %184 = vmatpush1.bf16.msra.mxu0 %v149
  %185 = vmatprep.subr.bf16.mxu0 0
  %186 = vmatpush1.bf16.msra.mxu0 %v150
  %187 = vmatprep.subr.bf16.mxu0 0
  %188 = vmatpush1.bf16.msra.mxu0 %v151
  %189 = vmatprep.subr.bf16.mxu0 0
  %190 = vmatpush1.bf16.msra.mxu0 %v152
  %191 = vmatprep.subr.bf16.mxu0 0
  %192 = vmatpush1.bf16.msra.mxu0 %v153
  %193 = vmatprep.subr.bf16.mxu0 0
  %194 = vmatpush1.bf16.msra.mxu0 %v154
  %195 = vmatprep.subr.bf16.mxu0 0
  %196 = vmatpush1.bf16.msra.mxu0 %v155
  %197 = vmatprep.subr.bf16.mxu0 0
  %198 = vmatpush1.bf16.msra.mxu0 %v156
  %199 = vmatprep.subr.bf16.mxu0 0
  %200 = vmatpush1.bf16.msra.mxu0 %v157
  %201 = vmatprep.subr.bf16.mxu0 0
  %202 = vmatpush1.bf16.msra.mxu0 %v158
  %203 = vmatprep.subr.bf16.mxu0 0
  %204 = vmatpush1.bf16.msra.mxu0 %v159
  %205 = vmatprep.subr.bf16.mxu0 0
  %206 = vmatpush1.bf16.msra.mxu0 %v160
  %207 = vmatprep.subr.bf16.mxu0 0
  %208 = vmatpush1.bf16.msra.mxu0 %v161
  %209 = vmatprep.subr.bf16.mxu0 0
  %210 = vmatpush1.bf16.msra.mxu0 %v162
  %211 = vmatprep.mubr.bf16.mxu0 %v76
  %212 = vmatmul.mubr.bf16.gmra.mrb[0].mxu0 %v75
  %v213 = vpop.f32.mrb[0].mxu0
  %v214 = vadd.f32 0.0, %v213
  %v215 = vpop.f32.mrb[0].mxu0
  %v216 = vpop.f32.mrb[0].mxu0
  %v217 = vadd.f32 0.0, %v216
  %v218 = vpop.f32.mrb[0].mxu0
  %219 = vmatprep.mubr.bf16.mxu0 %v78
  %220 = vmatmul.mubr.bf16.gmra.mrb[0].mxu0 %v77
  %v221 = vpop.f32.mrb[0].mxu0
  %v222 = vadd.f32 0.0, %v221
  %v223 = vpop.f32.mrb[0].mxu0
  %v224 = vpop.f32.mrb[0].mxu0
  %v225 = vadd.f32 0.0, %v224
  %v226 = vpop.f32.mrb[0].mxu0
  %227 = vdwg.mxu0
  %v228 = vadd.f32 %v23, %v214
  %v229 = vadd.f32 %v24, %v217
  %v230 = vadd.f32 %v25, %v222
  %v231 = vadd.f32 %v26, %v225
  %232 = vst [vmem:[#allocation2] sm:$0xff] %v228
  %233 = vst [vmem:[#allocation2 + $0x8] sm:$0xff] %v229
  %234 = vst [vmem:[#allocation2 + $0x10] sm:$0xff] %v230
  %235 = vst [vmem:[#allocation2 + $0x18] sm:$0xff] %v231
  // Predicated region
  $region18: #{vae_forward.14} parent=0 // pred_check
    %p236 = pneg %p15
  $region19: #{vae_forward.14} parent=0 // pred_check_branch
    %238 = sbr.rel (%p236) target = $region21
  $region20: #{vae_forward.14} parent=0 // pred_region
    %v239 = vld [vmem:[#allocation2] sm:$0xff]
    %v240 = vld [vmem:[#allocation2 + $0x8] sm:$0xff]
    %v241 = vld [vmem:[#allocation2 + $0x10] sm:$0xff]
    %v242 = vld [vmem:[#allocation2 + $0x18] sm:$0xff]
    %v243 = vld [vmem:[%s2] sm:$0x1]
    %v245 = vlaneseq
    %v246 = vshrl.u32 %v245, 7
    %v247 = vsub.s32 0, %v246
    %v248 = vrot.slane %v243, %v247
    %v250 = vadd.f32 %v239, %v248
    %v251 = vadd.f32 %v240, %v248
    %v252 = vadd.f32 %v241, %v248
    %v253 = vadd.f32 %v242, %v248
    %v254 = vmax.f32 %v250, 0.0
    %v255 = vmax.f32 %v251, 0.0
    %v256 = vmax.f32 %v252, 0.0
    %v257 = vmax.f32 %v253, 0.0
    %v258 = vpack.c.bf16 %v255, %v254
    %v259 = vpack.c.bf16 %v257, %v256
    %v262 = vunpack.c.l.b16 %v258
    %v263 = vunpack.c.h.b16 %v258
    %v264 = vunpack.c.l.b16 %v259
    %v265 = vunpack.c.h.b16 %v259
    %v266 = vpack.c.b16 %v262, %v262
    %v267 = vpack.c.b16 %v263, %v263
    %v268 = vpack.c.b16 %v264, %v264
    %v269 = vpack.c.b16 %v265, %v265
    %274 = vst [vmem:[%s3] sm:$0xf] %v266
    %275 = vst [vmem:[%s3 + $0x4] sm:$0xf] %v267
    %276 = vst [vmem:[%s3 + $0x8] sm:$0xf] %v268
    %277 = vst [vmem:[%s3 + $0xc] sm:$0xf] %v269
  $region21: #{vae_forward.14} parent=0 // pred_fallthru
    _
  // Predicated region
  $region22: #{vae_forward.14} parent=0 // pred_check
    _
  $region23: #{vae_forward.14} parent=0 // pred_check_branch
    %279 = sbr.rel (0) target = $region25
  $region24: #{vae_forward.14} parent=0 // pred_region
    _
  $region25: #{vae_forward.14} parent=0 // pred_fallthru
    _
  // Predicated region
  $region26: #{vae_forward.14} parent=0 // pred_check
    _
  $region27: #{vae_forward.14} parent=0 // pred_check_branch
    %281 = sbr.rel (0) target = $region29
  $region28: #{vae_forward.14} parent=0 // pred_region
    _
  $region29: #{vae_forward.14} parent=0 // pred_fallthru
    _

// kernel: vae_forward.15
$region0: #{vae_forward.15}
  #allocation0 [shape = 'u32[]', space=smem, size = 0x4, offset = 0x4, fixed_abs, tag = 'smem constant byte address 0x4 - core index']
  #allocation1 [shape = 'u32[144,128]{1,0:T(1,128)}', space=vmem, size = 0x12000, scoped, tag = 'internal scratch']
  #allocation2 [shape = 'f32[128,128]{1,0:T(8,128)}', space=vmem, size = 0x10000, scoped, tag = 'scratch operand']
  %s0 = inlined_call_operand.vmem [shape: bf16[128,128], index: 0, kind: input, shape index: {}]
  %s1 = inlined_call_operand.vmem [shape: bf16[128,128], index: 1, kind: input, shape index: {}]
  %s2 = inlined_call_operand.vmem [shape: f32[1,128], index: 2, kind: input, shape index: {}]
  %s3 = inlined_call_operand.vmem [shape: f32[128,128], index: 3, kind: output, shape index: {}]
  %s4 = sld [smem:[#allocation0]]
  $region30: #{vae_forward.15} parent=0
    _
  %s6 = ssub.s32 1, %s4
  %s7 = scalar_select 0, %s6, %s4
  // Predicated region
  $region2: #{vae_forward.15} parent=0 // pred_check
    _
  $region3: #{vae_forward.15} parent=0 // pred_check_branch
    %9 = sbr.rel (0) target = $region5
  $region4: #{vae_forward.15} parent=0 // pred_region
    _
  $region5: #{vae_forward.15} parent=0 // pred_fallthru
    _
  // Predicated region
  $region6: #{vae_forward.15} parent=0 // pred_check
    _
  $region7: #{vae_forward.15} parent=0 // pred_check_branch
    %11 = sbr.rel (0) target = $region9
  $region8: #{vae_forward.15} parent=0 // pred_region
    _
  $region9: #{vae_forward.15} parent=0 // pred_fallthru
    _
  // Predicated region
  $region10: #{vae_forward.15} parent=0 // pred_check
    _
  $region11: #{vae_forward.15} parent=0 // pred_check_branch
    %13 = sbr.rel (0) target = $region13
  $region12: #{vae_forward.15} parent=0 // pred_region
    _
  $region13: #{vae_forward.15} parent=0 // pred_fallthru
    _
  %p15 = scmp.eq.s32.totalorder 0, 0
  // Predicated region
  $region14: #{vae_forward.15} parent=0 // pred_check
    %p16 = pneg %p15
  $region15: #{vae_forward.15} parent=0 // pred_check_branch
    %18 = sbr.rel (%p16) target = $region17
  $region16: #{vae_forward.15} parent=0 // pred_region
    %19 = vst [vmem:[#allocation2] sm:$0xff] 0.0
    %20 = vst [vmem:[#allocation2 + $0x8] sm:$0xff] 0.0
    %21 = vst [vmem:[#allocation2 + $0x10] sm:$0xff] 0.0
    %22 = vst [vmem:[#allocation2 + $0x18] sm:$0xff] 0.0
    %23 = vst [vmem:[#allocation2 + $0x20] sm:$0xff] 0.0
    %24 = vst [vmem:[#allocation2 + $0x28] sm:$0xff] 0.0
    %25 = vst [vmem:[#allocation2 + $0x30] sm:$0xff] 0.0
    %26 = vst [vmem:[#allocation2 + $0x38] sm:$0xff] 0.0
    %27 = vst [vmem:[#allocation2 + $0x40] sm:$0xff] 0.0
    %28 = vst [vmem:[#allocation2 + $0x48] sm:$0xff] 0.0
    %29 = vst [vmem:[#allocation2 + $0x50] sm:$0xff] 0.0
    %30 = vst [vmem:[#allocation2 + $0x58] sm:$0xff] 0.0
    %31 = vst [vmem:[#allocation2 + $0x60] sm:$0xff] 0.0
    %32 = vst [vmem:[#allocation2 + $0x68] sm:$0xff] 0.0
    %33 = vst [vmem:[#allocation2 + $0x70] sm:$0xff] 0.0
    %34 = vst [vmem:[#allocation2 + $0x78] sm:$0xff] 0.0
  $region17: #{vae_forward.15} parent=0 // pred_fallthru
    _
  %v35 = vld [vmem:[#allocation2] sm:$0xff]
  %v36 = vld [vmem:[#allocation2 + $0x8] sm:$0xff]
  %v37 = vld [vmem:[#allocation2 + $0x10] sm:$0xff]
  %v38 = vld [vmem:[#allocation2 + $0x18] sm:$0xff]
  %v39 = vld [vmem:[#allocation2 + $0x20] sm:$0xff]
  %v40 = vld [vmem:[#allocation2 + $0x28] sm:$0xff]
  %v41 = vld [vmem:[#allocation2 + $0x30] sm:$0xff]
  %v42 = vld [vmem:[#allocation2 + $0x38] sm:$0xff]
  %v43 = vld [vmem:[#allocation2 + $0x40] sm:$0xff]
  %v44 = vld [vmem:[#allocation2 + $0x48] sm:$0xff]
  %v45 = vld [vmem:[#allocation2 + $0x50] sm:$0xff]
  %v46 = vld [vmem:[#allocation2 + $0x58] sm:$0xff]
  %v47 = vld [vmem:[#allocation2 + $0x60] sm:$0xff]
  %v48 = vld [vmem:[#allocation2 + $0x68] sm:$0xff]
  %v49 = vld [vmem:[#allocation2 + $0x70] sm:$0xff]
  %v50 = vld [vmem:[#allocation2 + $0x78] sm:$0xff]
  %v51 = vld [vmem:[%s0] sm:$0xf]
  %v52 = vld [vmem:[%s0 + $0x4] sm:$0xf]
  %v53 = vld [vmem:[%s0 + $0x8] sm:$0xf]
  %v54 = vld [vmem:[%s0 + $0xc] sm:$0xf]
  %v55 = vld [vmem:[%s0 + $0x10] sm:$0xf]
  %v56 = vld [vmem:[%s0 + $0x14] sm:$0xf]
  %v57 = vld [vmem:[%s0 + $0x18] sm:$0xf]
  %v58 = vld [vmem:[%s0 + $0x1c] sm:$0xf]
  %v59 = vld [vmem:[%s0 + $0x20] sm:$0xf]
  %v60 = vld [vmem:[%s0 + $0x24] sm:$0xf]
  %v61 = vld [vmem:[%s0 + $0x28] sm:$0xf]
  %v62 = vld [vmem:[%s0 + $0x2c] sm:$0xf]
  %v63 = vld [vmem:[%s0 + $0x30] sm:$0xf]
  %v64 = vld [vmem:[%s0 + $0x34] sm:$0xf]
  %v65 = vld [vmem:[%s0 + $0x38] sm:$0xf]
  %v66 = vld [vmem:[%s0 + $0x3c] sm:$0xf]
  %v67 = vld [vmem:[%s1] sm:$0xf]
  %v68 = vld [vmem:[%s1 + $0x4] sm:$0xf]
  %v69 = vld [vmem:[%s1 + $0x8] sm:$0xf]
  %v70 = vld [vmem:[%s1 + $0xc] sm:$0xf]
  %v71 = vld [vmem:[%s1 + $0x10] sm:$0xf]
  %v72 = vld [vmem:[%s1 + $0x14] sm:$0xf]
  %v73 = vld [vmem:[%s1 + $0x18] sm:$0xf]
  %v74 = vld [vmem:[%s1 + $0x1c] sm:$0xf]
  %v75 = vld [vmem:[%s1 + $0x20] sm:$0xf]
  %v76 = vld [vmem:[%s1 + $0x24] sm:$0xf]
  %v77 = vld [vmem:[%s1 + $0x28] sm:$0xf]
  %v78 = vld [vmem:[%s1 + $0x2c] sm:$0xf]
  %v79 = vld [vmem:[%s1 + $0x30] sm:$0xf]
  %v80 = vld [vmem:[%s1 + $0x34] sm:$0xf]
  %v81 = vld [vmem:[%s1 + $0x38] sm:$0xf]
  %v82 = vld [vmem:[%s1 + $0x3c] sm:$0xf]
  %v99 = vunpack.c.l.b16 %v51
  %v100 = vunpack.c.l.b16 %v52
  %v101 = vunpack.c.l.b16 %v53
  %v102 = vunpack.c.l.b16 %v54
  %v103 = vunpack.c.l.b16 %v55
  %v104 = vunpack.c.l.b16 %v56
  %v105 = vunpack.c.l.b16 %v57
  %v106 = vunpack.c.l.b16 %v58
  %v107 = vunpack.c.l.b16 %v59
  %v108 = vunpack.c.l.b16 %v60
  %v109 = vunpack.c.l.b16 %v61
  %v110 = vunpack.c.l.b16 %v62
  %v111 = vunpack.c.l.b16 %v63
  %v112 = vunpack.c.l.b16 %v64
  %v113 = vunpack.c.l.b16 %v65
  %v114 = vunpack.c.l.b16 %v66
  %v115 = vpack.c.b16 %v100, %v99
  %v116 = vpack.c.b16 %v102, %v101
  %v117 = vpack.c.b16 %v104, %v103
  %v118 = vpack.c.b16 %v106, %v105
  %v119 = vpack.c.b16 %v108, %v107
  %v120 = vpack.c.b16 %v110, %v109
  %v121 = vpack.c.b16 %v112, %v111
  %v122 = vpack.c.b16 %v114, %v113
  %v147 = vunpack.c.l.b16 %v67
  %v148 = vunpack.c.l.b16 %v68
  %v149 = vunpack.c.l.b16 %v69
  %v150 = vunpack.c.l.b16 %v70
  %v151 = vunpack.c.l.b16 %v71
  %v152 = vunpack.c.l.b16 %v72
  %v153 = vunpack.c.l.b16 %v73
  %v154 = vunpack.c.l.b16 %v74
  %v155 = vunpack.c.l.b16 %v75
  %v156 = vunpack.c.l.b16 %v76
  %v157 = vunpack.c.l.b16 %v77
  %v158 = vunpack.c.l.b16 %v78
  %v159 = vunpack.c.l.b16 %v79
  %v160 = vunpack.c.l.b16 %v80
  %v161 = vunpack.c.l.b16 %v81
  %v162 = vunpack.c.l.b16 %v82
  %v163 = vpack.c.b16 %v148, %v147
  %v164 = vpack.c.b16 %v150, %v149
  %v165 = vpack.c.b16 %v152, %v151
  %v166 = vpack.c.b16 %v154, %v153
  %v167 = vpack.c.b16 %v156, %v155
  %v168 = vpack.c.b16 %v158, %v157
  %v169 = vpack.c.b16 %v160, %v159
  %v170 = vpack.c.b16 %v162, %v161
  %179 = vmatprep.subr.bf16.mxu0 0
  %180 = vmatpush1.bf16.msra.mxu0 %v163
  %181 = vmatprep.subr.bf16.mxu0 0
  %182 = vmatpush1.bf16.msra.mxu0 %v164
  %183 = vmatprep.subr.bf16.mxu0 0
  %184 = vmatpush1.bf16.msra.mxu0 %v165
  %185 = vmatprep.subr.bf16.mxu0 0
  %186 = vmatpush1.bf16.msra.mxu0 %v166
  %187 = vmatprep.subr.bf16.mxu0 0
  %188 = vmatpush1.bf16.msra.mxu0 %v167
  %189 = vmatprep.subr.bf16.mxu0 0
  %190 = vmatpush1.bf16.msra.mxu0 %v168
  %191 = vmatprep.subr.bf16.mxu0 0
  %192 = vmatpush1.bf16.msra.mxu0 %v169
  %193 = vmatprep.subr.bf16.mxu0 0
  %194 = vmatpush1.bf16.msra.mxu0 %v170
  %195 = vmatprep.subr.bf16.mxu0 0
  %196 = vmatpush1.bf16.msra.mxu0 0
  %197 = vmatprep.subr.bf16.mxu0 0
  %198 = vmatpush1.bf16.msra.mxu0 0
  %199 = vmatprep.subr.bf16.mxu0 0
  %200 = vmatpush1.bf16.msra.mxu0 0
  %201 = vmatprep.subr.bf16.mxu0 0
  %202 = vmatpush1.bf16.msra.mxu0 0
  %203 = vmatprep.subr.bf16.mxu0 0
  %204 = vmatpush1.bf16.msra.mxu0 0
  %205 = vmatprep.subr.bf16.mxu0 0
  %206 = vmatpush1.bf16.msra.mxu0 0
  %207 = vmatprep.subr.bf16.mxu0 0
  %208 = vmatpush1.bf16.msra.mxu0 0
  %209 = vmatprep.subr.bf16.mxu0 0
  %210 = vmatpush1.bf16.msra.mxu0 0
  %211 = vmatprep.mubr.bf16.mxu0 0
  %212 = vmatmul.mubr.bf16.gmra.mrb[0].mxu0 %v115
  %v213 = vpop.f32.mrb[0].mxu0
  %v214 = vadd.f32 0.0, %v213
  %v215 = vpop.f32.mrb[0].mxu0
  %v216 = vpop.f32.mrb[0].mxu0
  %v217 = vadd.f32 0.0, %v216
  %v218 = vpop.f32.mrb[0].mxu0
  %219 = vmatprep.mubr.bf16.mxu0 0
  %220 = vmatmul.mubr.bf16.gmra.mrb[0].mxu0 %v116
  %v221 = vpop.f32.mrb[0].mxu0
  %v222 = vadd.f32 0.0, %v221
  %v223 = vpop.f32.mrb[0].mxu0
  %v224 = vpop.f32.mrb[0].mxu0
  %v225 = vadd.f32 0.0, %v224
  %v226 = vpop.f32.mrb[0].mxu0
  %227 = vmatprep.mubr.bf16.mxu0 0
  %228 = vmatmul.mubr.bf16.gmra.mrb[0].mxu0 %v117
  %v229 = vpop.f32.mrb[0].mxu0
  %v230 = vadd.f32 0.0, %v229
  %v231 = vpop.f32.mrb[0].mxu0
  %v232 = vpop.f32.mrb[0].mxu0
  %v233 = vadd.f32 0.0, %v232
  %v234 = vpop.f32.mrb[0].mxu0
  %235 = vmatprep.mubr.bf16.mxu0 0
  %236 = vmatmul.mubr.bf16.gmra.mrb[0].mxu0 %v118
  %v237 = vpop.f32.mrb[0].mxu0
  %v238 = vadd.f32 0.0, %v237
  %v239 = vpop.f32.mrb[0].mxu0
  %v240 = vpop.f32.mrb[0].mxu0
  %v241 = vadd.f32 0.0, %v240
  %v242 = vpop.f32.mrb[0].mxu0
  %243 = vmatprep.mubr.bf16.mxu0 0
  %244 = vmatmul.mubr.bf16.gmra.mrb[0].mxu0 %v119
  %v245 = vpop.f32.mrb[0].mxu0
  %v246 = vadd.f32 0.0, %v245
  %v247 = vpop.f32.mrb[0].mxu0
  %v248 = vpop.f32.mrb[0].mxu0
  %v249 = vadd.f32 0.0, %v248
  %v250 = vpop.f32.mrb[0].mxu0
  %251 = vmatprep.mubr.bf16.mxu0 0
  %252 = vmatmul.mubr.bf16.gmra.mrb[0].mxu0 %v120
  %v253 = vpop.f32.mrb[0].mxu0
  %v254 = vadd.f32 0.0, %v253
  %v255 = vpop.f32.mrb[0].mxu0
  %v256 = vpop.f32.mrb[0].mxu0
  %v257 = vadd.f32 0.0, %v256
  %v258 = vpop.f32.mrb[0].mxu0
  %259 = vmatprep.mubr.bf16.mxu0 0
  %260 = vmatmul.mubr.bf16.gmra.mrb[0].mxu0 %v121
  %v261 = vpop.f32.mrb[0].mxu0
  %v262 = vadd.f32 0.0, %v261
  %v263 = vpop.f32.mrb[0].mxu0
  %v264 = vpop.f32.mrb[0].mxu0
  %v265 = vadd.f32 0.0, %v264
  %v266 = vpop.f32.mrb[0].mxu0
  %267 = vmatprep.mubr.bf16.mxu0 0
  %268 = vmatmul.mubr.bf16.gmra.mrb[0].mxu0 %v122
  %v269 = vpop.f32.mrb[0].mxu0
  %v270 = vadd.f32 0.0, %v269
  %v271 = vpop.f32.mrb[0].mxu0
  %v272 = vpop.f32.mrb[0].mxu0
  %v273 = vadd.f32 0.0, %v272
  %v274 = vpop.f32.mrb[0].mxu0
  %275 = vdwg.mxu0
  %v276 = vadd.f32 %v35, %v214
  %v277 = vadd.f32 %v36, %v217
  %v278 = vadd.f32 %v37, %v222
  %v279 = vadd.f32 %v38, %v225
  %v280 = vadd.f32 %v39, %v230
  %v281 = vadd.f32 %v40, %v233
  %v282 = vadd.f32 %v41, %v238
  %v283 = vadd.f32 %v42, %v241
  %v284 = vadd.f32 %v43, %v246
  %v285 = vadd.f32 %v44, %v249
  %v286 = vadd.f32 %v45, %v254
  %v287 = vadd.f32 %v46, %v257
  %v288 = vadd.f32 %v47, %v262
  %v289 = vadd.f32 %v48, %v265
  %v290 = vadd.f32 %v49, %v270
  %v291 = vadd.f32 %v50, %v273
  %292 = vst [vmem:[#allocation2] sm:$0xff] %v276
  %293 = vst [vmem:[#allocation2 + $0x8] sm:$0xff] %v277
  %294 = vst [vmem:[#allocation2 + $0x10] sm:$0xff] %v278
  %295 = vst [vmem:[#allocation2 + $0x18] sm:$0xff] %v279
  %296 = vst [vmem:[#allocation2 + $0x20] sm:$0xff] %v280
  %297 = vst [vmem:[#allocation2 + $0x28] sm:$0xff] %v281
  %298 = vst [vmem:[#allocation2 + $0x30] sm:$0xff] %v282
  %299 = vst [vmem:[#allocation2 + $0x38] sm:$0xff] %v283
  %300 = vst [vmem:[#allocation2 + $0x40] sm:$0xff] %v284
  %301 = vst [vmem:[#allocation2 + $0x48] sm:$0xff] %v285
  %302 = vst [vmem:[#allocation2 + $0x50] sm:$0xff] %v286
  %303 = vst [vmem:[#allocation2 + $0x58] sm:$0xff] %v287
  %304 = vst [vmem:[#allocation2 + $0x60] sm:$0xff] %v288
  %305 = vst [vmem:[#allocation2 + $0x68] sm:$0xff] %v289
  %306 = vst [vmem:[#allocation2 + $0x70] sm:$0xff] %v290
  %307 = vst [vmem:[#allocation2 + $0x78] sm:$0xff] %v291
  // Predicated region
  $region18: #{vae_forward.15} parent=0 // pred_check
    %p308 = pneg %p15
  $region19: #{vae_forward.15} parent=0 // pred_check_branch
    %310 = sbr.rel (%p308) target = $region21
  $region20: #{vae_forward.15} parent=0 // pred_region
    %v311 = vld [vmem:[#allocation2] sm:$0xff]
    %v312 = vld [vmem:[#allocation2 + $0x8] sm:$0xff]
    %v313 = vld [vmem:[#allocation2 + $0x10] sm:$0xff]
    %v314 = vld [vmem:[#allocation2 + $0x18] sm:$0xff]
    %v315 = vld [vmem:[#allocation2 + $0x20] sm:$0xff]
    %v316 = vld [vmem:[#allocation2 + $0x28] sm:$0xff]
    %v317 = vld [vmem:[#allocation2 + $0x30] sm:$0xff]
    %v318 = vld [vmem:[#allocation2 + $0x38] sm:$0xff]
    %v319 = vld [vmem:[#allocation2 + $0x40] sm:$0xff]
    %v320 = vld [vmem:[#allocation2 + $0x48] sm:$0xff]
    %v321 = vld [vmem:[#allocation2 + $0x50] sm:$0xff]
    %v322 = vld [vmem:[#allocation2 + $0x58] sm:$0xff]
    %v323 = vld [vmem:[#allocation2 + $0x60] sm:$0xff]
    %v324 = vld [vmem:[#allocation2 + $0x68] sm:$0xff]
    %v325 = vld [vmem:[#allocation2 + $0x70] sm:$0xff]
    %v326 = vld [vmem:[#allocation2 + $0x78] sm:$0xff]
    %v327 = vld [vmem:[%s2] sm:$0x1]
    %v329 = vlaneseq
    %v330 = vshrl.u32 %v329, 7
    %v331 = vsub.s32 0, %v330
    %v332 = vrot.slane %v327, %v331
    %v334 = vadd.f32 %v311, %v332
    %v335 = vadd.f32 %v312, %v332
    %v336 = vadd.f32 %v313, %v332
    %v337 = vadd.f32 %v314, %v332
    %v338 = vadd.f32 %v315, %v332
    %v339 = vadd.f32 %v316, %v332
    %v340 = vadd.f32 %v317, %v332
    %v341 = vadd.f32 %v318, %v332
    %v342 = vadd.f32 %v319, %v332
    %v343 = vadd.f32 %v320, %v332
    %v344 = vadd.f32 %v321, %v332
    %v345 = vadd.f32 %v322, %v332
    %v346 = vadd.f32 %v323, %v332
    %v347 = vadd.f32 %v324, %v332
    %v348 = vadd.f32 %v325, %v332
    %v349 = vadd.f32 %v326, %v332
    %v350 = vxor.u32 %v334, 2147483648
    %v351 = vxor.u32 %v335, 2147483648
    %v352 = vxor.u32 %v336, 2147483648
    %v353 = vxor.u32 %v337, 2147483648
    %v354 = vxor.u32 %v338, 2147483648
    %v355 = vxor.u32 %v339, 2147483648
    %v356 = vxor.u32 %v340, 2147483648
    %v357 = vxor.u32 %v341, 2147483648
    %v358 = vxor.u32 %v342, 2147483648
    %v359 = vxor.u32 %v343, 2147483648
    %v360 = vxor.u32 %v344, 2147483648
    %v361 = vxor.u32 %v345, 2147483648
    %v362 = vxor.u32 %v346, 2147483648
    %v363 = vxor.u32 %v347, 2147483648
    %v364 = vxor.u32 %v348, 2147483648
    %v365 = vxor.u32 %v349, 2147483648
    %v366 = vmul.f32 %v350, 1.442695
    %v367 = vpow.pop %v366
    %v368 = vmul.f32 %v351, 1.442695
    %v369 = vpow.pop %v368
    %v370 = vmul.f32 %v352, 1.442695
    %v371 = vpow.pop %v370
    %v372 = vmul.f32 %v353, 1.442695
    %v373 = vpow.pop %v372
    %v374 = vmul.f32 %v354, 1.442695
    %v375 = vpow.pop %v374
    %v376 = vmul.f32 %v355, 1.442695
    %v377 = vpow.pop %v376
    %v378 = vmul.f32 %v356, 1.442695
    %v379 = vpow.pop %v378
    %v380 = vmul.f32 %v357, 1.442695
    %v381 = vpow.pop %v380
    %v382 = vmul.f32 %v358, 1.442695
    %v383 = vpow.pop %v382
    %v384 = vmul.f32 %v359, 1.442695
    %v385 = vpow.pop %v384
    %v386 = vmul.f32 %v360, 1.442695
    %v387 = vpow.pop %v386
    %v388 = vmul.f32 %v361, 1.442695
    %v389 = vpow.pop %v388
    %v390 = vmul.f32 %v362, 1.442695
    %v391 = vpow.pop %v390
    %v392 = vmul.f32 %v363, 1.442695
    %v393 = vpow.pop %v392
    %v394 = vmul.f32 %v364, 1.442695
    %v395 = vpow.pop %v394
    %v396 = vmul.f32 %v365, 1.442695
    %v397 = vpow.pop %v396
    %v398 = vadd.f32 %v367, 1.0
    %v399 = vadd.f32 %v369, 1.0
    %v400 = vadd.f32 %v371, 1.0
    %v401 = vadd.f32 %v373, 1.0
    %v402 = vadd.f32 %v375, 1.0
    %v403 = vadd.f32 %v377, 1.0
    %v404 = vadd.f32 %v379, 1.0
    %v405 = vadd.f32 %v381, 1.0
    %v406 = vadd.f32 %v383, 1.0
    %v407 = vadd.f32 %v385, 1.0
    %v408 = vadd.f32 %v387, 1.0
    %v409 = vadd.f32 %v389, 1.0
    %v410 = vadd.f32 %v391, 1.0
    %v411 = vadd.f32 %v393, 1.0
    %v412 = vadd.f32 %v395, 1.0
    %v413 = vadd.f32 %v397, 1.0
    %v414 = vrcp.pop %v398
    %v415 = vmul.f32 1.0, %v414
    %v416 = vrcp.pop %v399
    %v417 = vmul.f32 1.0, %v416
    %v418 = vrcp.pop %v400
    %v419 = vmul.f32 1.0, %v418
    %v420 = vrcp.pop %v401
    %v421 = vmul.f32 1.0, %v420
    %v422 = vrcp.pop %v402
    %v423 = vmul.f32 1.0, %v422
    %v424 = vrcp.pop %v403
    %v425 = vmul.f32 1.0, %v424
    %v426 = vrcp.pop %v404
    %v427 = vmul.f32 1.0, %v426
    %v428 = vrcp.pop %v405
    %v429 = vmul.f32 1.0, %v428
    %v430 = vrcp.pop %v406
    %v431 = vmul.f32 1.0, %v430
    %v432 = vrcp.pop %v407
    %v433 = vmul.f32 1.0, %v432
    %v434 = vrcp.pop %v408
    %v435 = vmul.f32 1.0, %v434
    %v436 = vrcp.pop %v409
    %v437 = vmul.f32 1.0, %v436
    %v438 = vrcp.pop %v410
    %v439 = vmul.f32 1.0, %v438
    %v440 = vrcp.pop %v411
    %v441 = vmul.f32 1.0, %v440
    %v442 = vrcp.pop %v412
    %v443 = vmul.f32 1.0, %v442
    %v444 = vrcp.pop %v413
    %v445 = vmul.f32 1.0, %v444
    %446 = vst [vmem:[%s3] sm:$0xff] %v415
    %447 = vst [vmem:[%s3 + $0x8] sm:$0xff] %v417
    %448 = vst [vmem:[%s3 + $0x10] sm:$0xff] %v419
    %449 = vst [vmem:[%s3 + $0x18] sm:$0xff] %v421
    %450 = vst [vmem:[%s3 + $0x20] sm:$0xff] %v423
    %451 = vst [vmem:[%s3 + $0x28] sm:$0xff] %v425
    %452 = vst [vmem:[%s3 + $0x30] sm:$0xff] %v427
    %453 = vst [vmem:[%s3 + $0x38] sm:$0xff] %v429
    %454 = vst [vmem:[%s3 + $0x40] sm:$0xff] %v431
    %455 = vst [vmem:[%s3 + $0x48] sm:$0xff] %v433
    %456 = vst [vmem:[%s3 + $0x50] sm:$0xff] %v435
    %457 = vst [vmem:[%s3 + $0x58] sm:$0xff] %v437
    %458 = vst [vmem:[%s3 + $0x60] sm:$0xff] %v439
    %459 = vst [vmem:[%s3 + $0x68] sm:$0xff] %v441
    %460 = vst [vmem:[%s3 + $0x70] sm:$0xff] %v443
    %461 = vst [vmem:[%s3 + $0x78] sm:$0xff] %v445
  $region21: #{vae_forward.15} parent=0 // pred_fallthru
    _
  // Predicated region
  $region22: #{vae_forward.15} parent=0 // pred_check
    _
  $region23: #{vae_forward.15} parent=0 // pred_check_branch
    %463 = sbr.rel (0) target = $region25
  $region24: #{vae_forward.15} parent=0 // pred_region
    _
  $region25: #{vae_forward.15} parent=0 // pred_fallthru
    _
  // Predicated region
  $region26: #{vae_forward.15} parent=0 // pred_check
    _
  $region27: #{vae_forward.15} parent=0 // pred_check_branch
    %465 = sbr.rel (0) target = $region29
  $region28: #{vae_forward.15} parent=0 // pred_region
    _
  $region29: #{vae_forward.15} parent=0 // pred_fallthru
    _

</llo_original>
